<compile_context>
chip_gen: v7x
topology: tpu7x:2x2x1
jax: 0.10.0
libtpu: 0.0.40
codegen_flags: <defaults>
</compile_context>

<pallas_src>
import functools

import jax
import jax.numpy as jnp
from jax.experimental import pallas as pl
from jax.experimental.pallas import tpu as pltpu


# --------------------------- VMEM budget helper ---------------------------- #

@functools.lru_cache(maxsize=None)
def _vmem_limit_bytes():
    cap = 64 * 1024 * 1024
    try:
        info = pltpu.get_tpu_info()
        cap = int(getattr(info, "vmem_capacity_bytes", cap))
    except Exception:
        pass
    # Half of physical VMEM leaves double-buffering headroom on every
    # generation (v5e/v6e -> 64 MiB, v7x -> 32 MiB).
    return min(cap // 2, 64 * 1024 * 1024)


def _pick_tile(dim, target, align):
    """Largest divisor of `dim` that is <= target and a multiple of `align`,
    falling back to the full dim (full-dim blocks are always legal)."""
    if dim <= target:
        return dim
    if dim % target == 0 and target % align == 0:
        return target
    for t in range(target, align - 1, -1):
        if dim % t == 0 and t % align == 0:
            return t
    return dim


# ------------------------------ Pallas kernel ------------------------------ #

def _conv_block_kernel(p_ref, w_ref, b_ref, o_ref, acc_ref, *,
                       instance_norm, leaky_relu, neg_slope=0.2, eps=1e-5):
    """Tiled (tP, tK) @ (tK, Cout) with f32 accumulator.

    K (reduction) is the innermost grid axis; at k==0 the accumulator is
    zeroed, at k==last the bias / InstanceNorm / LeakyReLU epilogue runs and
    the output tile is written."""
    k_idx = pl.program_id(2)

    @pl.when(k_idx == 0)
    def _():
        acc_ref[...] = jnp.zeros_like(acc_ref)

    acc_ref[...] += jnp.dot(p_ref[0], w_ref[...],
                            preferred_element_type=jnp.float32)

    @pl.when(k_idx == pl.num_programs(2) - 1)
    def _():
        y = acc_ref[...] + b_ref[...]                       # (tP, Cout) f32
        if instance_norm:
            # InstanceNorm2d(affine=False), biased variance, eps=1e-5.
            # One-pass stats: sum and sum-of-squares (f32 accumulation).
            p = y.shape[0]
            s = jnp.sum(y, axis=0, keepdims=True)
            ss = jnp.sum(y * y, axis=0, keepdims=True)
            mean = s * (1.0 / p)
            var = jnp.maximum(ss * (1.0 / p) - mean * mean, 0.0)
            y = (y - mean) * jax.lax.rsqrt(var + eps)
        if leaky_relu:
            y = jnp.where(y >= 0, y, neg_slope * y)
        o_ref[0] = y.astype(o_ref.dtype)


def conv_block_pallas(patches, w_mat, bias, *, instance_norm, leaky_relu,
                      out_dtype=jnp.bfloat16, tile_p=512, tile_k=512):
    """patches: [N, P, K] bf16, w_mat: [K, Cout] bf16, bias: [Cout] f32."""
    N, P, K = patches.shape
    Cout = w_mat.shape[1]

    # InstanceNorm needs full-spatial statistics, so keep P un-tiled there
    # (P shrinks 4x per layer, so these blocks stay modest).
    tP = P if instance_norm else _pick_tile(P, tile_p, 8)
    tK = _pick_tile(K, tile_k, 128)

    b2 = bias.reshape(1, Cout).astype(jnp.float32)
    kern = functools.partial(_conv_block_kernel,
                             instance_norm=instance_norm,
                             leaky_relu=leaky_relu)
    return pl.pallas_call(
        kern,
        out_shape=jax.ShapeDtypeStruct((N, P, Cout), out_dtype),
        grid_spec=pltpu.PrefetchScalarGridSpec(
            num_scalar_prefetch=0,
            grid=(N, P // tP, K // tK),
            in_specs=[
                pl.BlockSpec((1, tP, tK), lambda n, p, k: (n, p, k)),
                pl.BlockSpec((tK, Cout), lambda n, p, k: (k, 0)),
                pl.BlockSpec((1, Cout), lambda n, p, k: (0, 0)),
            ],
            out_specs=pl.BlockSpec((1, tP, Cout), lambda n, p, k: (n, p, 0)),
            scratch_shapes=[pltpu.VMEM((tP, Cout), jnp.float32)],
        ),
        compiler_params=pltpu.CompilerParams(
            dimension_semantics=("parallel", "parallel", "arbitrary"),
            vmem_limit_bytes=_vmem_limit_bytes(),
        ),
    )(patches, w_mat, b2)


# -------------------------------- JAX glue --------------------------------- #

def im2col_nhwc(x, k, stride, pad):
    """x: [N, H, W, C]; pad = (top, bottom, left, right).

    Returns patches [N, OH*OW, k*k*C] with feature ordering (i*k + j)*C + c,
    matching a PyTorch Conv2d weight transposed to [kh, kw, Cin, Cout]."""
    pt, pb, plft, pr = pad
    x = jnp.pad(x, ((0, 0), (pt, pb), (plft, pr), (0, 0)))
    N, H, W, C = x.shape
    OH = (H - k) // stride + 1
    OW = (W - k) // stride + 1
    cols = []
    for i in range(k):
        for j in range(k):
            cols.append(x[:, i:i + stride * OH:stride,
                          j:j + stride * OW:stride, :])      # [N, OH, OW, C]
    patches = jnp.concatenate(cols, axis=-1)                  # [N, OH, OW, k*k*C]
    return patches.reshape(N, OH * OW, k * k * C), OH, OW


def spectral_sigma(w_mat, n_iters=20, eps=1e-12):
    """Largest singular value via power iteration (as torch spectral_norm),
    on w reshaped to (Cout, -1) (dim=0). Much cheaper than full SVD."""
    v = jnp.ones((w_mat.shape[1],), jnp.float32)
    v = v / (jnp.linalg.norm(v) + eps)
    u = w_mat @ v
    u = u / (jnp.linalg.norm(u) + eps)

    def body(_, uv):
        u, v = uv
        v = w_mat.T @ u
        v = v / (jnp.linalg.norm(v) + eps)
        u = w_mat @ v
        u = u / (jnp.linalg.norm(u) + eps)
        return (u, v)

    u, v = jax.lax.fori_loop(0, n_iters, body, (u, v))
    return jnp.dot(u, w_mat @ v)


def init_discriminator_params(key, in_channels):
    """Deterministic synthetic weights for the 5 convs (4x4 kernels)."""
    specs = [(in_channels, 64), (64, 128), (128, 256), (256, 512), (512, 1)]
    params = []
    for cin, cout in specs:
        key, kw, kb = jax.random.split(key, 3)
        fan_in = cin * 16
        bound = 1.0 / float(fan_in) ** 0.5
        w = jax.random.uniform(kw, (cout, cin, 4, 4), jnp.float32, -bound, bound)
        b = jax.random.uniform(kb, (cout,), jnp.float32, -bound, bound)
        params.append((w, b))
    return params


def discriminator2_forward(img, params):
    """img: [N, C, H, W] (NCHW, like PyTorch). Returns the PatchGAN map
    [N, 1, H//16, W//16] (second element of the PyTorch forward tuple)."""
    # TODO(synk): the first forward output (pretrained DeepLabV3+ MobileNet
    # semantic map -> argmax -> one_hot) requires an external checkpoint and
    # has no clean Pallas equivalent; it is omitted here.
    N = img.shape[0]
    # Single NCHW -> NHWC relayout at the entry; everything stays NHWC/bf16.
    x = jnp.transpose(img, (0, 2, 3, 1)).astype(jnp.bfloat16)

    layer_cfg = [
        dict(inorm=False),   # block(C,   64, normalize=False)
        dict(inorm=True),    # block(64, 128)
        dict(inorm=True),    # block(128,256)
        dict(inorm=True),    # block(256,512)
    ]
    for (w, b), cfg in zip(params[:4], layer_cfg):
        cout = w.shape[0]
        sigma = spectral_sigma(w.reshape(cout, -1))           # spectral_norm conv
        w_mat = jnp.transpose(w / sigma, (2, 3, 1, 0)).reshape(-1, cout)
        w_mat = w_mat.astype(jnp.bfloat16)
        patches, OH, OW = im2col_nhwc(x, 4, 2, (1, 1, 1, 1))
        y = conv_block_pallas(patches, w_mat, b,
                              instance_norm=cfg["inorm"], leaky_relu=True,
                              out_dtype=jnp.bfloat16)
        x = y.reshape(N, OH, OW, cout)                         # stays NHWC

    # nn.ZeroPad2d((1,0,1,0)) (left=1, top=1) + Conv2d(512,1,4,padding=1)
    # -> total padding: top=2, bottom=1, left=2, right=1, stride 1, no SN.
    w, b = params[4]
    w_mat = jnp.transpose(w, (2, 3, 1, 0)).reshape(-1, 1)
    # Pad Cout 1 -> 128: lane-dense output stores + full MXU lanes; channel 0
    # is the real result, channels 1..127 are zero-weight throwaways.
    w_mat = jnp.pad(w_mat, ((0, 0), (0, 127))).astype(jnp.bfloat16)
    b_pad = jnp.pad(b, (0, 127))
    patches, OH, OW = im2col_nhwc(x, 4, 1, (2, 1, 2, 1))
    y = conv_block_pallas(patches, w_mat, b_pad,
                          instance_norm=False, leaky_relu=False,
                          out_dtype=jnp.float32)
    out = y[:, :, :1].reshape(N, OH, OW, 1)
    return jnp.transpose(out, (0, 3, 1, 2))                    # NCHW like PyTorch


if __name__ == "__main__":
    key = jax.random.PRNGKey(0)
    k_img, k_par = jax.random.split(key)
    # input_shape = (channels=3, height=32, width=32), batch = 2
    img = jax.random.uniform(k_img, (2, 3, 32, 32), jnp.float32)
    params = init_discriminator_params(k_par, 3)

    fwd = jax.jit(discriminator2_forward)
    out = fwd(img, params)
    out = jax.block_until_ready(out)

    # output_shape = (1, H // 2**4, W // 2**4) = (1, 2, 2)
    assert out.shape == (2, 1, 2, 2), out.shape
    assert bool(jnp.all(jnp.isfinite(out)))
    print("KERNEL_OK")
</pallas_src>

<mosaic_0001>
module attributes {stable_mosaic.version = 11 : i64} {
  func.func @_conv_block_kernel(%arg0: i32, %arg1: i32, %arg2: i32, %arg3: memref<1x256x48xbf16, #tpu.memory_space<vmem>>, %arg4: memref<48x64xbf16, #tpu.memory_space<vmem>>, %arg5: memref<1x64xf32, #tpu.memory_space<vmem>>, %arg6: memref<1x256x64xbf16, #tpu.memory_space<vmem>>, %arg7: memref<256x64xf32, #tpu.memory_space<vmem>>) attributes {dimension_semantics = [#tpu.dimension_semantics<parallel>, #tpu.dimension_semantics<parallel>, #tpu.dimension_semantics<arbitrary>], iteration_bounds = array<i64: 2, 1, 1>, scalar_prefetch = 0 : i64, scratch_operands = 1 : i64, tpu.core_type = #tpu.core_type<tc>, window_params = [{transform_indices = @transform_0, window_bounds = array<i64: 1, 256, 48>}, {transform_indices = @transform_1, window_bounds = array<i64: 48, 64>}, {pipeline_mode = #tpu.pipeline_mode<synchronous>, transform_indices = @transform_2, window_bounds = array<i64: 1, 64>}, {transform_indices = @transform_3, window_bounds = array<i64: 1, 256, 64>}]} {
    %c0_i32 = arith.constant 0 : i32
    %0 = arith.cmpi eq, %arg2, %c0_i32 : i32
    %1 = arith.extui %0 : i1 to i32
    %c0_i32_0 = arith.constant 0 : i32
    %2 = arith.cmpi ne, %1, %c0_i32_0 : i32
    scf.if %2 {
      %cst_11 = arith.constant 0.000000e+00 : f32
      %13 = vector.broadcast %cst_11 : f32 to vector<256x64xf32>
      %c0_12 = arith.constant 0 : index
      %c0_13 = arith.constant 0 : index
      %14 = vector.load %arg7[%c0_12, %c0_13] : memref<256x64xf32, #tpu.memory_space<vmem>>, vector<256x64xf32>
      tpu.vector_store %arg7[%c0_12, %c0_13], %13 {strides = array<i32>} : memref<256x64xf32, #tpu.memory_space<vmem>>, vector<256x64xf32>,
    } else {
    }
    %c0 = arith.constant 0 : index
    %c0_1 = arith.constant 0 : index
    %3 = vector.load %arg7[%c0, %c0_1] : memref<256x64xf32, #tpu.memory_space<vmem>>, vector<256x64xf32>
    %c0_2 = arith.constant 0 : index
    %c0_3 = arith.constant 0 : index
    %c0_4 = arith.constant 0 : index
    %4 = vector.load %arg3[%c0_2, %c0_3, %c0_4] : memref<1x256x48xbf16, #tpu.memory_space<vmem>>, vector<1x256x48xbf16>
    %5 = vector.shape_cast %4 : vector<1x256x48xbf16> to vector<256x48xbf16>
    %c0_5 = arith.constant 0 : index
    %c0_6 = arith.constant 0 : index
    %6 = vector.load %arg4[%c0_5, %c0_6] : memref<48x64xbf16, #tpu.memory_space<vmem>>, vector<48x64xbf16>
    %cst = arith.constant dense<0.000000e+00> : vector<256x64xf32>
    %7 = tpu.matmul %5, %6, %cst {dimension_numbers = #tpu.dot_dimension_numbers<[1], [0], [0], [1], [0, 0, 1, 1], [], []>} : vector<256x48xbf16>, vector<48x64xbf16>, vector<256x64xf32> -> vector<256x64xf32>
    %8 = arith.addf %3, %7 : vector<256x64xf32>
    %c0_7 = arith.constant 0 : index
    %c0_8 = arith.constant 0 : index
    %9 = vector.load %arg7[%c0_7, %c0_8] : memref<256x64xf32, #tpu.memory_space<vmem>>, vector<256x64xf32>
    tpu.vector_store %arg7[%c0_7, %c0_8], %8 {strides = array<i32>} : memref<256x64xf32, #tpu.memory_space<vmem>>, vector<256x64xf32>,
    %c0_i32_9 = arith.constant 0 : i32
    %10 = arith.cmpi eq, %arg2, %c0_i32_9 : i32
    %11 = arith.extui %10 : i1 to i32
    %c0_i32_10 = arith.constant 0 : i32
    %12 = arith.cmpi ne, %11, %c0_i32_10 : i32
    scf.if %12 {
      %c0_11 = arith.constant 0 : index
      %c0_12 = arith.constant 0 : index
      %13 = vector.load %arg7[%c0_11, %c0_12] : memref<256x64xf32, #tpu.memory_space<vmem>>, vector<256x64xf32>
      %c0_13 = arith.constant 0 : index
      %c0_14 = arith.constant 0 : index
      %14 = vector.load %arg5[%c0_13, %c0_14] : memref<1x64xf32, #tpu.memory_space<vmem>>, vector<1x64xf32>
      %15 = vector.broadcast %14 : vector<1x64xf32> to vector<256x64xf32>
      %16 = arith.addf %13, %15 : vector<256x64xf32>
      %cst_15 = arith.constant 0.000000e+00 : f32
      %17 = vector.broadcast %cst_15 : f32 to vector<256x64xf32>
      %18 = arith.cmpf oge, %16, %17 : vector<256x64xf32>
      %cst_16 = arith.constant 2.000000e-01 : f32
      %19 = vector.broadcast %cst_16 : f32 to vector<256x64xf32>
      %20 = arith.mulf %19, %16 : vector<256x64xf32>
      %21 = arith.select %18, %16, %20 : vector<256x64xi1>, vector<256x64xf32>
      %22 = arith.truncf %21 : vector<256x64xf32> to vector<256x64xbf16>
      %c0_17 = arith.constant 0 : index
      %c0_18 = arith.constant 0 : index
      %c0_19 = arith.constant 0 : index
      %23 = vector.load %arg6[%c0_17, %c0_18, %c0_19] : memref<1x256x64xbf16, #tpu.memory_space<vmem>>, vector<1x256x64xbf16>
      %24 = vector.shape_cast %23 : vector<1x256x64xbf16> to vector<256x64xbf16>
      %25 = vector.shape_cast %22 : vector<256x64xbf16> to vector<1x256x64xbf16>
      tpu.vector_store %arg6[%c0_17, %c0_18, %c0_19], %25 {strides = array<i32>} : memref<1x256x64xbf16, #tpu.memory_space<vmem>>, vector<1x256x64xbf16>,
    } else {
    }
    return
  }
  func.func @transform_0(%arg0: i32, %arg1: i32, %arg2: i32) -> (i32, i32, i32) {
    %c0_i32 = arith.constant 0 : i32
    return %arg0, %arg1, %arg2 : i32, i32, i32
  }
  func.func @transform_1(%arg0: i32, %arg1: i32, %arg2: i32) -> (i32, i32) {
    %c0_i32 = arith.constant 0 : i32
    %c0_i32_0 = arith.constant 0 : i32
    return %arg2, %c0_i32 : i32, i32
  }
  func.func @transform_2(%arg0: i32, %arg1: i32, %arg2: i32) -> (i32, i32) {
    %c0_i32 = arith.constant 0 : i32
    %c0_i32_0 = arith.constant 0 : i32
    %c0_i32_1 = arith.constant 0 : i32
    return %c0_i32, %c0_i32_0 : i32, i32
  }
  func.func @transform_3(%arg0: i32, %arg1: i32, %arg2: i32) -> (i32, i32, i32) {
    %c0_i32 = arith.constant 0 : i32
    %c0_i32_0 = arith.constant 0 : i32
    return %arg0, %arg1, %c0_i32 : i32, i32, i32
  }
}

module attributes {stable_mosaic.version = 11 : i64} {
  func.func @_conv_block_kernel(%arg0: i32, %arg1: i32, %arg2: i32, %arg3: memref<1x64x512xbf16, #tpu.memory_space<vmem>>, %arg4: memref<512x128xbf16, #tpu.memory_space<vmem>>, %arg5: memref<1x128xf32, #tpu.memory_space<vmem>>, %arg6: memref<1x64x128xbf16, #tpu.memory_space<vmem>>, %arg7: memref<64x128xf32, #tpu.memory_space<vmem>>) attributes {dimension_semantics = [#tpu.dimension_semantics<parallel>, #tpu.dimension_semantics<parallel>, #tpu.dimension_semantics<arbitrary>], iteration_bounds = array<i64: 2, 1, 2>, scalar_prefetch = 0 : i64, scratch_operands = 1 : i64, tpu.core_type = #tpu.core_type<tc>, window_params = [{transform_indices = @transform_0, window_bounds = array<i64: 1, 64, 512>}, {transform_indices = @transform_1, window_bounds = array<i64: 512, 128>}, {pipeline_mode = #tpu.pipeline_mode<synchronous>, transform_indices = @transform_2, window_bounds = array<i64: 1, 128>}, {transform_indices = @transform_3, window_bounds = array<i64: 1, 64, 128>}]} {
    %c0_i32 = arith.constant 0 : i32
    %0 = arith.cmpi eq, %arg2, %c0_i32 : i32
    %1 = arith.extui %0 : i1 to i32
    %c0_i32_0 = arith.constant 0 : i32
    %2 = arith.cmpi ne, %1, %c0_i32_0 : i32
    scf.if %2 {
      %cst_10 = arith.constant 0.000000e+00 : f32
      %13 = vector.broadcast %cst_10 : f32 to vector<64x128xf32>
      %c0_11 = arith.constant 0 : index
      %c0_12 = arith.constant 0 : index
      %14 = vector.load %arg7[%c0_11, %c0_12] : memref<64x128xf32, #tpu.memory_space<vmem>>, vector<64x128xf32>
      tpu.vector_store %arg7[%c0_11, %c0_12], %13 {strides = array<i32>} : memref<64x128xf32, #tpu.memory_space<vmem>>, vector<64x128xf32>,
    } else {
    }
    %c0 = arith.constant 0 : index
    %c0_1 = arith.constant 0 : index
    %3 = vector.load %arg7[%c0, %c0_1] : memref<64x128xf32, #tpu.memory_space<vmem>>, vector<64x128xf32>
    %c0_2 = arith.constant 0 : index
    %c0_3 = arith.constant 0 : index
    %c0_4 = arith.constant 0 : index
    %4 = vector.load %arg3[%c0_2, %c0_3, %c0_4] : memref<1x64x512xbf16, #tpu.memory_space<vmem>>, vector<1x64x512xbf16>
    %5 = vector.shape_cast %4 : vector<1x64x512xbf16> to vector<64x512xbf16>
    %c0_5 = arith.constant 0 : index
    %c0_6 = arith.constant 0 : index
    %6 = vector.load %arg4[%c0_5, %c0_6] : memref<512x128xbf16, #tpu.memory_space<vmem>>, vector<512x128xbf16>
    %cst = arith.constant dense<0.000000e+00> : vector<64x128xf32>
    %7 = tpu.matmul %5, %6, %cst {dimension_numbers = #tpu.dot_dimension_numbers<[1], [0], [0], [1], [0, 0, 1, 1], [], []>} : vector<64x512xbf16>, vector<512x128xbf16>, vector<64x128xf32> -> vector<64x128xf32>
    %8 = arith.addf %3, %7 : vector<64x128xf32>
    %c0_7 = arith.constant 0 : index
    %c0_8 = arith.constant 0 : index
    %9 = vector.load %arg7[%c0_7, %c0_8] : memref<64x128xf32, #tpu.memory_space<vmem>>, vector<64x128xf32>
    tpu.vector_store %arg7[%c0_7, %c0_8], %8 {strides = array<i32>} : memref<64x128xf32, #tpu.memory_space<vmem>>, vector<64x128xf32>,
    %c1_i32 = arith.constant 1 : i32
    %10 = arith.cmpi eq, %arg2, %c1_i32 : i32
    %11 = arith.extui %10 : i1 to i32
    %c0_i32_9 = arith.constant 0 : i32
    %12 = arith.cmpi ne, %11, %c0_i32_9 : i32
    scf.if %12 {
      %c0_10 = arith.constant 0 : index
      %c0_11 = arith.constant 0 : index
      %13 = vector.load %arg7[%c0_10, %c0_11] : memref<64x128xf32, #tpu.memory_space<vmem>>, vector<64x128xf32>
      %c0_12 = arith.constant 0 : index
      %c0_13 = arith.constant 0 : index
      %14 = vector.load %arg5[%c0_12, %c0_13] : memref<1x128xf32, #tpu.memory_space<vmem>>, vector<1x128xf32>
      %15 = vector.broadcast %14 : vector<1x128xf32> to vector<64x128xf32>
      %16 = arith.addf %13, %15 : vector<64x128xf32>
      %cst_14 = arith.constant dense<0.000000e+00> : vector<128xf32>
      %17 = vector.multi_reduction <add>, %16, %cst_14 [0] : vector<64x128xf32> to vector<128xf32>
      %18 = vector.shape_cast %17 : vector<128xf32> to vector<1x128xf32>
      %19 = arith.mulf %16, %16 : vector<64x128xf32>
      %cst_15 = arith.constant dense<0.000000e+00> : vector<128xf32>
      %20 = vector.multi_reduction <add>, %19, %cst_15 [0] : vector<64x128xf32> to vector<128xf32>
      %21 = vector.shape_cast %20 : vector<128xf32> to vector<1x128xf32>
      %cst_16 = arith.constant 1.562500e-02 : f32
      %22 = vector.broadcast %cst_16 : f32 to vector<1x128xf32>
      %23 = arith.mulf %18, %22 : vector<1x128xf32>
      %cst_17 = arith.constant 1.562500e-02 : f32
      %24 = vector.broadcast %cst_17 : f32 to vector<1x128xf32>
      %25 = arith.mulf %21, %24 : vector<1x128xf32>
      %26 = arith.mulf %23, %23 : vector<1x128xf32>
      %27 = arith.subf %25, %26 : vector<1x128xf32>
      %cst_18 = arith.constant 0.000000e+00 : f32
      %28 = vector.broadcast %cst_18 : f32 to vector<1x128xf32>
      %29 = arith.maximumf %27, %28 : vector<1x128xf32>
      %30 = vector.broadcast %23 : vector<1x128xf32> to vector<64x128xf32>
      %31 = arith.subf %16, %30 : vector<64x128xf32>
      %cst_19 = arith.constant 9.99999974E-6 : f32
      %32 = vector.broadcast %cst_19 : f32 to vector<1x128xf32>
      %33 = arith.addf %29, %32 : vector<1x128xf32>
      %34 = math.rsqrt %33 : vector<1x128xf32>
      %35 = vector.broadcast %34 : vector<1x128xf32> to vector<64x128xf32>
      %36 = arith.mulf %31, %35 : vector<64x128xf32>
      %cst_20 = arith.constant 0.000000e+00 : f32
      %37 = vector.broadcast %cst_20 : f32 to vector<64x128xf32>
      %38 = arith.cmpf oge, %36, %37 : vector<64x128xf32>
      %cst_21 = arith.constant 2.000000e-01 : f32
      %39 = vector.broadcast %cst_21 : f32 to vector<64x128xf32>
      %40 = arith.mulf %39, %36 : vector<64x128xf32>
      %41 = arith.select %38, %36, %40 : vector<64x128xi1>, vector<64x128xf32>
      %42 = arith.truncf %41 : vector<64x128xf32> to vector<64x128xbf16>
      %c0_22 = arith.constant 0 : index
      %c0_23 = arith.constant 0 : index
      %c0_24 = arith.constant 0 : index
      %43 = vector.load %arg6[%c0_22, %c0_23, %c0_24] : memref<1x64x128xbf16, #tpu.memory_space<vmem>>, vector<1x64x128xbf16>
      %44 = vector.shape_cast %43 : vector<1x64x128xbf16> to vector<64x128xbf16>
      %45 = vector.shape_cast %42 : vector<64x128xbf16> to vector<1x64x128xbf16>
      tpu.vector_store %arg6[%c0_22, %c0_23, %c0_24], %45 {strides = array<i32>} : memref<1x64x128xbf16, #tpu.memory_space<vmem>>, vector<1x64x128xbf16>,
    } else {
    }
    return
  }
  func.func @transform_0(%arg0: i32, %arg1: i32, %arg2: i32) -> (i32, i32, i32) {
    %c0_i32 = arith.constant 0 : i32
    return %arg0, %arg1, %arg2 : i32, i32, i32
  }
  func.func @transform_1(%arg0: i32, %arg1: i32, %arg2: i32) -> (i32, i32) {
    %c0_i32 = arith.constant 0 : i32
    %c0_i32_0 = arith.constant 0 : i32
    return %arg2, %c0_i32 : i32, i32
  }
  func.func @transform_2(%arg0: i32, %arg1: i32, %arg2: i32) -> (i32, i32) {
    %c0_i32 = arith.constant 0 : i32
    %c0_i32_0 = arith.constant 0 : i32
    %c0_i32_1 = arith.constant 0 : i32
    return %c0_i32, %c0_i32_0 : i32, i32
  }
  func.func @transform_3(%arg0: i32, %arg1: i32, %arg2: i32) -> (i32, i32, i32) {
    %c0_i32 = arith.constant 0 : i32
    %c0_i32_0 = arith.constant 0 : i32
    return %arg0, %arg1, %c0_i32 : i32, i32, i32
  }
}

module attributes {stable_mosaic.version = 11 : i64} {
  func.func @_conv_block_kernel(%arg0: i32, %arg1: i32, %arg2: i32, %arg3: memref<1x16x512xbf16, #tpu.memory_space<vmem>>, %arg4: memref<512x256xbf16, #tpu.memory_space<vmem>>, %arg5: memref<1x256xf32, #tpu.memory_space<vmem>>, %arg6: memref<1x16x256xbf16, #tpu.memory_space<vmem>>, %arg7: memref<16x256xf32, #tpu.memory_space<vmem>>) attributes {dimension_semantics = [#tpu.dimension_semantics<parallel>, #tpu.dimension_semantics<parallel>, #tpu.dimension_semantics<arbitrary>], iteration_bounds = array<i64: 2, 1, 4>, scalar_prefetch = 0 : i64, scratch_operands = 1 : i64, tpu.core_type = #tpu.core_type<tc>, window_params = [{transform_indices = @transform_0, window_bounds = array<i64: 1, 16, 512>}, {transform_indices = @transform_1, window_bounds = array<i64: 512, 256>}, {pipeline_mode = #tpu.pipeline_mode<synchronous>, transform_indices = @transform_2, window_bounds = array<i64: 1, 256>}, {transform_indices = @transform_3, window_bounds = array<i64: 1, 16, 256>}]} {
    %c0_i32 = arith.constant 0 : i32
    %0 = arith.cmpi eq, %arg2, %c0_i32 : i32
    %1 = arith.extui %0 : i1 to i32
    %c0_i32_0 = arith.constant 0 : i32
    %2 = arith.cmpi ne, %1, %c0_i32_0 : i32
    scf.if %2 {
      %cst_10 = arith.constant 0.000000e+00 : f32
      %13 = vector.broadcast %cst_10 : f32 to vector<16x256xf32>
      %c0_11 = arith.constant 0 : index
      %c0_12 = arith.constant 0 : index
      %14 = vector.load %arg7[%c0_11, %c0_12] : memref<16x256xf32, #tpu.memory_space<vmem>>, vector<16x256xf32>
      tpu.vector_store %arg7[%c0_11, %c0_12], %13 {strides = array<i32>} : memref<16x256xf32, #tpu.memory_space<vmem>>, vector<16x256xf32>,
    } else {
    }
    %c0 = arith.constant 0 : index
    %c0_1 = arith.constant 0 : index
    %3 = vector.load %arg7[%c0, %c0_1] : memref<16x256xf32, #tpu.memory_space<vmem>>, vector<16x256xf32>
    %c0_2 = arith.constant 0 : index
    %c0_3 = arith.constant 0 : index
    %c0_4 = arith.constant 0 : index
    %4 = vector.load %arg3[%c0_2, %c0_3, %c0_4] : memref<1x16x512xbf16, #tpu.memory_space<vmem>>, vector<1x16x512xbf16>
    %5 = vector.shape_cast %4 : vector<1x16x512xbf16> to vector<16x512xbf16>
    %c0_5 = arith.constant 0 : index
    %c0_6 = arith.constant 0 : index
    %6 = vector.load %arg4[%c0_5, %c0_6] : memref<512x256xbf16, #tpu.memory_space<vmem>>, vector<512x256xbf16>
    %cst = arith.constant dense<0.000000e+00> : vector<16x256xf32>
    %7 = tpu.matmul %5, %6, %cst {dimension_numbers = #tpu.dot_dimension_numbers<[1], [0], [0], [1], [0, 0, 1, 1], [], []>} : vector<16x512xbf16>, vector<512x256xbf16>, vector<16x256xf32> -> vector<16x256xf32>
    %8 = arith.addf %3, %7 : vector<16x256xf32>
    %c0_7 = arith.constant 0 : index
    %c0_8 = arith.constant 0 : index
    %9 = vector.load %arg7[%c0_7, %c0_8] : memref<16x256xf32, #tpu.memory_space<vmem>>, vector<16x256xf32>
    tpu.vector_store %arg7[%c0_7, %c0_8], %8 {strides = array<i32>} : memref<16x256xf32, #tpu.memory_space<vmem>>, vector<16x256xf32>,
    %c3_i32 = arith.constant 3 : i32
    %10 = arith.cmpi eq, %arg2, %c3_i32 : i32
    %11 = arith.extui %10 : i1 to i32
    %c0_i32_9 = arith.constant 0 : i32
    %12 = arith.cmpi ne, %11, %c0_i32_9 : i32
    scf.if %12 {
      %c0_10 = arith.constant 0 : index
      %c0_11 = arith.constant 0 : index
      %13 = vector.load %arg7[%c0_10, %c0_11] : memref<16x256xf32, #tpu.memory_space<vmem>>, vector<16x256xf32>
      %c0_12 = arith.constant 0 : index
      %c0_13 = arith.constant 0 : index
      %14 = vector.load %arg5[%c0_12, %c0_13] : memref<1x256xf32, #tpu.memory_space<vmem>>, vector<1x256xf32>
      %15 = vector.broadcast %14 : vector<1x256xf32> to vector<16x256xf32>
      %16 = arith.addf %13, %15 : vector<16x256xf32>
      %cst_14 = arith.constant dense<0.000000e+00> : vector<256xf32>
      %17 = vector.multi_reduction <add>, %16, %cst_14 [0] : vector<16x256xf32> to vector<256xf32>
      %18 = vector.shape_cast %17 : vector<256xf32> to vector<1x256xf32>
      %19 = arith.mulf %16, %16 : vector<16x256xf32>
      %cst_15 = arith.constant dense<0.000000e+00> : vector<256xf32>
      %20 = vector.multi_reduction <add>, %19, %cst_15 [0] : vector<16x256xf32> to vector<256xf32>
      %21 = vector.shape_cast %20 : vector<256xf32> to vector<1x256xf32>
      %cst_16 = arith.constant 6.250000e-02 : f32
      %22 = vector.broadcast %cst_16 : f32 to vector<1x256xf32>
      %23 = arith.mulf %18, %22 : vector<1x256xf32>
      %cst_17 = arith.constant 6.250000e-02 : f32
      %24 = vector.broadcast %cst_17 : f32 to vector<1x256xf32>
      %25 = arith.mulf %21, %24 : vector<1x256xf32>
      %26 = arith.mulf %23, %23 : vector<1x256xf32>
      %27 = arith.subf %25, %26 : vector<1x256xf32>
      %cst_18 = arith.constant 0.000000e+00 : f32
      %28 = vector.broadcast %cst_18 : f32 to vector<1x256xf32>
      %29 = arith.maximumf %27, %28 : vector<1x256xf32>
      %30 = vector.broadcast %23 : vector<1x256xf32> to vector<16x256xf32>
      %31 = arith.subf %16, %30 : vector<16x256xf32>
      %cst_19 = arith.constant 9.99999974E-6 : f32
      %32 = vector.broadcast %cst_19 : f32 to vector<1x256xf32>
      %33 = arith.addf %29, %32 : vector<1x256xf32>
      %34 = math.rsqrt %33 : vector<1x256xf32>
      %35 = vector.broadcast %34 : vector<1x256xf32> to vector<16x256xf32>
      %36 = arith.mulf %31, %35 : vector<16x256xf32>
      %cst_20 = arith.constant 0.000000e+00 : f32
      %37 = vector.broadcast %cst_20 : f32 to vector<16x256xf32>
      %38 = arith.cmpf oge, %36, %37 : vector<16x256xf32>
      %cst_21 = arith.constant 2.000000e-01 : f32
      %39 = vector.broadcast %cst_21 : f32 to vector<16x256xf32>
      %40 = arith.mulf %39, %36 : vector<16x256xf32>
      %41 = arith.select %38, %36, %40 : vector<16x256xi1>, vector<16x256xf32>
      %42 = arith.truncf %41 : vector<16x256xf32> to vector<16x256xbf16>
      %c0_22 = arith.constant 0 : index
      %c0_23 = arith.constant 0 : index
      %c0_24 = arith.constant 0 : index
      %43 = vector.load %arg6[%c0_22, %c0_23, %c0_24] : memref<1x16x256xbf16, #tpu.memory_space<vmem>>, vector<1x16x256xbf16>
      %44 = vector.shape_cast %43 : vector<1x16x256xbf16> to vector<16x256xbf16>
      %45 = vector.shape_cast %42 : vector<16x256xbf16> to vector<1x16x256xbf16>
      tpu.vector_store %arg6[%c0_22, %c0_23, %c0_24], %45 {strides = array<i32>} : memref<1x16x256xbf16, #tpu.memory_space<vmem>>, vector<1x16x256xbf16>,
    } else {
    }
    return
  }
  func.func @transform_0(%arg0: i32, %arg1: i32, %arg2: i32) -> (i32, i32, i32) {
    %c0_i32 = arith.constant 0 : i32
    return %arg0, %arg1, %arg2 : i32, i32, i32
  }
  func.func @transform_1(%arg0: i32, %arg1: i32, %arg2: i32) -> (i32, i32) {
    %c0_i32 = arith.constant 0 : i32
    %c0_i32_0 = arith.constant 0 : i32
    return %arg2, %c0_i32 : i32, i32
  }
  func.func @transform_2(%arg0: i32, %arg1: i32, %arg2: i32) -> (i32, i32) {
    %c0_i32 = arith.constant 0 : i32
    %c0_i32_0 = arith.constant 0 : i32
    %c0_i32_1 = arith.constant 0 : i32
    return %c0_i32, %c0_i32_0 : i32, i32
  }
  func.func @transform_3(%arg0: i32, %arg1: i32, %arg2: i32) -> (i32, i32, i32) {
    %c0_i32 = arith.constant 0 : i32
    %c0_i32_0 = arith.constant 0 : i32
    return %arg0, %arg1, %c0_i32 : i32, i32, i32
  }
}

module attributes {stable_mosaic.version = 11 : i64} {
  func.func @_conv_block_kernel(%arg0: i32, %arg1: i32, %arg2: i32, %arg3: memref<1x4x512xbf16, #tpu.memory_space<vmem>>, %arg4: memref<512x512xbf16, #tpu.memory_space<vmem>>, %arg5: memref<1x512xf32, #tpu.memory_space<vmem>>, %arg6: memref<1x4x512xbf16, #tpu.memory_space<vmem>>, %arg7: memref<4x512xf32, #tpu.memory_space<vmem>>) attributes {dimension_semantics = [#tpu.dimension_semantics<parallel>, #tpu.dimension_semantics<parallel>, #tpu.dimension_semantics<arbitrary>], iteration_bounds = array<i64: 2, 1, 8>, scalar_prefetch = 0 : i64, scratch_operands = 1 : i64, tpu.core_type = #tpu.core_type<tc>, window_params = [{transform_indices = @transform_0, window_bounds = array<i64: 1, 4, 512>}, {transform_indices = @transform_1, window_bounds = array<i64: 512, 512>}, {pipeline_mode = #tpu.pipeline_mode<synchronous>, transform_indices = @transform_2, window_bounds = array<i64: 1, 512>}, {transform_indices = @transform_3, window_bounds = array<i64: 1, 4, 512>}]} {
    %c0_i32 = arith.constant 0 : i32
    %0 = arith.cmpi eq, %arg2, %c0_i32 : i32
    %1 = arith.extui %0 : i1 to i32
    %c0_i32_0 = arith.constant 0 : i32
    %2 = arith.cmpi ne, %1, %c0_i32_0 : i32
    scf.if %2 {
      %cst_10 = arith.constant 0.000000e+00 : f32
      %13 = vector.broadcast %cst_10 : f32 to vector<4x512xf32>
      %c0_11 = arith.constant 0 : index
      %c0_12 = arith.constant 0 : index
      %14 = vector.load %arg7[%c0_11, %c0_12] : memref<4x512xf32, #tpu.memory_space<vmem>>, vector<4x512xf32>
      tpu.vector_store %arg7[%c0_11, %c0_12], %13 {strides = array<i32>} : memref<4x512xf32, #tpu.memory_space<vmem>>, vector<4x512xf32>,
    } else {
    }
    %c0 = arith.constant 0 : index
    %c0_1 = arith.constant 0 : index
    %3 = vector.load %arg7[%c0, %c0_1] : memref<4x512xf32, #tpu.memory_space<vmem>>, vector<4x512xf32>
    %c0_2 = arith.constant 0 : index
    %c0_3 = arith.constant 0 : index
    %c0_4 = arith.constant 0 : index
    %4 = vector.load %arg3[%c0_2, %c0_3, %c0_4] : memref<1x4x512xbf16, #tpu.memory_space<vmem>>, vector<1x4x512xbf16>
    %5 = vector.shape_cast %4 : vector<1x4x512xbf16> to vector<4x512xbf16>
    %c0_5 = arith.constant 0 : index
    %c0_6 = arith.constant 0 : index
    %6 = vector.load %arg4[%c0_5, %c0_6] : memref<512x512xbf16, #tpu.memory_space<vmem>>, vector<512x512xbf16>
    %cst = arith.constant dense<0.000000e+00> : vector<4x512xf32>
    %7 = tpu.matmul %5, %6, %cst {dimension_numbers = #tpu.dot_dimension_numbers<[1], [0], [0], [1], [0, 0, 1, 1], [], []>} : vector<4x512xbf16>, vector<512x512xbf16>, vector<4x512xf32> -> vector<4x512xf32>
    %8 = arith.addf %3, %7 : vector<4x512xf32>
    %c0_7 = arith.constant 0 : index
    %c0_8 = arith.constant 0 : index
    %9 = vector.load %arg7[%c0_7, %c0_8] : memref<4x512xf32, #tpu.memory_space<vmem>>, vector<4x512xf32>
    tpu.vector_store %arg7[%c0_7, %c0_8], %8 {strides = array<i32>} : memref<4x512xf32, #tpu.memory_space<vmem>>, vector<4x512xf32>,
    %c7_i32 = arith.constant 7 : i32
    %10 = arith.cmpi eq, %arg2, %c7_i32 : i32
    %11 = arith.extui %10 : i1 to i32
    %c0_i32_9 = arith.constant 0 : i32
    %12 = arith.cmpi ne, %11, %c0_i32_9 : i32
    scf.if %12 {
      %c0_10 = arith.constant 0 : index
      %c0_11 = arith.constant 0 : index
      %13 = vector.load %arg7[%c0_10, %c0_11] : memref<4x512xf32, #tpu.memory_space<vmem>>, vector<4x512xf32>
      %c0_12 = arith.constant 0 : index
      %c0_13 = arith.constant 0 : index
      %14 = vector.load %arg5[%c0_12, %c0_13] : memref<1x512xf32, #tpu.memory_space<vmem>>, vector<1x512xf32>
      %15 = vector.broadcast %14 : vector<1x512xf32> to vector<4x512xf32>
      %16 = arith.addf %13, %15 : vector<4x512xf32>
      %cst_14 = arith.constant dense<0.000000e+00> : vector<512xf32>
      %17 = vector.multi_reduction <add>, %16, %cst_14 [0] : vector<4x512xf32> to vector<512xf32>
      %18 = vector.shape_cast %17 : vector<512xf32> to vector<1x512xf32>
      %19 = arith.mulf %16, %16 : vector<4x512xf32>
      %cst_15 = arith.constant dense<0.000000e+00> : vector<512xf32>
      %20 = vector.multi_reduction <add>, %19, %cst_15 [0] : vector<4x512xf32> to vector<512xf32>
      %21 = vector.shape_cast %20 : vector<512xf32> to vector<1x512xf32>
      %cst_16 = arith.constant 2.500000e-01 : f32
      %22 = vector.broadcast %cst_16 : f32 to vector<1x512xf32>
      %23 = arith.mulf %18, %22 : vector<1x512xf32>
      %cst_17 = arith.constant 2.500000e-01 : f32
      %24 = vector.broadcast %cst_17 : f32 to vector<1x512xf32>
      %25 = arith.mulf %21, %24 : vector<1x512xf32>
      %26 = arith.mulf %23, %23 : vector<1x512xf32>
      %27 = arith.subf %25, %26 : vector<1x512xf32>
      %cst_18 = arith.constant 0.000000e+00 : f32
      %28 = vector.broadcast %cst_18 : f32 to vector<1x512xf32>
      %29 = arith.maximumf %27, %28 : vector<1x512xf32>
      %30 = vector.broadcast %23 : vector<1x512xf32> to vector<4x512xf32>
      %31 = arith.subf %16, %30 : vector<4x512xf32>
      %cst_19 = arith.constant 9.99999974E-6 : f32
      %32 = vector.broadcast %cst_19 : f32 to vector<1x512xf32>
      %33 = arith.addf %29, %32 : vector<1x512xf32>
      %34 = math.rsqrt %33 : vector<1x512xf32>
      %35 = vector.broadcast %34 : vector<1x512xf32> to vector<4x512xf32>
      %36 = arith.mulf %31, %35 : vector<4x512xf32>
      %cst_20 = arith.constant 0.000000e+00 : f32
      %37 = vector.broadcast %cst_20 : f32 to vector<4x512xf32>
      %38 = arith.cmpf oge, %36, %37 : vector<4x512xf32>
      %cst_21 = arith.constant 2.000000e-01 : f32
      %39 = vector.broadcast %cst_21 : f32 to vector<4x512xf32>
      %40 = arith.mulf %39, %36 : vector<4x512xf32>
      %41 = arith.select %38, %36, %40 : vector<4x512xi1>, vector<4x512xf32>
      %42 = arith.truncf %41 : vector<4x512xf32> to vector<4x512xbf16>
      %c0_22 = arith.constant 0 : index
      %c0_23 = arith.constant 0 : index
      %c0_24 = arith.constant 0 : index
      %43 = vector.load %arg6[%c0_22, %c0_23, %c0_24] : memref<1x4x512xbf16, #tpu.memory_space<vmem>>, vector<1x4x512xbf16>
      %44 = vector.shape_cast %43 : vector<1x4x512xbf16> to vector<4x512xbf16>
      %45 = vector.shape_cast %42 : vector<4x512xbf16> to vector<1x4x512xbf16>
      tpu.vector_store %arg6[%c0_22, %c0_23, %c0_24], %45 {strides = array<i32>} : memref<1x4x512xbf16, #tpu.memory_space<vmem>>, vector<1x4x512xbf16>,
    } else {
    }
    return
  }
  func.func @transform_0(%arg0: i32, %arg1: i32, %arg2: i32) -> (i32, i32, i32) {
    %c0_i32 = arith.constant 0 : i32
    return %arg0, %arg1, %arg2 : i32, i32, i32
  }
  func.func @transform_1(%arg0: i32, %arg1: i32, %arg2: i32) -> (i32, i32) {
    %c0_i32 = arith.constant 0 : i32
    %c0_i32_0 = arith.constant 0 : i32
    return %arg2, %c0_i32 : i32, i32
  }
  func.func @transform_2(%arg0: i32, %arg1: i32, %arg2: i32) -> (i32, i32) {
    %c0_i32 = arith.constant 0 : i32
    %c0_i32_0 = arith.constant 0 : i32
    %c0_i32_1 = arith.constant 0 : i32
    return %c0_i32, %c0_i32_0 : i32, i32
  }
  func.func @transform_3(%arg0: i32, %arg1: i32, %arg2: i32) -> (i32, i32, i32) {
    %c0_i32 = arith.constant 0 : i32
    %c0_i32_0 = arith.constant 0 : i32
    return %arg0, %arg1, %c0_i32 : i32, i32, i32
  }
}

module attributes {stable_mosaic.version = 11 : i64} {
  func.func @_conv_block_kernel(%arg0: i32, %arg1: i32, %arg2: i32, %arg3: memref<1x4x512xbf16, #tpu.memory_space<vmem>>, %arg4: memref<512x128xbf16, #tpu.memory_space<vmem>>, %arg5: memref<1x128xf32, #tpu.memory_space<vmem>>, %arg6: memref<1x4x128xf32, #tpu.memory_space<vmem>>, %arg7: memref<4x128xf32, #tpu.memory_space<vmem>>) attributes {dimension_semantics = [#tpu.dimension_semantics<parallel>, #tpu.dimension_semantics<parallel>, #tpu.dimension_semantics<arbitrary>], iteration_bounds = array<i64: 2, 1, 16>, scalar_prefetch = 0 : i64, scratch_operands = 1 : i64, tpu.core_type = #tpu.core_type<tc>, window_params = [{transform_indices = @transform_0, window_bounds = array<i64: 1, 4, 512>}, {transform_indices = @transform_1, window_bounds = array<i64: 512, 128>}, {pipeline_mode = #tpu.pipeline_mode<synchronous>, transform_indices = @transform_2, window_bounds = array<i64: 1, 128>}, {transform_indices = @transform_3, window_bounds = array<i64: 1, 4, 128>}]} {
    %c0_i32 = arith.constant 0 : i32
    %0 = arith.cmpi eq, %arg2, %c0_i32 : i32
    %1 = arith.extui %0 : i1 to i32
    %c0_i32_0 = arith.constant 0 : i32
    %2 = arith.cmpi ne, %1, %c0_i32_0 : i32
    scf.if %2 {
      %cst_10 = arith.constant 0.000000e+00 : f32
      %13 = vector.broadcast %cst_10 : f32 to vector<4x128xf32>
      %c0_11 = arith.constant 0 : index
      %c0_12 = arith.constant 0 : index
      %14 = vector.load %arg7[%c0_11, %c0_12] : memref<4x128xf32, #tpu.memory_space<vmem>>, vector<4x128xf32>
      tpu.vector_store %arg7[%c0_11, %c0_12], %13 {strides = array<i32>} : memref<4x128xf32, #tpu.memory_space<vmem>>, vector<4x128xf32>,
    } else {
    }
    %c0 = arith.constant 0 : index
    %c0_1 = arith.constant 0 : index
    %3 = vector.load %arg7[%c0, %c0_1] : memref<4x128xf32, #tpu.memory_space<vmem>>, vector<4x128xf32>
    %c0_2 = arith.constant 0 : index
    %c0_3 = arith.constant 0 : index
    %c0_4 = arith.constant 0 : index
    %4 = vector.load %arg3[%c0_2, %c0_3, %c0_4] : memref<1x4x512xbf16, #tpu.memory_space<vmem>>, vector<1x4x512xbf16>
    %5 = vector.shape_cast %4 : vector<1x4x512xbf16> to vector<4x512xbf16>
    %c0_5 = arith.constant 0 : index
    %c0_6 = arith.constant 0 : index
    %6 = vector.load %arg4[%c0_5, %c0_6] : memref<512x128xbf16, #tpu.memory_space<vmem>>, vector<512x128xbf16>
    %cst = arith.constant dense<0.000000e+00> : vector<4x128xf32>
    %7 = tpu.matmul %5, %6, %cst {dimension_numbers = #tpu.dot_dimension_numbers<[1], [0], [0], [1], [0, 0, 1, 1], [], []>} : vector<4x512xbf16>, vector<512x128xbf16>, vector<4x128xf32> -> vector<4x128xf32>
    %8 = arith.addf %3, %7 : vector<4x128xf32>
    %c0_7 = arith.constant 0 : index
    %c0_8 = arith.constant 0 : index
    %9 = vector.load %arg7[%c0_7, %c0_8] : memref<4x128xf32, #tpu.memory_space<vmem>>, vector<4x128xf32>
    tpu.vector_store %arg7[%c0_7, %c0_8], %8 {strides = array<i32>} : memref<4x128xf32, #tpu.memory_space<vmem>>, vector<4x128xf32>,
    %c15_i32 = arith.constant 15 : i32
    %10 = arith.cmpi eq, %arg2, %c15_i32 : i32
    %11 = arith.extui %10 : i1 to i32
    %c0_i32_9 = arith.constant 0 : i32
    %12 = arith.cmpi ne, %11, %c0_i32_9 : i32
    scf.if %12 {
      %c0_10 = arith.constant 0 : index
      %c0_11 = arith.constant 0 : index
      %13 = vector.load %arg7[%c0_10, %c0_11] : memref<4x128xf32, #tpu.memory_space<vmem>>, vector<4x128xf32>
      %c0_12 = arith.constant 0 : index
      %c0_13 = arith.constant 0 : index
      %14 = vector.load %arg5[%c0_12, %c0_13] : memref<1x128xf32, #tpu.memory_space<vmem>>, vector<1x128xf32>
      %15 = vector.broadcast %14 : vector<1x128xf32> to vector<4x128xf32>
      %16 = arith.addf %13, %15 : vector<4x128xf32>
      %c0_14 = arith.constant 0 : index
      %c0_15 = arith.constant 0 : index
      %c0_16 = arith.constant 0 : index
      %17 = vector.load %arg6[%c0_14, %c0_15, %c0_16] : memref<1x4x128xf32, #tpu.memory_space<vmem>>, vector<1x4x128xf32>
      %18 = vector.shape_cast %17 : vector<1x4x128xf32> to vector<4x128xf32>
      %19 = vector.shape_cast %16 : vector<4x128xf32> to vector<1x4x128xf32>
      tpu.vector_store %arg6[%c0_14, %c0_15, %c0_16], %19 {strides = array<i32>} : memref<1x4x128xf32, #tpu.memory_space<vmem>>, vector<1x4x128xf32>,
    } else {
    }
    return
  }
  func.func @transform_0(%arg0: i32, %arg1: i32, %arg2: i32) -> (i32, i32, i32) {
    %c0_i32 = arith.constant 0 : i32
    return %arg0, %arg1, %arg2 : i32, i32, i32
  }
  func.func @transform_1(%arg0: i32, %arg1: i32, %arg2: i32) -> (i32, i32) {
    %c0_i32 = arith.constant 0 : i32
    %c0_i32_0 = arith.constant 0 : i32
    return %arg2, %c0_i32 : i32, i32
  }
  func.func @transform_2(%arg0: i32, %arg1: i32, %arg2: i32) -> (i32, i32) {
    %c0_i32 = arith.constant 0 : i32
    %c0_i32_0 = arith.constant 0 : i32
    %c0_i32_1 = arith.constant 0 : i32
    return %c0_i32, %c0_i32_0 : i32, i32
  }
  func.func @transform_3(%arg0: i32, %arg1: i32, %arg2: i32) -> (i32, i32, i32) {
    %c0_i32 = arith.constant 0 : i32
    %c0_i32_0 = arith.constant 0 : i32
    return %arg0, %arg1, %c0_i32 : i32, i32, i32
  }
}

</mosaic_0001>

<llo_original>
// kernel: custom-call.3
$region0: #{custom-call.3}
  %s0 = inlined_call_operand.hbm [shape: f32[48], index: 0, kind: output, shape index: {}]

// kernel: discriminator2_forward.5
$region0: #{discriminator2_forward.5}
  #allocation0 [shape = 'u32[]', space=smem, size = 0x4, offset = 0x4, fixed_abs, tag = 'smem constant byte address 0x4 - core index']
  #allocation1 [shape = 'u32[144,128]{1,0:T(1,128)}', space=vmem, size = 0x12000, scoped, tag = 'internal scratch']
  #allocation2 [shape = 'f32[256,64]{1,0:T(8,128)}', space=vmem, size = 0x20000, scoped, tag = 'scratch operand']
  %s0 = inlined_call_operand.vmem [shape: bf16[2,256,48], index: 0, kind: input, shape index: {}]
  %s1 = inlined_call_operand.vmem [shape: bf16[48,64], index: 1, kind: input, shape index: {}]
  %s2 = inlined_call_operand.vmem [shape: f32[1,64], index: 2, kind: input, shape index: {}]
  %s3 = inlined_call_operand.vmem [shape: bf16[2,256,64], index: 3, kind: output, shape index: {}]
  %s4 = sld [smem:[#allocation0]]
  $region53: #{discriminator2_forward.5} parent=0
    _
  %s6 = ssub.s32 1, %s4
  %s7 = scalar_select 0, %s6, %s4
  loop: start=0, step=1, limit=4
  $region2: #{discriminator2_forward.5} parent=0 // loop_pre_header
    _
  $region3: #{discriminator2_forward.5} parent=0 // loop_header
    %s9 = sphi 0, %s13
    %p10 = scmp.ge.s32.totalorder %s9, 4
    %s16 = sphi 0, %s35
    %s17 = sphi 0, %s31
    %s18 = sphi 0, %s27
    %s19 = sphi 0, %s16
    %s20 = sphi 0, %s17
    %s21 = sphi 0, %s18
    %s22 = sphi 0, %s19
    %s23 = sphi 0, %s20
    %s24 = sphi 0, %s21
    %s42 = sphi 0, %s44
    %s45 = sphi 0, %s42
    %s46 = sphi 0, %s45
    %s62 = sphi 0, %s46
    %s68 = sphi 0, %s70
    %s71 = sphi 0, %s68
    %s72 = sphi 0, %s71
    %s88 = sphi 0, %s72
    %s92 = sphi 0, %s92
    %s94 = sphi 0, %s92
    %s95 = sphi 0, %s94
    %s109 = sphi 0, %s95
    %s117 = sphi 0, %s119
    %s120 = sphi 0, %s117
    %s121 = sphi 0, %s120
    %s137 = sphi 0, %s121
  $region4: #{discriminator2_forward.5} parent=0 // loop_header_branch
    %12 = sbr.rel (%p10) target = $region8
  $region5: #{discriminator2_forward.5} parent=0 // loop_body
    %s14 = ssub.s32 %s9, 1
    %s15 = ssub.s32 %s9, 2
    %s25 = sadd.s32 1, %s18
    %p26 = scmp.ge.s32.totalorder %s25, 1
    %s27 = scalar_select %p26, 0, %s25
    %s28 = sadd.s32 1, %s17
    %s29 = scalar_select %p26, %s28, %s17
    %p30 = scmp.ge.s32.totalorder %s29, 1
    %s31 = scalar_select %p30, 0, %s29
    %s32 = sadd.s32 1, %s16
    %s33 = scalar_select %p30, %s32, %s16
    %p34 = scmp.ge.s32.totalorder %s33, 2
    %s35 = scalar_select %p34, 0, %s33
    %s36 = ssub.s32 %s16, %s35
    %s37 = ssub.s32 %s17, %s31
    %s38 = sor.u32 %s36, %s37
    %s39 = ssub.s32 %s18, %s27
    %s40 = sor.u32 %s38, %s39
    %p41 = scmp.eq.s32.totalorder %s40, 0
    %s43 = sadd.s32 %s42, 1
    %s44 = scalar_select %p41, %s42, %s43
    %p47 = pneg %p41
    %p48 = scmp.eq.s32.totalorder %s9, 1
    %p49 = por %p47, %p48
    %p50 = scmp.ne.s32.totalorder %s42, %s45
    %p51 = scmp.eq.s32.totalorder %s9, 0
    %p52 = por %p50, %p51
    %p53 = scmp.ne.s32.totalorder %s42, %s45
    %p54 = scmp.eq.s32.totalorder %s14, 1
    %p55 = por %p53, %p54
    %p56 = scmp.ne.s32.totalorder %s45, %s46
    %p57 = scmp.eq.s32.totalorder %s14, 0
    %p58 = por %p56, %p57
    %p59 = scmp.ne.s32.totalorder %s45, %s46
    %p60 = scmp.eq.s32.totalorder %s15, 1
    %p61 = por %p59, %p60
    %p63 = scmp.ne.s32.totalorder %s46, %s62
    %p64 = scmp.eq.s32.totalorder %s15, 0
    %p65 = por %p63, %p64
    %s66 = ssub.s32 %s18, %s27
    %p67 = scmp.eq.s32.totalorder %s66, 0
    %s69 = sadd.s32 %s68, 1
    %s70 = scalar_select %p67, %s68, %s69
    %p73 = pneg %p67
    %p74 = scmp.eq.s32.totalorder %s9, 1
    %p75 = por %p73, %p74
    %p76 = scmp.ne.s32.totalorder %s68, %s71
    %p77 = scmp.eq.s32.totalorder %s9, 0
    %p78 = por %p76, %p77
    %p79 = scmp.ne.s32.totalorder %s68, %s71
    %p80 = scmp.eq.s32.totalorder %s14, 1
    %p81 = por %p79, %p80
    %p82 = scmp.ne.s32.totalorder %s71, %s72
    %p83 = scmp.eq.s32.totalorder %s14, 0
    %p84 = por %p82, %p83
    %p85 = scmp.ne.s32.totalorder %s71, %s72
    %p86 = scmp.eq.s32.totalorder %s15, 1
    %p87 = por %p85, %p86
    %p89 = scmp.ne.s32.totalorder %s72, %s88
    %p90 = scmp.eq.s32.totalorder %s15, 0
    %p91 = por %p89, %p90
    %s93 = sadd.s32 %s92, 1
    %p96 = scmp.eq.s32.totalorder %s9, 1
    %p97 = scmp.ne.s32.totalorder %s92, %s94
    %p98 = scmp.eq.s32.totalorder %s9, 0
    %p99 = por %p97, %p98
    %p100 = scmp.ne.s32.totalorder %s92, %s94
    %p101 = scmp.eq.s32.totalorder %s14, 1
    %p102 = por %p100, %p101
    %p103 = scmp.ne.s32.totalorder %s94, %s95
    %p104 = scmp.eq.s32.totalorder %s14, 0
    %p105 = por %p103, %p104
    %p106 = scmp.ne.s32.totalorder %s94, %s95
    %p107 = scmp.eq.s32.totalorder %s15, 1
    %p108 = por %p106, %p107
    %p110 = scmp.ne.s32.totalorder %s95, %s109
    %p111 = scmp.eq.s32.totalorder %s15, 0
    %p112 = por %p110, %p111
    %s113 = ssub.s32 %s16, %s35
    %s114 = ssub.s32 %s17, %s31
    %s115 = sor.u32 %s113, %s114
    %p116 = scmp.eq.s32.totalorder %s115, 0
    %s118 = sadd.s32 %s117, 1
    %s119 = scalar_select %p116, %s117, %s118
    %p122 = pneg %p116
    %p123 = scmp.eq.s32.totalorder %s9, 1
    %p124 = por %p122, %p123
    %p125 = scmp.ne.s32.totalorder %s117, %s120
    %p126 = scmp.eq.s32.totalorder %s9, 0
    %p127 = por %p125, %p126
    %p128 = scmp.ne.s32.totalorder %s117, %s120
    %p129 = scmp.eq.s32.totalorder %s14, 1
    %p130 = por %p128, %p129
    %p131 = scmp.ne.s32.totalorder %s120, %s121
    %p132 = scmp.eq.s32.totalorder %s14, 0
    %p133 = por %p131, %p132
    %p134 = scmp.ne.s32.totalorder %s120, %s121
    %p135 = scmp.eq.s32.totalorder %s15, 1
    %p136 = por %p134, %p135
    %p138 = scmp.ne.s32.totalorder %s121, %s137
    %p139 = scmp.eq.s32.totalorder %s15, 0
    %p140 = por %p138, %p139
    %p141 = scmp.le.s32.totalorder 1, %s9
    %p142 = scmp.lt.s32.totalorder %s9, 3
    %p143 = pnand %p141, %p142
    %p144 = pneg %p143
    // Predicated region
    $region9: #{discriminator2_forward.5} parent=5 // pred_check
      _
    $region10: #{discriminator2_forward.5} parent=5 // pred_check_branch
      %146 = sbr.rel (%p143) target = $region12
    $region11: #{discriminator2_forward.5} parent=5 // pred_region
      %s147 = ssub.s32 %s9, 1
      // Predicated region
      $region13: #{discriminator2_forward.5} parent=11 // pred_check
        %p148 = pneg %p84
      $region14: #{discriminator2_forward.5} parent=11 // pred_check_branch
        %150 = sbr.rel (%p148) target = $region16
      $region15: #{discriminator2_forward.5} parent=11 // pred_region
        %s151 = smul.u32 6, %s21
        %p152 = scmp.lt.s32.totalorder %s151, 5
        %s153 = scalar_select %p152, %s151, 5
        %s154 = smul.addr %s153, 4
        %s155 = scalar_lea.vmem %s1, %s154
        %s156 = smul.u32 6, %s21
      $region16: #{discriminator2_forward.5} parent=11 // pred_fallthru
        _
      // Predicated region
      $region17: #{discriminator2_forward.5} parent=11 // pred_check
        %p157 = pneg %p105
      $region18: #{discriminator2_forward.5} parent=11 // pred_check_branch
        %159 = sbr.rel (%p157) target = $region20
      $region19: #{discriminator2_forward.5} parent=11 // pred_region
        _
      $region20: #{discriminator2_forward.5} parent=11 // pred_fallthru
        _
    $region12: #{discriminator2_forward.5} parent=5 // pred_fallthru
      _
    %p160 = scmp.lt.s32.totalorder %s9, 2
    // Predicated region
    $region21: #{discriminator2_forward.5} parent=5 // pred_check
      %p161 = pneg %p160
    $region22: #{discriminator2_forward.5} parent=5 // pred_check_branch
      %163 = sbr.rel (%p161) target = $region24
    $region23: #{discriminator2_forward.5} parent=5 // pred_region
      // Predicated region
      $region25: #{discriminator2_forward.5} parent=23 // pred_check
        %p164 = pneg %p52
      $region26: #{discriminator2_forward.5} parent=23 // pred_check_branch
        %166 = sbr.rel (%p164) target = $region28
      $region27: #{discriminator2_forward.5} parent=23 // pred_region
        %s167 = smul.u32 32, %s17
        %p168 = scmp.lt.s32.totalorder %s16, 1
        %s169 = scalar_select %p168, %s16, 1
        %p170 = scmp.lt.s32.totalorder %s167, 31
        %s171 = scalar_select %p170, %s167, 31
        %p172 = scmp.lt.s32.totalorder %s18, 0
        %s173 = scalar_select %p172, %s18, 0
        %s174 = sadd.s32 %s173, %s171
        %s175 = smul.addr %s169, 32
        %s176 = sadd.s32 %s174, %s175
        %s177 = smul.addr %s176, 4
        %s178 = scalar_lea.vmem %s0, %s177
        %s179 = smul.u32 32, %s17
      $region28: #{discriminator2_forward.5} parent=23 // pred_fallthru
        _
    $region24: #{discriminator2_forward.5} parent=5 // pred_fallthru
      _
    %p180 = scmp.le.s32.totalorder 1, %s9
    %p181 = scmp.lt.s32.totalorder %s9, 3
    %p182 = pnand %p180, %p181
    %p183 = pneg %p182
    // Predicated region
    $region29: #{discriminator2_forward.5} parent=5 // pred_check
      _
    $region30: #{discriminator2_forward.5} parent=5 // pred_check_branch
      %185 = sbr.rel (%p182) target = $region32
    $region31: #{discriminator2_forward.5} parent=5 // pred_region
      %s186 = ssub.s32 %s9, 1
      %s187 = smul.u32 32, %s20
      %p188 = scmp.lt.s32.totalorder %s19, 1
      %s189 = scalar_select %p188, %s19, 1
      %p190 = scmp.lt.s32.totalorder %s187, 31
      %s191 = scalar_select %p190, %s187, 31
      %p192 = scmp.lt.s32.totalorder %s21, 0
      %s193 = scalar_select %p192, %s21, 0
      %s194 = sadd.s32 %s193, %s191
      %s195 = smul.addr %s189, 32
      %s196 = sadd.s32 %s194, %s195
      %s197 = smul.addr %s196, 4
      %s198 = scalar_lea.vmem %s0, %s197
      %p199 = pneg %p58
      %p200 = pneg %p55
      %s201 = smul.u32 6, %s21
      %p202 = scmp.lt.s32.totalorder %s201, 5
      %s203 = scalar_select %p202, %s201, 5
      %s204 = smul.addr %s203, 4
      %s205 = scalar_lea.vmem %s1, %s204
      %p206 = pneg %p84
      %p207 = pneg %p81
      %p208 = pneg %p105
      %p209 = pneg %p102
      %p210 = pneg %p133
      %p211 = pneg %p130
      %s212 = smul.u32 32, %s20
      %p213 = scmp.lt.s32.totalorder %s19, 1
      %s214 = scalar_select %p213, %s19, 1
      %p215 = scmp.lt.s32.totalorder %s212, 31
      %s216 = scalar_select %p215, %s212, 31
      %s217 = smul.addr %s214, 32
      %s218 = sadd.s32 %s216, %s217
      %s219 = smul.addr %s218, 4
      %s220 = scalar_lea.vmem %s3, %s219
      %s221 = smul.u32 32, %s20
      %p222 = scmp.lt.s32.totalorder %s19, 1
      %s223 = scalar_select %p222, %s19, 1
      %p224 = scmp.lt.s32.totalorder %s221, 31
      %s225 = scalar_select %p224, %s221, 31
      %p226 = scmp.lt.s32.totalorder %s21, 0
      %s227 = scalar_select %p226, %s21, 0
      %s228 = sadd.s32 %s227, %s225
      %s229 = smul.addr %s223, 32
      %s230 = sadd.s32 %s228, %s229
      %s231 = smul.addr %s230, 4
      %s232 = scalar_lea.vmem %s0, %s231
      %s233 = smul.u32 32, %s20
      %s234 = smul.u32 6, %s21
      %p235 = scmp.lt.s32.totalorder %s234, 5
      %s236 = scalar_select %p235, %s234, 5
      %s237 = smul.addr %s236, 4
      %s238 = scalar_lea.vmem %s1, %s237
      %s239 = smul.u32 6, %s21
      %s240 = smul.u32 32, %s20
      %p241 = scmp.lt.s32.totalorder %s19, 1
      %s242 = scalar_select %p241, %s19, 1
      %p243 = scmp.lt.s32.totalorder %s240, 31
      %s244 = scalar_select %p243, %s240, 31
      %s245 = smul.addr %s242, 32
      %s246 = sadd.s32 %s244, %s245
      %s247 = smul.addr %s246, 4
      %s248 = scalar_lea.vmem %s3, %s247
      %s249 = smul.u32 32, %s20
      %p251 = scmp.eq.s32.totalorder %s21, 0
      // Predicated region
      $region33: #{discriminator2_forward.5} parent=31 // pred_check
        %p252 = pneg %p251
      $region34: #{discriminator2_forward.5} parent=31 // pred_check_branch
        %254 = sbr.rel (%p252) target = $region36
      $region35: #{discriminator2_forward.5} parent=31 // pred_region
        %vm255 = vcmask 523264
        %256 = vst.msk [vmem:[#allocation2] sm:$0xff] %vm255, 0.0
        %257 = vst.msk [vmem:[#allocation2 + $0x8] sm:$0xff] %vm255, 0.0
        %258 = vst.msk [vmem:[#allocation2 + $0x10] sm:$0xff] %vm255, 0.0
        %259 = vst.msk [vmem:[#allocation2 + $0x18] sm:$0xff] %vm255, 0.0
        %260 = vst.msk [vmem:[#allocation2 + $0x20] sm:$0xff] %vm255, 0.0
        %261 = vst.msk [vmem:[#allocation2 + $0x28] sm:$0xff] %vm255, 0.0
        %262 = vst.msk [vmem:[#allocation2 + $0x30] sm:$0xff] %vm255, 0.0
        %263 = vst.msk [vmem:[#allocation2 + $0x38] sm:$0xff] %vm255, 0.0
        %264 = vst.msk [vmem:[#allocation2 + $0x40] sm:$0xff] %vm255, 0.0
        %265 = vst.msk [vmem:[#allocation2 + $0x48] sm:$0xff] %vm255, 0.0
        %266 = vst.msk [vmem:[#allocation2 + $0x50] sm:$0xff] %vm255, 0.0
        %267 = vst.msk [vmem:[#allocation2 + $0x58] sm:$0xff] %vm255, 0.0
        %268 = vst.msk [vmem:[#allocation2 + $0x60] sm:$0xff] %vm255, 0.0
        %269 = vst.msk [vmem:[#allocation2 + $0x68] sm:$0xff] %vm255, 0.0
        %270 = vst.msk [vmem:[#allocation2 + $0x70] sm:$0xff] %vm255, 0.0
        %271 = vst.msk [vmem:[#allocation2 + $0x78] sm:$0xff] %vm255, 0.0
        %272 = vst.msk [vmem:[#allocation2 + $0x80] sm:$0xff] %vm255, 0.0
        %273 = vst.msk [vmem:[#allocation2 + $0x88] sm:$0xff] %vm255, 0.0
        %274 = vst.msk [vmem:[#allocation2 + $0x90] sm:$0xff] %vm255, 0.0
        %275 = vst.msk [vmem:[#allocation2 + $0x98] sm:$0xff] %vm255, 0.0
        %276 = vst.msk [vmem:[#allocation2 + $0xa0] sm:$0xff] %vm255, 0.0
        %277 = vst.msk [vmem:[#allocation2 + $0xa8] sm:$0xff] %vm255, 0.0
        %278 = vst.msk [vmem:[#allocation2 + $0xb0] sm:$0xff] %vm255, 0.0
        %279 = vst.msk [vmem:[#allocation2 + $0xb8] sm:$0xff] %vm255, 0.0
        %280 = vst.msk [vmem:[#allocation2 + $0xc0] sm:$0xff] %vm255, 0.0
        %281 = vst.msk [vmem:[#allocation2 + $0xc8] sm:$0xff] %vm255, 0.0
        %282 = vst.msk [vmem:[#allocation2 + $0xd0] sm:$0xff] %vm255, 0.0
        %283 = vst.msk [vmem:[#allocation2 + $0xd8] sm:$0xff] %vm255, 0.0
        %284 = vst.msk [vmem:[#allocation2 + $0xe0] sm:$0xff] %vm255, 0.0
        %285 = vst.msk [vmem:[#allocation2 + $0xe8] sm:$0xff] %vm255, 0.0
        %286 = vst.msk [vmem:[#allocation2 + $0xf0] sm:$0xff] %vm255, 0.0
        %287 = vst.msk [vmem:[#allocation2 + $0xf8] sm:$0xff] %vm255, 0.0
      $region36: #{discriminator2_forward.5} parent=31 // pred_fallthru
        _
      %v288 = vld [vmem:[#allocation2] sm:$0xff]
      %v289 = vld [vmem:[#allocation2 + $0x8] sm:$0xff]
      %v290 = vld [vmem:[#allocation2 + $0x10] sm:$0xff]
      %v291 = vld [vmem:[#allocation2 + $0x18] sm:$0xff]
      %v292 = vld [vmem:[#allocation2 + $0x20] sm:$0xff]
      %v293 = vld [vmem:[#allocation2 + $0x28] sm:$0xff]
      %v294 = vld [vmem:[#allocation2 + $0x30] sm:$0xff]
      %v295 = vld [vmem:[#allocation2 + $0x38] sm:$0xff]
      %v296 = vld [vmem:[#allocation2 + $0x40] sm:$0xff]
      %v297 = vld [vmem:[#allocation2 + $0x48] sm:$0xff]
      %v298 = vld [vmem:[#allocation2 + $0x50] sm:$0xff]
      %v299 = vld [vmem:[#allocation2 + $0x58] sm:$0xff]
      %v300 = vld [vmem:[#allocation2 + $0x60] sm:$0xff]
      %v301 = vld [vmem:[#allocation2 + $0x68] sm:$0xff]
      %v302 = vld [vmem:[#allocation2 + $0x70] sm:$0xff]
      %v303 = vld [vmem:[#allocation2 + $0x78] sm:$0xff]
      %v304 = vld [vmem:[#allocation2 + $0x80] sm:$0xff]
      %v305 = vld [vmem:[#allocation2 + $0x88] sm:$0xff]
      %v306 = vld [vmem:[#allocation2 + $0x90] sm:$0xff]
      %v307 = vld [vmem:[#allocation2 + $0x98] sm:$0xff]
      %v308 = vld [vmem:[#allocation2 + $0xa0] sm:$0xff]
      %v309 = vld [vmem:[#allocation2 + $0xa8] sm:$0xff]
      %v310 = vld [vmem:[#allocation2 + $0xb0] sm:$0xff]
      %v311 = vld [vmem:[#allocation2 + $0xb8] sm:$0xff]
      %v312 = vld [vmem:[#allocation2 + $0xc0] sm:$0xff]
      %v313 = vld [vmem:[#allocation2 + $0xc8] sm:$0xff]
      %v314 = vld [vmem:[#allocation2 + $0xd0] sm:$0xff]
      %v315 = vld [vmem:[#allocation2 + $0xd8] sm:$0xff]
      %v316 = vld [vmem:[#allocation2 + $0xe0] sm:$0xff]
      %v317 = vld [vmem:[#allocation2 + $0xe8] sm:$0xff]
      %v318 = vld [vmem:[#allocation2 + $0xf0] sm:$0xff]
      %v319 = vld [vmem:[#allocation2 + $0xf8] sm:$0xff]
      %v320 = vld [vmem:[%s232] sm:$0xf]
      %v321 = vld [vmem:[%s232 + $0x4] sm:$0xf]
      %v322 = vld [vmem:[%s232 + $0x8] sm:$0xf]
      %v323 = vld [vmem:[%s232 + $0xc] sm:$0xf]
      %v324 = vld [vmem:[%s232 + $0x10] sm:$0xf]
      %v325 = vld [vmem:[%s232 + $0x14] sm:$0xf]
      %v326 = vld [vmem:[%s232 + $0x18] sm:$0xf]
      %v327 = vld [vmem:[%s232 + $0x1c] sm:$0xf]
      %v328 = vld [vmem:[%s232 + $0x20] sm:$0xf]
      %v329 = vld [vmem:[%s232 + $0x24] sm:$0xf]
      %v330 = vld [vmem:[%s232 + $0x28] sm:$0xf]
      %v331 = vld [vmem:[%s232 + $0x2c] sm:$0xf]
      %v332 = vld [vmem:[%s232 + $0x30] sm:$0xf]
      %v333 = vld [vmem:[%s232 + $0x34] sm:$0xf]
      %v334 = vld [vmem:[%s232 + $0x38] sm:$0xf]
      %v335 = vld [vmem:[%s232 + $0x3c] sm:$0xf]
      %v336 = vld [vmem:[%s232 + $0x40] sm:$0xf]
      %v337 = vld [vmem:[%s232 + $0x44] sm:$0xf]
      %v338 = vld [vmem:[%s232 + $0x48] sm:$0xf]
      %v339 = vld [vmem:[%s232 + $0x4c] sm:$0xf]
      %v340 = vld [vmem:[%s232 + $0x50] sm:$0xf]
      %v341 = vld [vmem:[%s232 + $0x54] sm:$0xf]
      %v342 = vld [vmem:[%s232 + $0x58] sm:$0xf]
      %v343 = vld [vmem:[%s232 + $0x5c] sm:$0xf]
      %v344 = vld [vmem:[%s232 + $0x60] sm:$0xf]
      %v345 = vld [vmem:[%s232 + $0x64] sm:$0xf]
      %v346 = vld [vmem:[%s232 + $0x68] sm:$0xf]
      %v347 = vld [vmem:[%s232 + $0x6c] sm:$0xf]
      %v348 = vld [vmem:[%s232 + $0x70] sm:$0xf]
      %v349 = vld [vmem:[%s232 + $0x74] sm:$0xf]
      %v350 = vld [vmem:[%s232 + $0x78] sm:$0xf]
      %v351 = vld [vmem:[%s232 + $0x7c] sm:$0xf]
      %v352 = vld [vmem:[%s238] sm:$0xf]
      %v353 = vld [vmem:[%s238 + $0x4] sm:$0xf]
      %v354 = vld [vmem:[%s238 + $0x8] sm:$0xf]
      %v355 = vld [vmem:[%s238 + $0xc] sm:$0xf]
      %v356 = vld [vmem:[%s238 + $0x10] sm:$0xf]
      %v357 = vld [vmem:[%s238 + $0x14] sm:$0xf]
      %v390 = vunpack.c.l.b16 %v320
      %v391 = vunpack.c.l.b16 %v321
      %v392 = vunpack.c.l.b16 %v322
      %v393 = vunpack.c.l.b16 %v323
      %v394 = vunpack.c.l.b16 %v324
      %v395 = vunpack.c.l.b16 %v325
      %v396 = vunpack.c.l.b16 %v326
      %v397 = vunpack.c.l.b16 %v327
      %v398 = vunpack.c.l.b16 %v328
      %v399 = vunpack.c.l.b16 %v329
      %v400 = vunpack.c.l.b16 %v330
      %v401 = vunpack.c.l.b16 %v331
      %v402 = vunpack.c.l.b16 %v332
      %v403 = vunpack.c.l.b16 %v333
      %v404 = vunpack.c.l.b16 %v334
      %v405 = vunpack.c.l.b16 %v335
      %v406 = vunpack.c.l.b16 %v336
      %v407 = vunpack.c.l.b16 %v337
      %v408 = vunpack.c.l.b16 %v338
      %v409 = vunpack.c.l.b16 %v339
      %v410 = vunpack.c.l.b16 %v340
      %v411 = vunpack.c.l.b16 %v341
      %v412 = vunpack.c.l.b16 %v342
      %v413 = vunpack.c.l.b16 %v343
      %v414 = vunpack.c.l.b16 %v344
      %v415 = vunpack.c.l.b16 %v345
      %v416 = vunpack.c.l.b16 %v346
      %v417 = vunpack.c.l.b16 %v347
      %v418 = vunpack.c.l.b16 %v348
      %v419 = vunpack.c.l.b16 %v349
      %v420 = vunpack.c.l.b16 %v350
      %v421 = vunpack.c.l.b16 %v351
      %v422 = vpack.c.b16 %v391, %v390
      %v423 = vpack.c.b16 %v393, %v392
      %v424 = vpack.c.b16 %v395, %v394
      %v425 = vpack.c.b16 %v397, %v396
      %v426 = vpack.c.b16 %v399, %v398
      %v427 = vpack.c.b16 %v401, %v400
      %v428 = vpack.c.b16 %v403, %v402
      %v429 = vpack.c.b16 %v405, %v404
      %v430 = vpack.c.b16 %v407, %v406
      %v431 = vpack.c.b16 %v409, %v408
      %v432 = vpack.c.b16 %v411, %v410
      %v433 = vpack.c.b16 %v413, %v412
      %v434 = vpack.c.b16 %v415, %v414
      %v435 = vpack.c.b16 %v417, %v416
      %v436 = vpack.c.b16 %v419, %v418
      %v437 = vpack.c.b16 %v421, %v420
      %v444 = vunpack.c.l.b16 %v352
      %v445 = vunpack.c.l.b16 %v353
      %v446 = vunpack.c.l.b16 %v354
      %v447 = vunpack.c.l.b16 %v355
      %v448 = vunpack.c.l.b16 %v356
      %v449 = vunpack.c.l.b16 %v357
      %v450 = vpack.c.b16 %v445, %v444
      %v451 = vpack.c.b16 %v447, %v446
      %v452 = vpack.c.b16 %v449, %v448
      %vm456 = vcmask 392192
      %v458 = vsel %vm456, %v422, 0
      %v461 = vsel %vm456, %v423, 0
      %v464 = vsel %vm456, %v424, 0
      %v467 = vsel %vm456, %v425, 0
      %v470 = vsel %vm456, %v426, 0
      %v473 = vsel %vm456, %v427, 0
      %v476 = vsel %vm456, %v428, 0
      %v479 = vsel %vm456, %v429, 0
      %v482 = vsel %vm456, %v430, 0
      %v485 = vsel %vm456, %v431, 0
      %v488 = vsel %vm456, %v432, 0
      %v491 = vsel %vm456, %v433, 0
      %v494 = vsel %vm456, %v434, 0
      %v497 = vsel %vm456, %v435, 0
      %v500 = vsel %vm456, %v436, 0
      %v503 = vsel %vm456, %v437, 0
      %505 = vmatprep.subr.bf16.mxu0 0
      %506 = vmatpush1.bf16.msra.mxu0 %v450
      %507 = vmatprep.subr.bf16.mxu0 0
      %508 = vmatpush1.bf16.msra.mxu0 %v451
      %509 = vmatprep.subr.bf16.mxu0 0
      %510 = vmatpush1.bf16.msra.mxu0 %v452
      %511 = vmatprep.subr.bf16.mxu0 0
      %512 = vmatpush1.bf16.msra.mxu0 0
      %513 = vmatprep.subr.bf16.mxu0 0
      %514 = vmatpush1.bf16.msra.mxu0 0
      %515 = vmatprep.subr.bf16.mxu0 0
      %516 = vmatpush1.bf16.msra.mxu0 0
      %517 = vmatprep.subr.bf16.mxu0 0
      %518 = vmatpush1.bf16.msra.mxu0 0
      %519 = vmatprep.subr.bf16.mxu0 0
      %520 = vmatpush1.bf16.msra.mxu0 0
      %521 = vmatprep.subr.bf16.mxu0 0
      %522 = vmatpush1.bf16.msra.mxu0 0
      %523 = vmatprep.subr.bf16.mxu0 0
      %524 = vmatpush1.bf16.msra.mxu0 0
      %525 = vmatprep.subr.bf16.mxu0 0
      %526 = vmatpush1.bf16.msra.mxu0 0
      %527 = vmatprep.subr.bf16.mxu0 0
      %528 = vmatpush1.bf16.msra.mxu0 0
      %529 = vmatprep.subr.bf16.mxu0 0
      %530 = vmatpush1.bf16.msra.mxu0 0
      %531 = vmatprep.subr.bf16.mxu0 0
      %532 = vmatpush1.bf16.msra.mxu0 0
      %533 = vmatprep.subr.bf16.mxu0 0
      %534 = vmatpush1.bf16.msra.mxu0 0
      %535 = vmatprep.subr.bf16.mxu0 0
      %536 = vmatpush1.bf16.msra.mxu0 0
      %537 = vmatprep.mubr.bf16.mxu0 0
      %538 = vmatmul.mubr.bf16.gmra.mrb[0].mxu0 %v458
      %v539 = vpop.f32.mrb[0].mxu0
      %v540 = vadd.f32 0.0, %v539
      %v541 = vpop.f32.mrb[0].mxu0
      %v542 = vpop.f32.mrb[0].mxu0
      %v543 = vadd.f32 0.0, %v542
      %v544 = vpop.f32.mrb[0].mxu0
      %545 = vmatprep.mubr.bf16.mxu0 0
      %546 = vmatmul.mubr.bf16.gmra.mrb[0].mxu0 %v461
      %v547 = vpop.f32.mrb[0].mxu0
      %v548 = vadd.f32 0.0, %v547
      %v549 = vpop.f32.mrb[0].mxu0
      %v550 = vpop.f32.mrb[0].mxu0
      %v551 = vadd.f32 0.0, %v550
      %v552 = vpop.f32.mrb[0].mxu0
      %553 = vmatprep.mubr.bf16.mxu0 0
      %554 = vmatmul.mubr.bf16.gmra.mrb[0].mxu0 %v464
      %v555 = vpop.f32.mrb[0].mxu0
      %v556 = vadd.f32 0.0, %v555
      %v557 = vpop.f32.mrb[0].mxu0
      %v558 = vpop.f32.mrb[0].mxu0
      %v559 = vadd.f32 0.0, %v558
      %v560 = vpop.f32.mrb[0].mxu0
      %561 = vmatprep.mubr.bf16.mxu0 0
      %562 = vmatmul.mubr.bf16.gmra.mrb[0].mxu0 %v467
      %v563 = vpop.f32.mrb[0].mxu0
      %v564 = vadd.f32 0.0, %v563
      %v565 = vpop.f32.mrb[0].mxu0
      %v566 = vpop.f32.mrb[0].mxu0
      %v567 = vadd.f32 0.0, %v566
      %v568 = vpop.f32.mrb[0].mxu0
      %569 = vmatprep.mubr.bf16.mxu0 0
      %570 = vmatmul.mubr.bf16.gmra.mrb[0].mxu0 %v470
      %v571 = vpop.f32.mrb[0].mxu0
      %v572 = vadd.f32 0.0, %v571
      %v573 = vpop.f32.mrb[0].mxu0
      %v574 = vpop.f32.mrb[0].mxu0
      %v575 = vadd.f32 0.0, %v574
      %v576 = vpop.f32.mrb[0].mxu0
      %577 = vmatprep.mubr.bf16.mxu0 0
      %578 = vmatmul.mubr.bf16.gmra.mrb[0].mxu0 %v473
      %v579 = vpop.f32.mrb[0].mxu0
      %v580 = vadd.f32 0.0, %v579
      %v581 = vpop.f32.mrb[0].mxu0
      %v582 = vpop.f32.mrb[0].mxu0
      %v583 = vadd.f32 0.0, %v582
      %v584 = vpop.f32.mrb[0].mxu0
      %585 = vmatprep.mubr.bf16.mxu0 0
      %586 = vmatmul.mubr.bf16.gmra.mrb[0].mxu0 %v476
      %v587 = vpop.f32.mrb[0].mxu0
      %v588 = vadd.f32 0.0, %v587
      %v589 = vpop.f32.mrb[0].mxu0
      %v590 = vpop.f32.mrb[0].mxu0
      %v591 = vadd.f32 0.0, %v590
      %v592 = vpop.f32.mrb[0].mxu0
      %593 = vmatprep.mubr.bf16.mxu0 0
      %594 = vmatmul.mubr.bf16.gmra.mrb[0].mxu0 %v479
      %v595 = vpop.f32.mrb[0].mxu0
      %v596 = vadd.f32 0.0, %v595
      %v597 = vpop.f32.mrb[0].mxu0
      %v598 = vpop.f32.mrb[0].mxu0
      %v599 = vadd.f32 0.0, %v598
      %v600 = vpop.f32.mrb[0].mxu0
      %601 = vmatprep.mubr.bf16.mxu0 0
      %602 = vmatmul.mubr.bf16.gmra.mrb[0].mxu0 %v482
      %v603 = vpop.f32.mrb[0].mxu0
      %v604 = vadd.f32 0.0, %v603
      %v605 = vpop.f32.mrb[0].mxu0
      %v606 = vpop.f32.mrb[0].mxu0
      %v607 = vadd.f32 0.0, %v606
      %v608 = vpop.f32.mrb[0].mxu0
      %609 = vmatprep.mubr.bf16.mxu0 0
      %610 = vmatmul.mubr.bf16.gmra.mrb[0].mxu0 %v485
      %v611 = vpop.f32.mrb[0].mxu0
      %v612 = vadd.f32 0.0, %v611
      %v613 = vpop.f32.mrb[0].mxu0
      %v614 = vpop.f32.mrb[0].mxu0
      %v615 = vadd.f32 0.0, %v614
      %v616 = vpop.f32.mrb[0].mxu0
      %617 = vmatprep.mubr.bf16.mxu0 0
      %618 = vmatmul.mubr.bf16.gmra.mrb[0].mxu0 %v488
      %v619 = vpop.f32.mrb[0].mxu0
      %v620 = vadd.f32 0.0, %v619
      %v621 = vpop.f32.mrb[0].mxu0
      %v622 = vpop.f32.mrb[0].mxu0
      %v623 = vadd.f32 0.0, %v622
      %v624 = vpop.f32.mrb[0].mxu0
      %625 = vmatprep.mubr.bf16.mxu0 0
      %626 = vmatmul.mubr.bf16.gmra.mrb[0].mxu0 %v491
      %v627 = vpop.f32.mrb[0].mxu0
      %v628 = vadd.f32 0.0, %v627
      %v629 = vpop.f32.mrb[0].mxu0
      %v630 = vpop.f32.mrb[0].mxu0
      %v631 = vadd.f32 0.0, %v630
      %v632 = vpop.f32.mrb[0].mxu0
      %633 = vmatprep.mubr.bf16.mxu0 0
      %634 = vmatmul.mubr.bf16.gmra.mrb[0].mxu0 %v494
      %v635 = vpop.f32.mrb[0].mxu0
      %v636 = vadd.f32 0.0, %v635
      %v637 = vpop.f32.mrb[0].mxu0
      %v638 = vpop.f32.mrb[0].mxu0
      %v639 = vadd.f32 0.0, %v638
      %v640 = vpop.f32.mrb[0].mxu0
      %641 = vmatprep.mubr.bf16.mxu0 0
      %642 = vmatmul.mubr.bf16.gmra.mrb[0].mxu0 %v497
      %v643 = vpop.f32.mrb[0].mxu0
      %v644 = vadd.f32 0.0, %v643
      %v645 = vpop.f32.mrb[0].mxu0
      %v646 = vpop.f32.mrb[0].mxu0
      %v647 = vadd.f32 0.0, %v646
      %v648 = vpop.f32.mrb[0].mxu0
      %649 = vmatprep.mubr.bf16.mxu0 0
      %650 = vmatmul.mubr.bf16.gmra.mrb[0].mxu0 %v500
      %v651 = vpop.f32.mrb[0].mxu0
      %v652 = vadd.f32 0.0, %v651
      %v653 = vpop.f32.mrb[0].mxu0
      %v654 = vpop.f32.mrb[0].mxu0
      %v655 = vadd.f32 0.0, %v654
      %v656 = vpop.f32.mrb[0].mxu0
      %657 = vmatprep.mubr.bf16.mxu0 0
      %658 = vmatmul.mubr.bf16.gmra.mrb[0].mxu0 %v503
      %v659 = vpop.f32.mrb[0].mxu0
      %v660 = vadd.f32 0.0, %v659
      %v661 = vpop.f32.mrb[0].mxu0
      %v662 = vpop.f32.mrb[0].mxu0
      %v663 = vadd.f32 0.0, %v662
      %v664 = vpop.f32.mrb[0].mxu0
      %665 = vdwg.mxu0
      %v666 = vadd.f32 %v288, %v540
      %v667 = vadd.f32 %v289, %v543
      %v668 = vadd.f32 %v290, %v548
      %v669 = vadd.f32 %v291, %v551
      %v670 = vadd.f32 %v292, %v556
      %v671 = vadd.f32 %v293, %v559
      %v672 = vadd.f32 %v294, %v564
      %v673 = vadd.f32 %v295, %v567
      %v674 = vadd.f32 %v296, %v572
      %v675 = vadd.f32 %v297, %v575
      %v676 = vadd.f32 %v298, %v580
      %v677 = vadd.f32 %v299, %v583
      %v678 = vadd.f32 %v300, %v588
      %v679 = vadd.f32 %v301, %v591
      %v680 = vadd.f32 %v302, %v596
      %v681 = vadd.f32 %v303, %v599
      %v682 = vadd.f32 %v304, %v604
      %v683 = vadd.f32 %v305, %v607
      %v684 = vadd.f32 %v306, %v612
      %v685 = vadd.f32 %v307, %v615
      %v686 = vadd.f32 %v308, %v620
      %v687 = vadd.f32 %v309, %v623
      %v688 = vadd.f32 %v310, %v628
      %v689 = vadd.f32 %v311, %v631
      %v690 = vadd.f32 %v312, %v636
      %v691 = vadd.f32 %v313, %v639
      %v692 = vadd.f32 %v314, %v644
      %v693 = vadd.f32 %v315, %v647
      %v694 = vadd.f32 %v316, %v652
      %v695 = vadd.f32 %v317, %v655
      %v696 = vadd.f32 %v318, %v660
      %v697 = vadd.f32 %v319, %v663
      %vm698 = vcmask 523264
      %699 = vst.msk [vmem:[#allocation2] sm:$0xff] %vm698, %v666
      %700 = vst.msk [vmem:[#allocation2 + $0x8] sm:$0xff] %vm698, %v667
      %701 = vst.msk [vmem:[#allocation2 + $0x10] sm:$0xff] %vm698, %v668
      %702 = vst.msk [vmem:[#allocation2 + $0x18] sm:$0xff] %vm698, %v669
      %703 = vst.msk [vmem:[#allocation2 + $0x20] sm:$0xff] %vm698, %v670
      %704 = vst.msk [vmem:[#allocation2 + $0x28] sm:$0xff] %vm698, %v671
      %705 = vst.msk [vmem:[#allocation2 + $0x30] sm:$0xff] %vm698, %v672
      %706 = vst.msk [vmem:[#allocation2 + $0x38] sm:$0xff] %vm698, %v673
      %707 = vst.msk [vmem:[#allocation2 + $0x40] sm:$0xff] %vm698, %v674
      %708 = vst.msk [vmem:[#allocation2 + $0x48] sm:$0xff] %vm698, %v675
      %709 = vst.msk [vmem:[#allocation2 + $0x50] sm:$0xff] %vm698, %v676
      %710 = vst.msk [vmem:[#allocation2 + $0x58] sm:$0xff] %vm698, %v677
      %711 = vst.msk [vmem:[#allocation2 + $0x60] sm:$0xff] %vm698, %v678
      %712 = vst.msk [vmem:[#allocation2 + $0x68] sm:$0xff] %vm698, %v679
      %713 = vst.msk [vmem:[#allocation2 + $0x70] sm:$0xff] %vm698, %v680
      %714 = vst.msk [vmem:[#allocation2 + $0x78] sm:$0xff] %vm698, %v681
      %715 = vst.msk [vmem:[#allocation2 + $0x80] sm:$0xff] %vm698, %v682
      %716 = vst.msk [vmem:[#allocation2 + $0x88] sm:$0xff] %vm698, %v683
      %717 = vst.msk [vmem:[#allocation2 + $0x90] sm:$0xff] %vm698, %v684
      %718 = vst.msk [vmem:[#allocation2 + $0x98] sm:$0xff] %vm698, %v685
      %719 = vst.msk [vmem:[#allocation2 + $0xa0] sm:$0xff] %vm698, %v686
      %720 = vst.msk [vmem:[#allocation2 + $0xa8] sm:$0xff] %vm698, %v687
      %721 = vst.msk [vmem:[#allocation2 + $0xb0] sm:$0xff] %vm698, %v688
      %722 = vst.msk [vmem:[#allocation2 + $0xb8] sm:$0xff] %vm698, %v689
      %723 = vst.msk [vmem:[#allocation2 + $0xc0] sm:$0xff] %vm698, %v690
      %724 = vst.msk [vmem:[#allocation2 + $0xc8] sm:$0xff] %vm698, %v691
      %725 = vst.msk [vmem:[#allocation2 + $0xd0] sm:$0xff] %vm698, %v692
      %726 = vst.msk [vmem:[#allocation2 + $0xd8] sm:$0xff] %vm698, %v693
      %727 = vst.msk [vmem:[#allocation2 + $0xe0] sm:$0xff] %vm698, %v694
      %728 = vst.msk [vmem:[#allocation2 + $0xe8] sm:$0xff] %vm698, %v695
      %729 = vst.msk [vmem:[#allocation2 + $0xf0] sm:$0xff] %vm698, %v696
      %730 = vst.msk [vmem:[#allocation2 + $0xf8] sm:$0xff] %vm698, %v697
      // Predicated region
      $region37: #{discriminator2_forward.5} parent=31 // pred_check
        %p731 = pneg %p251
      $region38: #{discriminator2_forward.5} parent=31 // pred_check_branch
        %733 = sbr.rel (%p731) target = $region40
      $region39: #{discriminator2_forward.5} parent=31 // pred_region
        %v734 = vld [vmem:[#allocation2] sm:$0xff]
        %v735 = vld [vmem:[#allocation2 + $0x8] sm:$0xff]
        %v736 = vld [vmem:[#allocation2 + $0x10] sm:$0xff]
        %v737 = vld [vmem:[#allocation2 + $0x18] sm:$0xff]
        %v738 = vld [vmem:[#allocation2 + $0x20] sm:$0xff]
        %v739 = vld [vmem:[#allocation2 + $0x28] sm:$0xff]
        %v740 = vld [vmem:[#allocation2 + $0x30] sm:$0xff]
        %v741 = vld [vmem:[#allocation2 + $0x38] sm:$0xff]
        %v742 = vld [vmem:[#allocation2 + $0x40] sm:$0xff]
        %v743 = vld [vmem:[#allocation2 + $0x48] sm:$0xff]
        %v744 = vld [vmem:[#allocation2 + $0x50] sm:$0xff]
        %v745 = vld [vmem:[#allocation2 + $0x58] sm:$0xff]
        %v746 = vld [vmem:[#allocation2 + $0x60] sm:$0xff]
        %v747 = vld [vmem:[#allocation2 + $0x68] sm:$0xff]
        %v748 = vld [vmem:[#allocation2 + $0x70] sm:$0xff]
        %v749 = vld [vmem:[#allocation2 + $0x78] sm:$0xff]
        %v750 = vld [vmem:[#allocation2 + $0x80] sm:$0xff]
        %v751 = vld [vmem:[#allocation2 + $0x88] sm:$0xff]
        %v752 = vld [vmem:[#allocation2 + $0x90] sm:$0xff]
        %v753 = vld [vmem:[#allocation2 + $0x98] sm:$0xff]
        %v754 = vld [vmem:[#allocation2 + $0xa0] sm:$0xff]
        %v755 = vld [vmem:[#allocation2 + $0xa8] sm:$0xff]
        %v756 = vld [vmem:[#allocation2 + $0xb0] sm:$0xff]
        %v757 = vld [vmem:[#allocation2 + $0xb8] sm:$0xff]
        %v758 = vld [vmem:[#allocation2 + $0xc0] sm:$0xff]
        %v759 = vld [vmem:[#allocation2 + $0xc8] sm:$0xff]
        %v760 = vld [vmem:[#allocation2 + $0xd0] sm:$0xff]
        %v761 = vld [vmem:[#allocation2 + $0xd8] sm:$0xff]
        %v762 = vld [vmem:[#allocation2 + $0xe0] sm:$0xff]
        %v763 = vld [vmem:[#allocation2 + $0xe8] sm:$0xff]
        %v764 = vld [vmem:[#allocation2 + $0xf0] sm:$0xff]
        %v765 = vld [vmem:[#allocation2 + $0xf8] sm:$0xff]
        %v766 = vld [vmem:[%s2] sm:$0x1]
        %v768 = vlaneseq
        %v769 = vshrl.u32 %v768, 7
        %v770 = vsub.s32 0, %v769
        %v771 = vrot.slane %v766, %v770
        %v773 = vadd.f32 %v734, %v771
        %v774 = vadd.f32 %v735, %v771
        %v775 = vadd.f32 %v736, %v771
        %v776 = vadd.f32 %v737, %v771
        %v777 = vadd.f32 %v738, %v771
        %v778 = vadd.f32 %v739, %v771
        %v779 = vadd.f32 %v740, %v771
        %v780 = vadd.f32 %v741, %v771
        %v781 = vadd.f32 %v742, %v771
        %v782 = vadd.f32 %v743, %v771
        %v783 = vadd.f32 %v744, %v771
        %v784 = vadd.f32 %v745, %v771
        %v785 = vadd.f32 %v746, %v771
        %v786 = vadd.f32 %v747, %v771
        %v787 = vadd.f32 %v748, %v771
        %v788 = vadd.f32 %v749, %v771
        %v789 = vadd.f32 %v750, %v771
        %v790 = vadd.f32 %v751, %v771
        %v791 = vadd.f32 %v752, %v771
        %v792 = vadd.f32 %v753, %v771
        %v793 = vadd.f32 %v754, %v771
        %v794 = vadd.f32 %v755, %v771
        %v795 = vadd.f32 %v756, %v771
        %v796 = vadd.f32 %v757, %v771
        %v797 = vadd.f32 %v758, %v771
        %v798 = vadd.f32 %v759, %v771
        %v799 = vadd.f32 %v760, %v771
        %v800 = vadd.f32 %v761, %v771
        %v801 = vadd.f32 %v762, %v771
        %v802 = vadd.f32 %v763, %v771
        %v803 = vadd.f32 %v764, %v771
        %v804 = vadd.f32 %v765, %v771
        %vm805 = vcmp.ge.f32.partialorder %v773, 0.0
        %vm806 = vcmp.ge.f32.partialorder %v774, 0.0
        %vm807 = vcmp.ge.f32.partialorder %v775, 0.0
        %vm808 = vcmp.ge.f32.partialorder %v776, 0.0
        %vm809 = vcmp.ge.f32.partialorder %v777, 0.0
        %vm810 = vcmp.ge.f32.partialorder %v778, 0.0
        %vm811 = vcmp.ge.f32.partialorder %v779, 0.0
        %vm812 = vcmp.ge.f32.partialorder %v780, 0.0
        %vm813 = vcmp.ge.f32.partialorder %v781, 0.0
        %vm814 = vcmp.ge.f32.partialorder %v782, 0.0
        %vm815 = vcmp.ge.f32.partialorder %v783, 0.0
        %vm816 = vcmp.ge.f32.partialorder %v784, 0.0
        %vm817 = vcmp.ge.f32.partialorder %v785, 0.0
        %vm818 = vcmp.ge.f32.partialorder %v786, 0.0
        %vm819 = vcmp.ge.f32.partialorder %v787, 0.0
        %vm820 = vcmp.ge.f32.partialorder %v788, 0.0
        %vm821 = vcmp.ge.f32.partialorder %v789, 0.0
        %vm822 = vcmp.ge.f32.partialorder %v790, 0.0
        %vm823 = vcmp.ge.f32.partialorder %v791, 0.0
        %vm824 = vcmp.ge.f32.partialorder %v792, 0.0
        %vm825 = vcmp.ge.f32.partialorder %v793, 0.0
        %vm826 = vcmp.ge.f32.partialorder %v794, 0.0
        %vm827 = vcmp.ge.f32.partialorder %v795, 0.0
        %vm828 = vcmp.ge.f32.partialorder %v796, 0.0
        %vm829 = vcmp.ge.f32.partialorder %v797, 0.0
        %vm830 = vcmp.ge.f32.partialorder %v798, 0.0
        %vm831 = vcmp.ge.f32.partialorder %v799, 0.0
        %vm832 = vcmp.ge.f32.partialorder %v800, 0.0
        %vm833 = vcmp.ge.f32.partialorder %v801, 0.0
        %vm834 = vcmp.ge.f32.partialorder %v802, 0.0
        %vm835 = vcmp.ge.f32.partialorder %v803, 0.0
        %vm836 = vcmp.ge.f32.partialorder %v804, 0.0
        %v837 = vmul.f32 %v773, 0.2
        %v838 = vmul.f32 %v774, 0.2
        %v839 = vmul.f32 %v775, 0.2
        %v840 = vmul.f32 %v776, 0.2
        %v841 = vmul.f32 %v777, 0.2
        %v842 = vmul.f32 %v778, 0.2
        %v843 = vmul.f32 %v779, 0.2
        %v844 = vmul.f32 %v780, 0.2
        %v845 = vmul.f32 %v781, 0.2
        %v846 = vmul.f32 %v782, 0.2
        %v847 = vmul.f32 %v783, 0.2
        %v848 = vmul.f32 %v784, 0.2
        %v849 = vmul.f32 %v785, 0.2
        %v850 = vmul.f32 %v786, 0.2
        %v851 = vmul.f32 %v787, 0.2
        %v852 = vmul.f32 %v788, 0.2
        %v853 = vmul.f32 %v789, 0.2
        %v854 = vmul.f32 %v790, 0.2
        %v855 = vmul.f32 %v791, 0.2
        %v856 = vmul.f32 %v792, 0.2
        %v857 = vmul.f32 %v793, 0.2
        %v858 = vmul.f32 %v794, 0.2
        %v859 = vmul.f32 %v795, 0.2
        %v860 = vmul.f32 %v796, 0.2
        %v861 = vmul.f32 %v797, 0.2
        %v862 = vmul.f32 %v798, 0.2
        %v863 = vmul.f32 %v799, 0.2
        %v864 = vmul.f32 %v800, 0.2
        %v865 = vmul.f32 %v801, 0.2
        %v866 = vmul.f32 %v802, 0.2
        %v867 = vmul.f32 %v803, 0.2
        %v868 = vmul.f32 %v804, 0.2
        %v869 = vsel %vm805, %v773, %v837
        %v870 = vsel %vm806, %v774, %v838
        %v871 = vsel %vm807, %v775, %v839
        %v872 = vsel %vm808, %v776, %v840
        %v873 = vsel %vm809, %v777, %v841
        %v874 = vsel %vm810, %v778, %v842
        %v875 = vsel %vm811, %v779, %v843
        %v876 = vsel %vm812, %v780, %v844
        %v877 = vsel %vm813, %v781, %v845
        %v878 = vsel %vm814, %v782, %v846
        %v879 = vsel %vm815, %v783, %v847
        %v880 = vsel %vm816, %v784, %v848
        %v881 = vsel %vm817, %v785, %v849
        %v882 = vsel %vm818, %v786, %v850
        %v883 = vsel %vm819, %v787, %v851
        %v884 = vsel %vm820, %v788, %v852
        %v885 = vsel %vm821, %v789, %v853
        %v886 = vsel %vm822, %v790, %v854
        %v887 = vsel %vm823, %v791, %v855
        %v888 = vsel %vm824, %v792, %v856
        %v889 = vsel %vm825, %v793, %v857
        %v890 = vsel %vm826, %v794, %v858
        %v891 = vsel %vm827, %v795, %v859
        %v892 = vsel %vm828, %v796, %v860
        %v893 = vsel %vm829, %v797, %v861
        %v894 = vsel %vm830, %v798, %v862
        %v895 = vsel %vm831, %v799, %v863
        %v896 = vsel %vm832, %v800, %v864
        %v897 = vsel %vm833, %v801, %v865
        %v898 = vsel %vm834, %v802, %v866
        %v899 = vsel %vm835, %v803, %v867
        %v900 = vsel %vm836, %v804, %v868
        %v901 = vpack.c.bf16 %v870, %v869
        %v902 = vpack.c.bf16 %v872, %v871
        %v903 = vpack.c.bf16 %v874, %v873
        %v904 = vpack.c.bf16 %v876, %v875
        %v905 = vpack.c.bf16 %v878, %v877
        %v906 = vpack.c.bf16 %v880, %v879
        %v907 = vpack.c.bf16 %v882, %v881
        %v908 = vpack.c.bf16 %v884, %v883
        %v909 = vpack.c.bf16 %v886, %v885
        %v910 = vpack.c.bf16 %v888, %v887
        %v911 = vpack.c.bf16 %v890, %v889
        %v912 = vpack.c.bf16 %v892, %v891
        %v913 = vpack.c.bf16 %v894, %v893
        %v914 = vpack.c.bf16 %v896, %v895
        %v915 = vpack.c.bf16 %v898, %v897
        %v916 = vpack.c.bf16 %v900, %v899
        %v933 = vunpack.c.l.b16 %v901
        %v934 = vunpack.c.h.b16 %v901
        %v935 = vunpack.c.l.b16 %v902
        %v936 = vunpack.c.h.b16 %v902
        %v937 = vunpack.c.l.b16 %v903
        %v938 = vunpack.c.h.b16 %v903
        %v939 = vunpack.c.l.b16 %v904
        %v940 = vunpack.c.h.b16 %v904
        %v941 = vunpack.c.l.b16 %v905
        %v942 = vunpack.c.h.b16 %v905
        %v943 = vunpack.c.l.b16 %v906
        %v944 = vunpack.c.h.b16 %v906
        %v945 = vunpack.c.l.b16 %v907
        %v946 = vunpack.c.h.b16 %v907
        %v947 = vunpack.c.l.b16 %v908
        %v948 = vunpack.c.h.b16 %v908
        %v949 = vunpack.c.l.b16 %v909
        %v950 = vunpack.c.h.b16 %v909
        %v951 = vunpack.c.l.b16 %v910
        %v952 = vunpack.c.h.b16 %v910
        %v953 = vunpack.c.l.b16 %v911
        %v954 = vunpack.c.h.b16 %v911
        %v955 = vunpack.c.l.b16 %v912
        %v956 = vunpack.c.h.b16 %v912
        %v957 = vunpack.c.l.b16 %v913
        %v958 = vunpack.c.h.b16 %v913
        %v959 = vunpack.c.l.b16 %v914
        %v960 = vunpack.c.h.b16 %v914
        %v961 = vunpack.c.l.b16 %v915
        %v962 = vunpack.c.h.b16 %v915
        %v963 = vunpack.c.l.b16 %v916
        %v964 = vunpack.c.h.b16 %v916
        %v965 = vpack.c.b16 %v933, %v933
        %v966 = vpack.c.b16 %v934, %v934
        %v967 = vpack.c.b16 %v935, %v935
        %v968 = vpack.c.b16 %v936, %v936
        %v969 = vpack.c.b16 %v937, %v937
        %v970 = vpack.c.b16 %v938, %v938
        %v971 = vpack.c.b16 %v939, %v939
        %v972 = vpack.c.b16 %v940, %v940
        %v973 = vpack.c.b16 %v941, %v941
        %v974 = vpack.c.b16 %v942, %v942
        %v975 = vpack.c.b16 %v943, %v943
        %v976 = vpack.c.b16 %v944, %v944
        %v977 = vpack.c.b16 %v945, %v945
        %v978 = vpack.c.b16 %v946, %v946
        %v979 = vpack.c.b16 %v947, %v947
        %v980 = vpack.c.b16 %v948, %v948
        %v981 = vpack.c.b16 %v949, %v949
        %v982 = vpack.c.b16 %v950, %v950
        %v983 = vpack.c.b16 %v951, %v951
        %v984 = vpack.c.b16 %v952, %v952
        %v985 = vpack.c.b16 %v953, %v953
        %v986 = vpack.c.b16 %v954, %v954
        %v987 = vpack.c.b16 %v955, %v955
        %v988 = vpack.c.b16 %v956, %v956
        %v989 = vpack.c.b16 %v957, %v957
        %v990 = vpack.c.b16 %v958, %v958
        %v991 = vpack.c.b16 %v959, %v959
        %v992 = vpack.c.b16 %v960, %v960
        %v993 = vpack.c.b16 %v961, %v961
        %v994 = vpack.c.b16 %v962, %v962
        %v995 = vpack.c.b16 %v963, %v963
        %v996 = vpack.c.b16 %v964, %v964
        %vm1029 = vcmask 519168
        %1030 = vst.msk [vmem:[%s248] sm:$0xf] %vm1029, %v965
        %1031 = vst.msk [vmem:[%s248 + $0x4] sm:$0xf] %vm1029, %v966
        %1032 = vst.msk [vmem:[%s248 + $0x8] sm:$0xf] %vm1029, %v967
        %1033 = vst.msk [vmem:[%s248 + $0xc] sm:$0xf] %vm1029, %v968
        %1034 = vst.msk [vmem:[%s248 + $0x10] sm:$0xf] %vm1029, %v969
        %1035 = vst.msk [vmem:[%s248 + $0x14] sm:$0xf] %vm1029, %v970
        %1036 = vst.msk [vmem:[%s248 + $0x18] sm:$0xf] %vm1029, %v971
        %1037 = vst.msk [vmem:[%s248 + $0x1c] sm:$0xf] %vm1029, %v972
        %1038 = vst.msk [vmem:[%s248 + $0x20] sm:$0xf] %vm1029, %v973
        %1039 = vst.msk [vmem:[%s248 + $0x24] sm:$0xf] %vm1029, %v974
        %1040 = vst.msk [vmem:[%s248 + $0x28] sm:$0xf] %vm1029, %v975
        %1041 = vst.msk [vmem:[%s248 + $0x2c] sm:$0xf] %vm1029, %v976
        %1042 = vst.msk [vmem:[%s248 + $0x30] sm:$0xf] %vm1029, %v977
        %1043 = vst.msk [vmem:[%s248 + $0x34] sm:$0xf] %vm1029, %v978
        %1044 = vst.msk [vmem:[%s248 + $0x38] sm:$0xf] %vm1029, %v979
        %1045 = vst.msk [vmem:[%s248 + $0x3c] sm:$0xf] %vm1029, %v980
        %1046 = vst.msk [vmem:[%s248 + $0x40] sm:$0xf] %vm1029, %v981
        %1047 = vst.msk [vmem:[%s248 + $0x44] sm:$0xf] %vm1029, %v982
        %1048 = vst.msk [vmem:[%s248 + $0x48] sm:$0xf] %vm1029, %v983
        %1049 = vst.msk [vmem:[%s248 + $0x4c] sm:$0xf] %vm1029, %v984
        %1050 = vst.msk [vmem:[%s248 + $0x50] sm:$0xf] %vm1029, %v985
        %1051 = vst.msk [vmem:[%s248 + $0x54] sm:$0xf] %vm1029, %v986
        %1052 = vst.msk [vmem:[%s248 + $0x58] sm:$0xf] %vm1029, %v987
        %1053 = vst.msk [vmem:[%s248 + $0x5c] sm:$0xf] %vm1029, %v988
        %1054 = vst.msk [vmem:[%s248 + $0x60] sm:$0xf] %vm1029, %v989
        %1055 = vst.msk [vmem:[%s248 + $0x64] sm:$0xf] %vm1029, %v990
        %1056 = vst.msk [vmem:[%s248 + $0x68] sm:$0xf] %vm1029, %v991
        %1057 = vst.msk [vmem:[%s248 + $0x6c] sm:$0xf] %vm1029, %v992
        %1058 = vst.msk [vmem:[%s248 + $0x70] sm:$0xf] %vm1029, %v993
        %1059 = vst.msk [vmem:[%s248 + $0x74] sm:$0xf] %vm1029, %v994
        %1060 = vst.msk [vmem:[%s248 + $0x78] sm:$0xf] %vm1029, %v995
        %1061 = vst.msk [vmem:[%s248 + $0x7c] sm:$0xf] %vm1029, %v996
      $region40: #{discriminator2_forward.5} parent=31 // pred_fallthru
        _
      %s1062 = smul.u32 32, %s20
      %p1063 = scmp.lt.s32.totalorder %s19, 1
      %s1064 = scalar_select %p1063, %s19, 1
      %p1065 = scmp.lt.s32.totalorder %s1062, 31
      %s1066 = scalar_select %p1065, %s1062, 31
      %s1067 = smul.addr %s1064, 32
      %s1068 = sadd.s32 %s1066, %s1067
      %s1069 = smul.addr %s1068, 4
      %s1070 = scalar_lea.vmem %s3, %s1069
      // Predicated region
      $region41: #{discriminator2_forward.5} parent=31 // pred_check
        %p1071 = pneg %p130
      $region42: #{discriminator2_forward.5} parent=31 // pred_check_branch
        %1073 = sbr.rel (%p1071) target = $region44
      $region43: #{discriminator2_forward.5} parent=31 // pred_region
        %s1074 = smul.u32 32, %s20
      $region44: #{discriminator2_forward.5} parent=31 // pred_fallthru
        _
    $region32: #{discriminator2_forward.5} parent=5 // pred_fallthru
      _
    %p1075 = scmp.le.s32.totalorder 2, %s9
    // Predicated region
    $region45: #{discriminator2_forward.5} parent=5 // pred_check
      %p1076 = pneg %p1075
    $region46: #{discriminator2_forward.5} parent=5 // pred_check_branch
      %1078 = sbr.rel (%p1076) target = $region48
    $region47: #{discriminator2_forward.5} parent=5 // pred_region
      %s1079 = ssub.s32 %s9, 2
      // Predicated region
      $region49: #{discriminator2_forward.5} parent=47 // pred_check
        %p1080 = pneg %p136
      $region50: #{discriminator2_forward.5} parent=47 // pred_check_branch
        %1082 = sbr.rel (%p1080) target = $region52
      $region51: #{discriminator2_forward.5} parent=47 // pred_region
        %s1083 = smul.u32 32, %s23
        %p1084 = scmp.lt.s32.totalorder %s22, 1
        %s1085 = scalar_select %p1084, %s22, 1
        %p1086 = scmp.lt.s32.totalorder %s1083, 31
        %s1087 = scalar_select %p1086, %s1083, 31
        %s1088 = smul.addr %s1085, 32
        %s1089 = sadd.s32 %s1087, %s1088
        %s1090 = smul.addr %s1089, 4
        %s1091 = scalar_lea.vmem %s3, %s1090
      $region52: #{discriminator2_forward.5} parent=47 // pred_fallthru
        _
    $region48: #{discriminator2_forward.5} parent=5 // pred_fallthru
      _
  $region6: #{discriminator2_forward.5} parent=0 // loop_footer
    %s13 = sadd.s32 1, %s9
  $region7: #{discriminator2_forward.5} parent=0 // loop_footer_branch
    %8 = sbr.rel target = $region3
  $region8: #{discriminator2_forward.5} parent=0 // loop_exit
    _

// kernel: custom-call.4
$region0: #{custom-call.4}
  %s0 = inlined_call_operand.hbm [shape: f32[1024], index: 0, kind: output, shape index: {}]

// kernel: discriminator2_forward.6
$region0: #{discriminator2_forward.6}
  #allocation0 [shape = 'u32[]', space=smem, size = 0x4, offset = 0x4, fixed_abs, tag = 'smem constant byte address 0x4 - core index']
  #allocation1 [shape = 'u32[144,128]{1,0:T(1,128)}', space=vmem, size = 0x12000, scoped, tag = 'internal scratch']
  #allocation2 [shape = 'f32[64,128]{1,0:T(8,128)}', space=vmem, size = 0x8000, scoped, tag = 'scratch operand']
  %s0 = inlined_call_operand.vmem [shape: bf16[2,64,1024], index: 0, kind: input, shape index: {}]
  %s1 = inlined_call_operand.vmem [shape: bf16[1024,128], index: 1, kind: input, shape index: {}]
  %s2 = inlined_call_operand.vmem [shape: f32[1,128], index: 2, kind: input, shape index: {}]
  %s3 = inlined_call_operand.vmem [shape: bf16[2,64,128], index: 3, kind: output, shape index: {}]
  %s4 = sld [smem:[#allocation0]]
  $region76: #{discriminator2_forward.6} parent=0
    _
  %s6 = ssub.s32 1, %s4
  %s7 = scalar_select 0, %s6, %s4
  $region1: #{discriminator2_forward.6} parent=0
    #allocation3 [shape = 'u8[131072]{0}', space=vmem, size = 0x20000, scoped, tag = 'input window, operand 0']
    loop: start=0, step=1, limit=6
    $region2: #{discriminator2_forward.6} parent=1 // loop_pre_header
      _
    $region3: #{discriminator2_forward.6} parent=1 // loop_header
      %s9 = sphi 0, %s13
      %p10 = scmp.ge.s32.totalorder %s9, 6
      %s16 = sphi 0, %s35
      %s17 = sphi 0, %s31
      %s18 = sphi 0, %s27
      %s19 = sphi 0, %s16
      %s20 = sphi 0, %s17
      %s21 = sphi 0, %s18
      %s22 = sphi 0, %s19
      %s23 = sphi 0, %s20
      %s24 = sphi 0, %s21
      %s42 = sphi 0, %s44
      %s45 = sphi 0, %s42
      %s46 = sphi 0, %s45
      %s62 = sphi 0, %s46
      %s68 = sphi 0, %s70
      %s71 = sphi 0, %s68
      %s72 = sphi 0, %s71
      %s88 = sphi 0, %s72
      %s92 = sphi 0, %s92
      %s94 = sphi 0, %s92
      %s95 = sphi 0, %s94
      %s109 = sphi 0, %s95
      %s117 = sphi 0, %s119
      %s120 = sphi 0, %s117
      %s121 = sphi 0, %s120
      %s137 = sphi 0, %s121
    $region4: #{discriminator2_forward.6} parent=1 // loop_header_branch
      %12 = sbr.rel (%p10) target = $region8
    $region5: #{discriminator2_forward.6} parent=1 // loop_body
      %s14 = ssub.s32 %s9, 1
      %s15 = ssub.s32 %s9, 2
      %s25 = sadd.s32 1, %s18
      %p26 = scmp.ge.s32.totalorder %s25, 2
      %s27 = scalar_select %p26, 0, %s25
      %s28 = sadd.s32 1, %s17
      %s29 = scalar_select %p26, %s28, %s17
      %p30 = scmp.ge.s32.totalorder %s29, 1
      %s31 = scalar_select %p30, 0, %s29
      %s32 = sadd.s32 1, %s16
      %s33 = scalar_select %p30, %s32, %s16
      %p34 = scmp.ge.s32.totalorder %s33, 2
      %s35 = scalar_select %p34, 0, %s33
      %s36 = ssub.s32 %s16, %s35
      %s37 = ssub.s32 %s17, %s31
      %s38 = sor.u32 %s36, %s37
      %s39 = ssub.s32 %s18, %s27
      %s40 = sor.u32 %s38, %s39
      %p41 = scmp.eq.s32.totalorder %s40, 0
      %s43 = sadd.s32 %s42, 1
      %s44 = scalar_select %p41, %s42, %s43
      %p47 = pneg %p41
      %p48 = scmp.eq.s32.totalorder %s9, 3
      %p49 = por %p47, %p48
      %p50 = scmp.ne.s32.totalorder %s42, %s45
      %p51 = scmp.eq.s32.totalorder %s9, 0
      %p52 = por %p50, %p51
      %p53 = scmp.ne.s32.totalorder %s42, %s45
      %p54 = scmp.eq.s32.totalorder %s14, 3
      %p55 = por %p53, %p54
      %p56 = scmp.ne.s32.totalorder %s45, %s46
      %p57 = scmp.eq.s32.totalorder %s14, 0
      %p58 = por %p56, %p57
      %p59 = scmp.ne.s32.totalorder %s45, %s46
      %p60 = scmp.eq.s32.totalorder %s15, 3
      %p61 = por %p59, %p60
      %p63 = scmp.ne.s32.totalorder %s46, %s62
      %p64 = scmp.eq.s32.totalorder %s15, 0
      %p65 = por %p63, %p64
      %s66 = ssub.s32 %s18, %s27
      %p67 = scmp.eq.s32.totalorder %s66, 0
      %s69 = sadd.s32 %s68, 1
      %s70 = scalar_select %p67, %s68, %s69
      %p73 = pneg %p67
      %p74 = scmp.eq.s32.totalorder %s9, 3
      %p75 = por %p73, %p74
      %p76 = scmp.ne.s32.totalorder %s68, %s71
      %p77 = scmp.eq.s32.totalorder %s9, 0
      %p78 = por %p76, %p77
      %p79 = scmp.ne.s32.totalorder %s68, %s71
      %p80 = scmp.eq.s32.totalorder %s14, 3
      %p81 = por %p79, %p80
      %p82 = scmp.ne.s32.totalorder %s71, %s72
      %p83 = scmp.eq.s32.totalorder %s14, 0
      %p84 = por %p82, %p83
      %p85 = scmp.ne.s32.totalorder %s71, %s72
      %p86 = scmp.eq.s32.totalorder %s15, 3
      %p87 = por %p85, %p86
      %p89 = scmp.ne.s32.totalorder %s72, %s88
      %p90 = scmp.eq.s32.totalorder %s15, 0
      %p91 = por %p89, %p90
      %s93 = sadd.s32 %s92, 1
      %p96 = scmp.eq.s32.totalorder %s9, 3
      %p97 = scmp.ne.s32.totalorder %s92, %s94
      %p98 = scmp.eq.s32.totalorder %s9, 0
      %p99 = por %p97, %p98
      %p100 = scmp.ne.s32.totalorder %s92, %s94
      %p101 = scmp.eq.s32.totalorder %s14, 3
      %p102 = por %p100, %p101
      %p103 = scmp.ne.s32.totalorder %s94, %s95
      %p104 = scmp.eq.s32.totalorder %s14, 0
      %p105 = por %p103, %p104
      %p106 = scmp.ne.s32.totalorder %s94, %s95
      %p107 = scmp.eq.s32.totalorder %s15, 3
      %p108 = por %p106, %p107
      %p110 = scmp.ne.s32.totalorder %s95, %s109
      %p111 = scmp.eq.s32.totalorder %s15, 0
      %p112 = por %p110, %p111
      %s113 = ssub.s32 %s16, %s35
      %s114 = ssub.s32 %s17, %s31
      %s115 = sor.u32 %s113, %s114
      %p116 = scmp.eq.s32.totalorder %s115, 0
      %s118 = sadd.s32 %s117, 1
      %s119 = scalar_select %p116, %s117, %s118
      %p122 = pneg %p116
      %p123 = scmp.eq.s32.totalorder %s9, 3
      %p124 = por %p122, %p123
      %p125 = scmp.ne.s32.totalorder %s117, %s120
      %p126 = scmp.eq.s32.totalorder %s9, 0
      %p127 = por %p125, %p126
      %p128 = scmp.ne.s32.totalorder %s117, %s120
      %p129 = scmp.eq.s32.totalorder %s14, 3
      %p130 = por %p128, %p129
      %p131 = scmp.ne.s32.totalorder %s120, %s121
      %p132 = scmp.eq.s32.totalorder %s14, 0
      %p133 = por %p131, %p132
      %p134 = scmp.ne.s32.totalorder %s120, %s121
      %p135 = scmp.eq.s32.totalorder %s15, 3
      %p136 = por %p134, %p135
      %p138 = scmp.ne.s32.totalorder %s121, %s137
      %p139 = scmp.eq.s32.totalorder %s15, 0
      %p140 = por %p138, %p139
      %p141 = scmp.le.s32.totalorder 1, %s9
      %p142 = scmp.lt.s32.totalorder %s9, 5
      %p143 = pnand %p141, %p142
      %p144 = pneg %p143
      // Predicated region
      $region9: #{discriminator2_forward.6} parent=5 // pred_check
        _
      $region10: #{discriminator2_forward.6} parent=5 // pred_check_branch
        %146 = sbr.rel (%p143) target = $region12
      $region11: #{discriminator2_forward.6} parent=5 // pred_region
        %s147 = ssub.s32 %s9, 1
        // Predicated region
        $region13: #{discriminator2_forward.6} parent=11 // pred_check
          %p148 = pneg %p105
        $region14: #{discriminator2_forward.6} parent=11 // pred_check_branch
          %150 = sbr.rel (%p148) target = $region16
        $region15: #{discriminator2_forward.6} parent=11 // pred_region
          _
        $region16: #{discriminator2_forward.6} parent=11 // pred_fallthru
          _
      $region12: #{discriminator2_forward.6} parent=5 // pred_fallthru
        _
      %p151 = scmp.lt.s32.totalorder %s9, 4
      // Predicated region
      $region17: #{discriminator2_forward.6} parent=5 // pred_check
        %p152 = pneg %p151
      $region18: #{discriminator2_forward.6} parent=5 // pred_check_branch
        %154 = sbr.rel (%p152) target = $region20
      $region19: #{discriminator2_forward.6} parent=5 // pred_region
        // Predicated region
        $region21: #{discriminator2_forward.6} parent=19 // pred_check
          %p155 = pneg %p52
        $region22: #{discriminator2_forward.6} parent=19 // pred_check_branch
          %157 = sbr.rel (%p155) target = $region24
        $region23: #{discriminator2_forward.6} parent=19 // pred_region
          %s158 = sand.u32 %s42, 1
          %s159 = sand.u32 %s42, 1
          %s160 = smul.addr %s159, 128
          %s161 = scalar_lea.vmem [#allocation3], %s160
          %s162 = smul.u32 8, %s17
          %s163 = smul.u32 4, %s18
          %s164 = smul.addr %s162, 8
          %s165 = sadd.s32 %s163, %s164
          %s166 = smul.addr %s16, 64
          %s167 = sadd.s32 %s165, %s166
          %s168 = smul.addr %s167, 4
          %s169 = scalar_lea.vmem %s0, %s168
          // Predicated region
          $region25: #{discriminator2_forward.6} parent=23 // pred_check
            _
          $region26: #{discriminator2_forward.6} parent=23 // pred_check_branch
            %171 = sbr.rel (0) target = $region28
          $region27: #{discriminator2_forward.6} parent=23 // pred_region
            // Predicated region
            $region29: #{discriminator2_forward.6} parent=27 // pred_check
              _
            $region30: #{discriminator2_forward.6} parent=27 // pred_check_branch
              %173 = sbr.rel (0) target = $region32
            $region31: #{discriminator2_forward.6} parent=27 // pred_region
              loop: start=0, step=1, limit=1
              $region33: #{discriminator2_forward.6} parent=31 // loop_pre_header
                _
              $region34: #{discriminator2_forward.6} parent=31 // loop_header
                %s175 = sphi 0, %s179
                %p176 = scmp.ge.s32.totalorder %s175, 1
                %s180 = sphi %s169, %s169
                %s181 = sphi %s161, %s161
              $region35: #{discriminator2_forward.6} parent=31 // loop_header_branch
                %178 = sbr.rel (%p176) target = $region39
              $region36: #{discriminator2_forward.6} parent=31 // loop_body
                %v182 = vld [vmem:[%s180] sm:$0xff]
                %183 = vst [vmem:[%s181] sm:$0xff] %v182
                %v184 = vld [vmem:[%s180 + $0x8] sm:$0xff]
                %185 = vst [vmem:[%s181 + $0x8] sm:$0xff] %v184
                %v186 = vld [vmem:[%s180 + $0x20] sm:$0xff]
                %187 = vst [vmem:[%s181 + $0x10] sm:$0xff] %v186
                %v188 = vld [vmem:[%s180 + $0x28] sm:$0xff]
                %189 = vst [vmem:[%s181 + $0x18] sm:$0xff] %v188
                %v190 = vld [vmem:[%s180 + $0x40] sm:$0xff]
                %191 = vst [vmem:[%s181 + $0x20] sm:$0xff] %v190
                %v192 = vld [vmem:[%s180 + $0x48] sm:$0xff]
                %193 = vst [vmem:[%s181 + $0x28] sm:$0xff] %v192
                %v194 = vld [vmem:[%s180 + $0x60] sm:$0xff]
                %195 = vst [vmem:[%s181 + $0x30] sm:$0xff] %v194
                %v196 = vld [vmem:[%s180 + $0x68] sm:$0xff]
                %197 = vst [vmem:[%s181 + $0x38] sm:$0xff] %v196
                %v198 = vld [vmem:[%s180 + $0x80] sm:$0xff]
                %199 = vst [vmem:[%s181 + $0x40] sm:$0xff] %v198
                %v200 = vld [vmem:[%s180 + $0x88] sm:$0xff]
                %201 = vst [vmem:[%s181 + $0x48] sm:$0xff] %v200
                %v202 = vld [vmem:[%s180 + $0xa0] sm:$0xff]
                %203 = vst [vmem:[%s181 + $0x50] sm:$0xff] %v202
                %v204 = vld [vmem:[%s180 + $0xa8] sm:$0xff]
                %205 = vst [vmem:[%s181 + $0x58] sm:$0xff] %v204
                %v206 = vld [vmem:[%s180 + $0xc0] sm:$0xff]
                %207 = vst [vmem:[%s181 + $0x60] sm:$0xff] %v206
                %v208 = vld [vmem:[%s180 + $0xc8] sm:$0xff]
                %209 = vst [vmem:[%s181 + $0x68] sm:$0xff] %v208
                %v210 = vld [vmem:[%s180 + $0xe0] sm:$0xff]
                %211 = vst [vmem:[%s181 + $0x70] sm:$0xff] %v210
                %v212 = vld [vmem:[%s180 + $0xe8] sm:$0xff]
                %213 = vst [vmem:[%s181 + $0x78] sm:$0xff] %v212
              $region37: #{discriminator2_forward.6} parent=31 // loop_footer
                %s179 = sadd.s32 1, %s175
              $region38: #{discriminator2_forward.6} parent=31 // loop_footer_branch
                %174 = sbr.rel target = $region34
              $region39: #{discriminator2_forward.6} parent=31 // loop_exit
                _
            $region32: #{discriminator2_forward.6} parent=27 // pred_fallthru
              _
            // Predicated region
            $region40: #{discriminator2_forward.6} parent=27 // pred_check
              _
            $region41: #{discriminator2_forward.6} parent=27 // pred_check_branch
              %215 = sbr.rel target = $region43
            $region42: #{discriminator2_forward.6} parent=27 // pred_region
              _
            $region43: #{discriminator2_forward.6} parent=27 // pred_fallthru
              _
          $region28: #{discriminator2_forward.6} parent=23 // pred_fallthru
            _
          %216 = vnop
        $region24: #{discriminator2_forward.6} parent=19 // pred_fallthru
          _
        // Predicated region
        $region44: #{discriminator2_forward.6} parent=19 // pred_check
          %p217 = pneg %p78
        $region45: #{discriminator2_forward.6} parent=19 // pred_check_branch
          %219 = sbr.rel (%p217) target = $region47
        $region46: #{discriminator2_forward.6} parent=19 // pred_region
          %s220 = smul.u32 64, %s18
          %p221 = scmp.lt.s32.totalorder %s220, 127
          %s222 = scalar_select %p221, %s220, 127
          %s223 = smul.addr %s222, 4
          %s224 = scalar_lea.vmem %s1, %s223
          %s225 = smul.u32 64, %s18
        $region47: #{discriminator2_forward.6} parent=19 // pred_fallthru
          _
      $region20: #{discriminator2_forward.6} parent=5 // pred_fallthru
        _
      %p226 = scmp.le.s32.totalorder 1, %s9
      %p227 = scmp.lt.s32.totalorder %s9, 5
      %p228 = pnand %p226, %p227
      %p229 = pneg %p228
      // Predicated region
      $region48: #{discriminator2_forward.6} parent=5 // pred_check
        _
      $region49: #{discriminator2_forward.6} parent=5 // pred_check_branch
        %231 = sbr.rel (%p228) target = $region51
      $region50: #{discriminator2_forward.6} parent=5 // pred_region
        %s232 = ssub.s32 %s9, 1
        %s233 = sand.u32 %s45, 1
        %s234 = sand.u32 %s45, 1
        %s235 = smul.addr %s234, 128
        %s236 = scalar_lea.vmem [#allocation3], %s235
        // Predicated region
        $region52: #{discriminator2_forward.6} parent=50 // pred_check
          %p237 = pneg %p58
        $region53: #{discriminator2_forward.6} parent=50 // pred_check_branch
          %239 = sbr.rel (%p237) target = $region55
        $region54: #{discriminator2_forward.6} parent=50 // pred_region
          _
        $region55: #{discriminator2_forward.6} parent=50 // pred_fallthru
          _
        %s240 = sand.u32 %s45, 1
        %s241 = sand.u32 %s45, 1
        %s242 = smul.addr %s241, 128
        %s243 = scalar_lea.vmem [#allocation3], %s242
        %p244 = pneg %p58
        %p245 = pneg %p55
        %s246 = smul.u32 64, %s21
        %p247 = scmp.lt.s32.totalorder %s246, 127
        %s248 = scalar_select %p247, %s246, 127
        %s249 = smul.addr %s248, 4
        %s250 = scalar_lea.vmem %s1, %s249
        %p251 = pneg %p84
        %p252 = pneg %p81
        %p253 = pneg %p105
        %p254 = pneg %p102
        %p255 = pneg %p133
        %p256 = pneg %p130
        %s257 = smul.u32 8, %s20
        %p258 = scmp.lt.s32.totalorder %s19, 1
        %s259 = scalar_select %p258, %s19, 1
        %p260 = scmp.lt.s32.totalorder %s257, 7
        %s261 = scalar_select %p260, %s257, 7
        %s262 = smul.addr %s259, 8
        %s263 = sadd.s32 %s261, %s262
        %s264 = smul.addr %s263, 4
        %s265 = scalar_lea.vmem %s3, %s264
        %s266 = smul.u32 8, %s20
        %s267 = smul.u32 4, %s21
        %s268 = smul.u32 64, %s21
        %p269 = scmp.lt.s32.totalorder %s268, 127
        %s270 = scalar_select %p269, %s268, 127
        %s271 = smul.addr %s270, 4
        %s272 = scalar_lea.vmem %s1, %s271
        %s273 = smul.u32 64, %s21
        %s274 = smul.u32 8, %s20
        %p275 = scmp.lt.s32.totalorder %s19, 1
        %s276 = scalar_select %p275, %s19, 1
        %p277 = scmp.lt.s32.totalorder %s274, 7
        %s278 = scalar_select %p277, %s274, 7
        %s279 = smul.addr %s276, 8
        %s280 = sadd.s32 %s278, %s279
        %s281 = smul.addr %s280, 4
        %s282 = scalar_lea.vmem %s3, %s281
        %s283 = smul.u32 8, %s20
        %p285 = scmp.eq.s32.totalorder %s21, 0
        // Predicated region
        $region56: #{discriminator2_forward.6} parent=50 // pred_check
          %p286 = pneg %p285
        $region57: #{discriminator2_forward.6} parent=50 // pred_check_branch
          %288 = sbr.rel (%p286) target = $region59
        $region58: #{discriminator2_forward.6} parent=50 // pred_region
          %289 = vst [vmem:[#allocation2] sm:$0xff] 0.0
          %290 = vst [vmem:[#allocation2 + $0x8] sm:$0xff] 0.0
          %291 = vst [vmem:[#allocation2 + $0x10] sm:$0xff] 0.0
          %292 = vst [vmem:[#allocation2 + $0x18] sm:$0xff] 0.0
          %293 = vst [vmem:[#allocation2 + $0x20] sm:$0xff] 0.0
          %294 = vst [vmem:[#allocation2 + $0x28] sm:$0xff] 0.0
          %295 = vst [vmem:[#allocation2 + $0x30] sm:$0xff] 0.0
          %296 = vst [vmem:[#allocation2 + $0x38] sm:$0xff] 0.0
        $region59: #{discriminator2_forward.6} parent=50 // pred_fallthru
          _
        %v297 = vld [vmem:[#allocation2] sm:$0xff]
        %v298 = vld [vmem:[#allocation2 + $0x8] sm:$0xff]
        %v299 = vld [vmem:[#allocation2 + $0x10] sm:$0xff]
        %v300 = vld [vmem:[#allocation2 + $0x18] sm:$0xff]
        %v301 = vld [vmem:[#allocation2 + $0x20] sm:$0xff]
        %v302 = vld [vmem:[#allocation2 + $0x28] sm:$0xff]
        %v303 = vld [vmem:[#allocation2 + $0x30] sm:$0xff]
        %v304 = vld [vmem:[#allocation2 + $0x38] sm:$0xff]
        %v305 = vld [vmem:[%s236] sm:$0xff]
        %v306 = vld [vmem:[%s236 + $0x8] sm:$0xff]
        %v307 = vld [vmem:[%s236 + $0x10] sm:$0xff]
        %v308 = vld [vmem:[%s236 + $0x18] sm:$0xff]
        %v309 = vld [vmem:[%s236 + $0x20] sm:$0xff]
        %v310 = vld [vmem:[%s236 + $0x28] sm:$0xff]
        %v311 = vld [vmem:[%s236 + $0x30] sm:$0xff]
        %v312 = vld [vmem:[%s236 + $0x38] sm:$0xff]
        %v313 = vld [vmem:[%s236 + $0x40] sm:$0xff]
        %v314 = vld [vmem:[%s236 + $0x48] sm:$0xff]
        %v315 = vld [vmem:[%s236 + $0x50] sm:$0xff]
        %v316 = vld [vmem:[%s236 + $0x58] sm:$0xff]
        %v317 = vld [vmem:[%s236 + $0x60] sm:$0xff]
        %v318 = vld [vmem:[%s236 + $0x68] sm:$0xff]
        %v319 = vld [vmem:[%s236 + $0x70] sm:$0xff]
        %v320 = vld [vmem:[%s236 + $0x78] sm:$0xff]
        %v321 = vld [vmem:[%s272] sm:$0xf]
        %v322 = vld [vmem:[%s272 + $0x4] sm:$0xf]
        %v323 = vld [vmem:[%s272 + $0x8] sm:$0xf]
        %v324 = vld [vmem:[%s272 + $0xc] sm:$0xf]
        %v325 = vld [vmem:[%s272 + $0x10] sm:$0xf]
        %v326 = vld [vmem:[%s272 + $0x14] sm:$0xf]
        %v327 = vld [vmem:[%s272 + $0x18] sm:$0xf]
        %v328 = vld [vmem:[%s272 + $0x1c] sm:$0xf]
        %v329 = vld [vmem:[%s272 + $0x20] sm:$0xf]
        %v330 = vld [vmem:[%s272 + $0x24] sm:$0xf]
        %v331 = vld [vmem:[%s272 + $0x28] sm:$0xf]
        %v332 = vld [vmem:[%s272 + $0x2c] sm:$0xf]
        %v333 = vld [vmem:[%s272 + $0x30] sm:$0xf]
        %v334 = vld [vmem:[%s272 + $0x34] sm:$0xf]
        %v335 = vld [vmem:[%s272 + $0x38] sm:$0xf]
        %v336 = vld [vmem:[%s272 + $0x3c] sm:$0xf]
        %v337 = vld [vmem:[%s272 + $0x40] sm:$0xf]
        %v338 = vld [vmem:[%s272 + $0x44] sm:$0xf]
        %v339 = vld [vmem:[%s272 + $0x48] sm:$0xf]
        %v340 = vld [vmem:[%s272 + $0x4c] sm:$0xf]
        %v341 = vld [vmem:[%s272 + $0x50] sm:$0xf]
        %v342 = vld [vmem:[%s272 + $0x54] sm:$0xf]
        %v343 = vld [vmem:[%s272 + $0x58] sm:$0xf]
        %v344 = vld [vmem:[%s272 + $0x5c] sm:$0xf]
        %v345 = vld [vmem:[%s272 + $0x60] sm:$0xf]
        %v346 = vld [vmem:[%s272 + $0x64] sm:$0xf]
        %v347 = vld [vmem:[%s272 + $0x68] sm:$0xf]
        %v348 = vld [vmem:[%s272 + $0x6c] sm:$0xf]
        %v349 = vld [vmem:[%s272 + $0x70] sm:$0xf]
        %v350 = vld [vmem:[%s272 + $0x74] sm:$0xf]
        %v351 = vld [vmem:[%s272 + $0x78] sm:$0xf]
        %v352 = vld [vmem:[%s272 + $0x7c] sm:$0xf]
        %v353 = vld [vmem:[%s272 + $0x80] sm:$0xf]
        %v354 = vld [vmem:[%s272 + $0x84] sm:$0xf]
        %v355 = vld [vmem:[%s272 + $0x88] sm:$0xf]
        %v356 = vld [vmem:[%s272 + $0x8c] sm:$0xf]
        %v357 = vld [vmem:[%s272 + $0x90] sm:$0xf]
        %v358 = vld [vmem:[%s272 + $0x94] sm:$0xf]
        %v359 = vld [vmem:[%s272 + $0x98] sm:$0xf]
        %v360 = vld [vmem:[%s272 + $0x9c] sm:$0xf]
        %v361 = vld [vmem:[%s272 + $0xa0] sm:$0xf]
        %v362 = vld [vmem:[%s272 + $0xa4] sm:$0xf]
        %v363 = vld [vmem:[%s272 + $0xa8] sm:$0xf]
        %v364 = vld [vmem:[%s272 + $0xac] sm:$0xf]
        %v365 = vld [vmem:[%s272 + $0xb0] sm:$0xf]
        %v366 = vld [vmem:[%s272 + $0xb4] sm:$0xf]
        %v367 = vld [vmem:[%s272 + $0xb8] sm:$0xf]
        %v368 = vld [vmem:[%s272 + $0xbc] sm:$0xf]
        %v369 = vld [vmem:[%s272 + $0xc0] sm:$0xf]
        %v370 = vld [vmem:[%s272 + $0xc4] sm:$0xf]
        %v371 = vld [vmem:[%s272 + $0xc8] sm:$0xf]
        %v372 = vld [vmem:[%s272 + $0xcc] sm:$0xf]
        %v373 = vld [vmem:[%s272 + $0xd0] sm:$0xf]
        %v374 = vld [vmem:[%s272 + $0xd4] sm:$0xf]
        %v375 = vld [vmem:[%s272 + $0xd8] sm:$0xf]
        %v376 = vld [vmem:[%s272 + $0xdc] sm:$0xf]
        %v377 = vld [vmem:[%s272 + $0xe0] sm:$0xf]
        %v378 = vld [vmem:[%s272 + $0xe4] sm:$0xf]
        %v379 = vld [vmem:[%s272 + $0xe8] sm:$0xf]
        %v380 = vld [vmem:[%s272 + $0xec] sm:$0xf]
        %v381 = vld [vmem:[%s272 + $0xf0] sm:$0xf]
        %v382 = vld [vmem:[%s272 + $0xf4] sm:$0xf]
        %v383 = vld [vmem:[%s272 + $0xf8] sm:$0xf]
        %v384 = vld [vmem:[%s272 + $0xfc] sm:$0xf]
        %v401 = vunpack.c.l.b16 %v305
        %v402 = vunpack.c.h.b16 %v305
        %v403 = vunpack.c.l.b16 %v306
        %v404 = vunpack.c.h.b16 %v306
        %v405 = vunpack.c.l.b16 %v307
        %v406 = vunpack.c.h.b16 %v307
        %v407 = vunpack.c.l.b16 %v308
        %v408 = vunpack.c.h.b16 %v308
        %v409 = vunpack.c.l.b16 %v309
        %v410 = vunpack.c.h.b16 %v309
        %v411 = vunpack.c.l.b16 %v310
        %v412 = vunpack.c.h.b16 %v310
        %v413 = vunpack.c.l.b16 %v311
        %v414 = vunpack.c.h.b16 %v311
        %v415 = vunpack.c.l.b16 %v312
        %v416 = vunpack.c.h.b16 %v312
        %v417 = vunpack.c.l.b16 %v313
        %v418 = vunpack.c.h.b16 %v313
        %v419 = vunpack.c.l.b16 %v314
        %v420 = vunpack.c.h.b16 %v314
        %v421 = vunpack.c.l.b16 %v315
        %v422 = vunpack.c.h.b16 %v315
        %v423 = vunpack.c.l.b16 %v316
        %v424 = vunpack.c.h.b16 %v316
        %v425 = vunpack.c.l.b16 %v317
        %v426 = vunpack.c.h.b16 %v317
        %v427 = vunpack.c.l.b16 %v318
        %v428 = vunpack.c.h.b16 %v318
        %v429 = vunpack.c.l.b16 %v319
        %v430 = vunpack.c.h.b16 %v319
        %v431 = vunpack.c.l.b16 %v320
        %v432 = vunpack.c.h.b16 %v320
        %v433 = vpack.c.b16 %v405, %v401
        %v434 = vpack.c.b16 %v406, %v402
        %v435 = vpack.c.b16 %v407, %v403
        %v436 = vpack.c.b16 %v408, %v404
        %v437 = vpack.c.b16 %v413, %v409
        %v438 = vpack.c.b16 %v414, %v410
        %v439 = vpack.c.b16 %v415, %v411
        %v440 = vpack.c.b16 %v416, %v412
        %v441 = vpack.c.b16 %v421, %v417
        %v442 = vpack.c.b16 %v422, %v418
        %v443 = vpack.c.b16 %v423, %v419
        %v444 = vpack.c.b16 %v424, %v420
        %v445 = vpack.c.b16 %v429, %v425
        %v446 = vpack.c.b16 %v430, %v426
        %v447 = vpack.c.b16 %v431, %v427
        %v448 = vpack.c.b16 %v432, %v428
        %v529 = vunpack.c.l.b16 %v321
        %v530 = vunpack.c.l.b16 %v322
        %v531 = vunpack.c.l.b16 %v323
        %v532 = vunpack.c.l.b16 %v324
        %v533 = vunpack.c.l.b16 %v325
        %v534 = vunpack.c.l.b16 %v326
        %v535 = vunpack.c.l.b16 %v327
        %v536 = vunpack.c.l.b16 %v328
        %v537 = vunpack.c.l.b16 %v329
        %v538 = vunpack.c.l.b16 %v330
        %v539 = vunpack.c.l.b16 %v331
        %v540 = vunpack.c.l.b16 %v332
        %v541 = vunpack.c.l.b16 %v333
        %v542 = vunpack.c.l.b16 %v334
        %v543 = vunpack.c.l.b16 %v335
        %v544 = vunpack.c.l.b16 %v336
        %v545 = vunpack.c.l.b16 %v337
        %v546 = vunpack.c.l.b16 %v338
        %v547 = vunpack.c.l.b16 %v339
        %v548 = vunpack.c.l.b16 %v340
        %v549 = vunpack.c.l.b16 %v341
        %v550 = vunpack.c.l.b16 %v342
        %v551 = vunpack.c.l.b16 %v343
        %v552 = vunpack.c.l.b16 %v344
        %v553 = vunpack.c.l.b16 %v345
        %v554 = vunpack.c.l.b16 %v346
        %v555 = vunpack.c.l.b16 %v347
        %v556 = vunpack.c.l.b16 %v348
        %v557 = vunpack.c.l.b16 %v349
        %v558 = vunpack.c.l.b16 %v350
        %v559 = vunpack.c.l.b16 %v351
        %v560 = vunpack.c.l.b16 %v352
        %v561 = vunpack.c.l.b16 %v353
        %v562 = vunpack.c.l.b16 %v354
        %v563 = vunpack.c.l.b16 %v355
        %v564 = vunpack.c.l.b16 %v356
        %v565 = vunpack.c.l.b16 %v357
        %v566 = vunpack.c.l.b16 %v358
        %v567 = vunpack.c.l.b16 %v359
        %v568 = vunpack.c.l.b16 %v360
        %v569 = vunpack.c.l.b16 %v361
        %v570 = vunpack.c.l.b16 %v362
        %v571 = vunpack.c.l.b16 %v363
        %v572 = vunpack.c.l.b16 %v364
        %v573 = vunpack.c.l.b16 %v365
        %v574 = vunpack.c.l.b16 %v366
        %v575 = vunpack.c.l.b16 %v367
        %v576 = vunpack.c.l.b16 %v368
        %v577 = vunpack.c.l.b16 %v369
        %v578 = vunpack.c.l.b16 %v370
        %v579 = vunpack.c.l.b16 %v371
        %v580 = vunpack.c.l.b16 %v372
        %v581 = vunpack.c.l.b16 %v373
        %v582 = vunpack.c.l.b16 %v374
        %v583 = vunpack.c.l.b16 %v375
        %v584 = vunpack.c.l.b16 %v376
        %v585 = vunpack.c.l.b16 %v377
        %v586 = vunpack.c.l.b16 %v378
        %v587 = vunpack.c.l.b16 %v379
        %v588 = vunpack.c.l.b16 %v380
        %v589 = vunpack.c.l.b16 %v381
        %v590 = vunpack.c.l.b16 %v382
        %v591 = vunpack.c.l.b16 %v383
        %v592 = vunpack.c.l.b16 %v384
        %v593 = vpack.c.b16 %v530, %v529
        %v594 = vpack.c.b16 %v532, %v531
        %v595 = vpack.c.b16 %v534, %v533
        %v596 = vpack.c.b16 %v536, %v535
        %v597 = vpack.c.b16 %v538, %v537
        %v598 = vpack.c.b16 %v540, %v539
        %v599 = vpack.c.b16 %v542, %v541
        %v600 = vpack.c.b16 %v544, %v543
        %v601 = vpack.c.b16 %v546, %v545
        %v602 = vpack.c.b16 %v548, %v547
        %v603 = vpack.c.b16 %v550, %v549
        %v604 = vpack.c.b16 %v552, %v551
        %v605 = vpack.c.b16 %v554, %v553
        %v606 = vpack.c.b16 %v556, %v555
        %v607 = vpack.c.b16 %v558, %v557
        %v608 = vpack.c.b16 %v560, %v559
        %v609 = vpack.c.b16 %v562, %v561
        %v610 = vpack.c.b16 %v564, %v563
        %v611 = vpack.c.b16 %v566, %v565
        %v612 = vpack.c.b16 %v568, %v567
        %v613 = vpack.c.b16 %v570, %v569
        %v614 = vpack.c.b16 %v572, %v571
        %v615 = vpack.c.b16 %v574, %v573
        %v616 = vpack.c.b16 %v576, %v575
        %v617 = vpack.c.b16 %v578, %v577
        %v618 = vpack.c.b16 %v580, %v579
        %v619 = vpack.c.b16 %v582, %v581
        %v620 = vpack.c.b16 %v584, %v583
        %v621 = vpack.c.b16 %v586, %v585
        %v622 = vpack.c.b16 %v588, %v587
        %v623 = vpack.c.b16 %v590, %v589
        %v624 = vpack.c.b16 %v592, %v591
        %657 = vmatprep.subr.bf16.mxu0 0
        %658 = vmatpush1.bf16.msra.mxu0 %v593
        %659 = vmatprep.subr.bf16.mxu0 0
        %660 = vmatpush1.bf16.msra.mxu0 %v594
        %661 = vmatprep.subr.bf16.mxu0 0
        %662 = vmatpush1.bf16.msra.mxu0 %v595
        %663 = vmatprep.subr.bf16.mxu0 0
        %664 = vmatpush1.bf16.msra.mxu0 %v596
        %665 = vmatprep.subr.bf16.mxu0 0
        %666 = vmatpush1.bf16.msra.mxu0 %v597
        %667 = vmatprep.subr.bf16.mxu0 0
        %668 = vmatpush1.bf16.msra.mxu0 %v598
        %669 = vmatprep.subr.bf16.mxu0 0
        %670 = vmatpush1.bf16.msra.mxu0 %v599
        %671 = vmatprep.subr.bf16.mxu0 0
        %672 = vmatpush1.bf16.msra.mxu0 %v600
        %673 = vmatprep.subr.bf16.mxu0 0
        %674 = vmatpush1.bf16.msra.mxu0 %v601
        %675 = vmatprep.subr.bf16.mxu0 0
        %676 = vmatpush1.bf16.msra.mxu0 %v602
        %677 = vmatprep.subr.bf16.mxu0 0
        %678 = vmatpush1.bf16.msra.mxu0 %v603
        %679 = vmatprep.subr.bf16.mxu0 0
        %680 = vmatpush1.bf16.msra.mxu0 %v604
        %681 = vmatprep.subr.bf16.mxu0 0
        %682 = vmatpush1.bf16.msra.mxu0 %v605
        %683 = vmatprep.subr.bf16.mxu0 0
        %684 = vmatpush1.bf16.msra.mxu0 %v606
        %685 = vmatprep.subr.bf16.mxu0 0
        %686 = vmatpush1.bf16.msra.mxu0 %v607
        %687 = vmatprep.subr.bf16.mxu0 0
        %688 = vmatpush1.bf16.msra.mxu0 %v608
        %689 = vmatprep.mubr.bf16.mxu0 %v434
        %690 = vmatmul.mubr.bf16.gmra.mrb[0].mxu0 %v433
        %v691 = vpop.f32.mrb[0].mxu0
        %v692 = vadd.f32 0.0, %v691
        %v693 = vpop.f32.mrb[0].mxu0
        %v694 = vpop.f32.mrb[0].mxu0
        %v695 = vadd.f32 0.0, %v694
        %v696 = vpop.f32.mrb[0].mxu0
        %697 = vmatprep.mubr.bf16.mxu0 %v438
        %698 = vmatmul.mubr.bf16.gmra.mrb[0].mxu0 %v437
        %v699 = vpop.f32.mrb[0].mxu0
        %v700 = vadd.f32 0.0, %v699
        %v701 = vpop.f32.mrb[0].mxu0
        %v702 = vpop.f32.mrb[0].mxu0
        %v703 = vadd.f32 0.0, %v702
        %v704 = vpop.f32.mrb[0].mxu0
        %705 = vmatprep.mubr.bf16.mxu0 %v442
        %706 = vmatmul.mubr.bf16.gmra.mrb[0].mxu0 %v441
        %v707 = vpop.f32.mrb[0].mxu0
        %v708 = vadd.f32 0.0, %v707
        %v709 = vpop.f32.mrb[0].mxu0
        %v710 = vpop.f32.mrb[0].mxu0
        %v711 = vadd.f32 0.0, %v710
        %v712 = vpop.f32.mrb[0].mxu0
        %713 = vmatprep.mubr.bf16.mxu0 %v446
        %714 = vmatmul.mubr.bf16.gmra.mrb[0].mxu0 %v445
        %v715 = vpop.f32.mrb[0].mxu0
        %v716 = vadd.f32 0.0, %v715
        %v717 = vpop.f32.mrb[0].mxu0
        %v718 = vpop.f32.mrb[0].mxu0
        %v719 = vadd.f32 0.0, %v718
        %v720 = vpop.f32.mrb[0].mxu0
        %721 = vdwg.mxu0
        %722 = vmatprep.subr.bf16.mxu0 0
        %723 = vmatpush1.bf16.msra.mxu0 %v609
        %724 = vmatprep.subr.bf16.mxu0 0
        %725 = vmatpush1.bf16.msra.mxu0 %v610
        %726 = vmatprep.subr.bf16.mxu0 0
        %727 = vmatpush1.bf16.msra.mxu0 %v611
        %728 = vmatprep.subr.bf16.mxu0 0
        %729 = vmatpush1.bf16.msra.mxu0 %v612
        %730 = vmatprep.subr.bf16.mxu0 0
        %731 = vmatpush1.bf16.msra.mxu0 %v613
        %732 = vmatprep.subr.bf16.mxu0 0
        %733 = vmatpush1.bf16.msra.mxu0 %v614
        %734 = vmatprep.subr.bf16.mxu0 0
        %735 = vmatpush1.bf16.msra.mxu0 %v615
        %736 = vmatprep.subr.bf16.mxu0 0
        %737 = vmatpush1.bf16.msra.mxu0 %v616
        %738 = vmatprep.subr.bf16.mxu0 0
        %739 = vmatpush1.bf16.msra.mxu0 %v617
        %740 = vmatprep.subr.bf16.mxu0 0
        %741 = vmatpush1.bf16.msra.mxu0 %v618
        %742 = vmatprep.subr.bf16.mxu0 0
        %743 = vmatpush1.bf16.msra.mxu0 %v619
        %744 = vmatprep.subr.bf16.mxu0 0
        %745 = vmatpush1.bf16.msra.mxu0 %v620
        %746 = vmatprep.subr.bf16.mxu0 0
        %747 = vmatpush1.bf16.msra.mxu0 %v621
        %748 = vmatprep.subr.bf16.mxu0 0
        %749 = vmatpush1.bf16.msra.mxu0 %v622
        %750 = vmatprep.subr.bf16.mxu0 0
        %751 = vmatpush1.bf16.msra.mxu0 %v623
        %752 = vmatprep.subr.bf16.mxu0 0
        %753 = vmatpush1.bf16.msra.mxu0 %v624
        %754 = vmatprep.mubr.bf16.mxu0 %v436
        %755 = vmatmul.mubr.bf16.gmra.mrb[0].mxu0 %v435
        %v756 = vpop.f32.mrb[0].mxu0
        %v757 = vadd.f32 %v692, %v756
        %v758 = vpop.f32.mrb[0].mxu0
        %v759 = vpop.f32.mrb[0].mxu0
        %v760 = vadd.f32 %v695, %v759
        %v761 = vpop.f32.mrb[0].mxu0
        %762 = vmatprep.mubr.bf16.mxu0 %v440
        %763 = vmatmul.mubr.bf16.gmra.mrb[0].mxu0 %v439
        %v764 = vpop.f32.mrb[0].mxu0
        %v765 = vadd.f32 %v700, %v764
        %v766 = vpop.f32.mrb[0].mxu0
        %v767 = vpop.f32.mrb[0].mxu0
        %v768 = vadd.f32 %v703, %v767
        %v769 = vpop.f32.mrb[0].mxu0
        %770 = vmatprep.mubr.bf16.mxu0 %v444
        %771 = vmatmul.mubr.bf16.gmra.mrb[0].mxu0 %v443
        %v772 = vpop.f32.mrb[0].mxu0
        %v773 = vadd.f32 %v708, %v772
        %v774 = vpop.f32.mrb[0].mxu0
        %v775 = vpop.f32.mrb[0].mxu0
        %v776 = vadd.f32 %v711, %v775
        %v777 = vpop.f32.mrb[0].mxu0
        %778 = vmatprep.mubr.bf16.mxu0 %v448
        %779 = vmatmul.mubr.bf16.gmra.mrb[0].mxu0 %v447
        %v780 = vpop.f32.mrb[0].mxu0
        %v781 = vadd.f32 %v716, %v780
        %v782 = vpop.f32.mrb[0].mxu0
        %v783 = vpop.f32.mrb[0].mxu0
        %v784 = vadd.f32 %v719, %v783
        %v785 = vpop.f32.mrb[0].mxu0
        %786 = vdwg.mxu0
        %v787 = vadd.f32 %v297, %v757
        %v788 = vadd.f32 %v298, %v760
        %v789 = vadd.f32 %v299, %v765
        %v790 = vadd.f32 %v300, %v768
        %v791 = vadd.f32 %v301, %v773
        %v792 = vadd.f32 %v302, %v776
        %v793 = vadd.f32 %v303, %v781
        %v794 = vadd.f32 %v304, %v784
        %795 = vst [vmem:[#allocation2] sm:$0xff] %v787
        %796 = vst [vmem:[#allocation2 + $0x8] sm:$0xff] %v788
        %797 = vst [vmem:[#allocation2 + $0x10] sm:$0xff] %v789
        %798 = vst [vmem:[#allocation2 + $0x18] sm:$0xff] %v790
        %799 = vst [vmem:[#allocation2 + $0x20] sm:$0xff] %v791
        %800 = vst [vmem:[#allocation2 + $0x28] sm:$0xff] %v792
        %801 = vst [vmem:[#allocation2 + $0x30] sm:$0xff] %v793
        %802 = vst [vmem:[#allocation2 + $0x38] sm:$0xff] %v794
        %p803 = scmp.eq.s32.totalorder %s21, 1
        // Predicated region
        $region60: #{discriminator2_forward.6} parent=50 // pred_check
          %p804 = pneg %p803
        $region61: #{discriminator2_forward.6} parent=50 // pred_check_branch
          %806 = sbr.rel (%p804) target = $region63
        $region62: #{discriminator2_forward.6} parent=50 // pred_region
          %v807 = vld [vmem:[#allocation2] sm:$0xff]
          %v808 = vld [vmem:[#allocation2 + $0x8] sm:$0xff]
          %v809 = vld [vmem:[#allocation2 + $0x10] sm:$0xff]
          %v810 = vld [vmem:[#allocation2 + $0x18] sm:$0xff]
          %v811 = vld [vmem:[#allocation2 + $0x20] sm:$0xff]
          %v812 = vld [vmem:[#allocation2 + $0x28] sm:$0xff]
          %v813 = vld [vmem:[#allocation2 + $0x30] sm:$0xff]
          %v814 = vld [vmem:[#allocation2 + $0x38] sm:$0xff]
          %v815 = vld [vmem:[%s2] sm:$0x1]
          %v817 = vlaneseq
          %v818 = vshrl.u32 %v817, 7
          %v819 = vsub.s32 0, %v818
          %v820 = vrot.slane %v815, %v819
          %v822 = vadd.f32 %v807, %v820
          %v823 = vadd.f32 %v808, %v820
          %v824 = vadd.f32 %v809, %v820
          %v825 = vadd.f32 %v810, %v820
          %v826 = vadd.f32 %v811, %v820
          %v827 = vadd.f32 %v812, %v820
          %v828 = vadd.f32 %v813, %v820
          %v829 = vadd.f32 %v814, %v820
          %v830 = vadd.f32 %v822, %v823
          %v831 = vadd.f32 %v830, %v824
          %v832 = vadd.f32 %v831, %v825
          %v833 = vadd.f32 %v832, %v826
          %v834 = vadd.f32 %v833, %v827
          %v835 = vadd.f32 %v834, %v828
          %v836 = vadd.f32 %v835, %v829
          %v837 = vrot.slane %v836, 4
          %v838 = vadd.f32 %v836, %v837
          %v839 = vrot.slane %v838, 2
          %v840 = vadd.f32 %v838, %v839
          %v841 = vrot.slane %v840, 1
          %v842 = vadd.f32 %v840, %v841
          %v843 = vmul.f32 %v822, %v822
          %v844 = vmul.f32 %v823, %v823
          %v845 = vmul.f32 %v824, %v824
          %v846 = vmul.f32 %v825, %v825
          %v847 = vmul.f32 %v826, %v826
          %v848 = vmul.f32 %v827, %v827
          %v849 = vmul.f32 %v828, %v828
          %v850 = vmul.f32 %v829, %v829
          %v851 = vadd.f32 %v843, %v844
          %v852 = vadd.f32 %v851, %v845
          %v853 = vadd.f32 %v852, %v846
          %v854 = vadd.f32 %v853, %v847
          %v855 = vadd.f32 %v854, %v848
          %v856 = vadd.f32 %v855, %v849
          %v857 = vadd.f32 %v856, %v850
          %v858 = vrot.slane %v857, 4
          %v859 = vadd.f32 %v857, %v858
          %v860 = vrot.slane %v859, 2
          %v861 = vadd.f32 %v859, %v860
          %v862 = vrot.slane %v861, 1
          %v863 = vadd.f32 %v861, %v862
          %v864 = vmul.f32 %v842, 0.015625
          %v865 = vmul.f32 %v863, 0.015625
          %v866 = vmul.f32 %v864, %v864
          %v867 = vsub.f32 %v865, %v866
          %v868 = vmax.f32 %v867, 0.0
          %v869 = vsub.f32 %v822, %v864
          %v870 = vsub.f32 %v823, %v864
          %v871 = vsub.f32 %v824, %v864
          %v872 = vsub.f32 %v825, %v864
          %v873 = vsub.f32 %v826, %v864
          %v874 = vsub.f32 %v827, %v864
          %v875 = vsub.f32 %v828, %v864
          %v876 = vsub.f32 %v829, %v864
          %v877 = vadd.f32 %v868, 1e-05
          %v878 = vrsqrt.pop %v877
          %v879 = vmul.f32 %v869, %v878
          %v880 = vmul.f32 %v870, %v878
          %v881 = vmul.f32 %v871, %v878
          %v882 = vmul.f32 %v872, %v878
          %v883 = vmul.f32 %v873, %v878
          %v884 = vmul.f32 %v874, %v878
          %v885 = vmul.f32 %v875, %v878
          %v886 = vmul.f32 %v876, %v878
          %vm887 = vcmp.ge.f32.partialorder %v879, 0.0
          %vm888 = vcmp.ge.f32.partialorder %v880, 0.0
          %vm889 = vcmp.ge.f32.partialorder %v881, 0.0
          %vm890 = vcmp.ge.f32.partialorder %v882, 0.0
          %vm891 = vcmp.ge.f32.partialorder %v883, 0.0
          %vm892 = vcmp.ge.f32.partialorder %v884, 0.0
          %vm893 = vcmp.ge.f32.partialorder %v885, 0.0
          %vm894 = vcmp.ge.f32.partialorder %v886, 0.0
          %v895 = vmul.f32 %v879, 0.2
          %v896 = vmul.f32 %v880, 0.2
          %v897 = vmul.f32 %v881, 0.2
          %v898 = vmul.f32 %v882, 0.2
          %v899 = vmul.f32 %v883, 0.2
          %v900 = vmul.f32 %v884, 0.2
          %v901 = vmul.f32 %v885, 0.2
          %v902 = vmul.f32 %v886, 0.2
          %v903 = vsel %vm887, %v879, %v895
          %v904 = vsel %vm888, %v880, %v896
          %v905 = vsel %vm889, %v881, %v897
          %v906 = vsel %vm890, %v882, %v898
          %v907 = vsel %vm891, %v883, %v899
          %v908 = vsel %vm892, %v884, %v900
          %v909 = vsel %vm893, %v885, %v901
          %v910 = vsel %vm894, %v886, %v902
          %v911 = vpack.c.bf16 %v904, %v903
          %v912 = vpack.c.bf16 %v906, %v905
          %v913 = vpack.c.bf16 %v908, %v907
          %v914 = vpack.c.bf16 %v910, %v909
          %v919 = vunpack.c.l.b16 %v911
          %v920 = vunpack.c.h.b16 %v911
          %v921 = vunpack.c.l.b16 %v912
          %v922 = vunpack.c.h.b16 %v912
          %v923 = vunpack.c.l.b16 %v913
          %v924 = vunpack.c.h.b16 %v913
          %v925 = vunpack.c.l.b16 %v914
          %v926 = vunpack.c.h.b16 %v914
          %v927 = vpack.c.b16 %v919, %v919
          %v928 = vpack.c.b16 %v920, %v920
          %v929 = vpack.c.b16 %v921, %v921
          %v930 = vpack.c.b16 %v922, %v922
          %v931 = vpack.c.b16 %v923, %v923
          %v932 = vpack.c.b16 %v924, %v924
          %v933 = vpack.c.b16 %v925, %v925
          %v934 = vpack.c.b16 %v926, %v926
          %943 = vst [vmem:[%s282] sm:$0xf] %v927
          %944 = vst [vmem:[%s282 + $0x4] sm:$0xf] %v928
          %945 = vst [vmem:[%s282 + $0x8] sm:$0xf] %v929
          %946 = vst [vmem:[%s282 + $0xc] sm:$0xf] %v930
          %947 = vst [vmem:[%s282 + $0x10] sm:$0xf] %v931
          %948 = vst [vmem:[%s282 + $0x14] sm:$0xf] %v932
          %949 = vst [vmem:[%s282 + $0x18] sm:$0xf] %v933
          %950 = vst [vmem:[%s282 + $0x1c] sm:$0xf] %v934
        $region63: #{discriminator2_forward.6} parent=50 // pred_fallthru
          _
        %s951 = smul.u32 8, %s20
        %p952 = scmp.lt.s32.totalorder %s19, 1
        %s953 = scalar_select %p952, %s19, 1
        %p954 = scmp.lt.s32.totalorder %s951, 7
        %s955 = scalar_select %p954, %s951, 7
        %s956 = smul.addr %s953, 8
        %s957 = sadd.s32 %s955, %s956
        %s958 = smul.addr %s957, 4
        %s959 = scalar_lea.vmem %s3, %s958
        // Predicated region
        $region64: #{discriminator2_forward.6} parent=50 // pred_check
          %p960 = pneg %p130
        $region65: #{discriminator2_forward.6} parent=50 // pred_check_branch
          %962 = sbr.rel (%p960) target = $region67
        $region66: #{discriminator2_forward.6} parent=50 // pred_region
          %s963 = smul.u32 8, %s20
        $region67: #{discriminator2_forward.6} parent=50 // pred_fallthru
          _
      $region51: #{discriminator2_forward.6} parent=5 // pred_fallthru
        _
      %p964 = scmp.le.s32.totalorder 2, %s9
      // Predicated region
      $region68: #{discriminator2_forward.6} parent=5 // pred_check
        %p965 = pneg %p964
      $region69: #{discriminator2_forward.6} parent=5 // pred_check_branch
        %967 = sbr.rel (%p965) target = $region71
      $region70: #{discriminator2_forward.6} parent=5 // pred_region
        %s968 = ssub.s32 %s9, 2
        // Predicated region
        $region72: #{discriminator2_forward.6} parent=70 // pred_check
          %p969 = pneg %p136
        $region73: #{discriminator2_forward.6} parent=70 // pred_check_branch
          %971 = sbr.rel (%p969) target = $region75
        $region74: #{discriminator2_forward.6} parent=70 // pred_region
          %s972 = smul.u32 8, %s23
          %p973 = scmp.lt.s32.totalorder %s22, 1
          %s974 = scalar_select %p973, %s22, 1
          %p975 = scmp.lt.s32.totalorder %s972, 7
          %s976 = scalar_select %p975, %s972, 7
          %s977 = smul.addr %s974, 8
          %s978 = sadd.s32 %s976, %s977
          %s979 = smul.addr %s978, 4
          %s980 = scalar_lea.vmem %s3, %s979
        $region75: #{discriminator2_forward.6} parent=70 // pred_fallthru
          _
      $region71: #{discriminator2_forward.6} parent=5 // pred_fallthru
        _
    $region6: #{discriminator2_forward.6} parent=1 // loop_footer
      %s13 = sadd.s32 1, %s9
    $region7: #{discriminator2_forward.6} parent=1 // loop_footer_branch
      %8 = sbr.rel target = $region3
    $region8: #{discriminator2_forward.6} parent=1 // loop_exit
      _

// kernel: custom-call.5
$region0: #{custom-call.5}
  %s0 = inlined_call_operand.hbm [shape: f32[2048], index: 0, kind: output, shape index: {}]

// kernel: discriminator2_forward.7
$region0: #{discriminator2_forward.7}
  #allocation0 [shape = 'u32[]', space=smem, size = 0x4, offset = 0x4, fixed_abs, tag = 'smem constant byte address 0x4 - core index']
  #allocation1 [shape = 'u32[144,128]{1,0:T(1,128)}', space=vmem, size = 0x12000, scoped, tag = 'internal scratch']
  #allocation2 [shape = 'f32[16,256]{1,0:T(8,128)}', space=vmem, size = 0x4000, scoped, tag = 'scratch operand']
  %s0 = inlined_call_operand.vmem [shape: bf16[2,16,2048], index: 0, kind: input, shape index: {}]
  %s1 = inlined_call_operand.vmem [shape: bf16[2048,256], index: 1, kind: input, shape index: {}]
  %s2 = inlined_call_operand.vmem [shape: f32[1,256], index: 2, kind: input, shape index: {}]
  %s3 = inlined_call_operand.vmem [shape: bf16[2,16,256], index: 3, kind: output, shape index: {}]
  %s4 = sld [smem:[#allocation0]]
  $region76: #{discriminator2_forward.7} parent=0
    _
  %s6 = ssub.s32 1, %s4
  %s7 = scalar_select 0, %s6, %s4
  $region1: #{discriminator2_forward.7} parent=0
    #allocation3 [shape = 'u8[32768]{0}', space=vmem, size = 0x8000, scoped, tag = 'input window, operand 0']
    loop: start=0, step=1, limit=10
    $region2: #{discriminator2_forward.7} parent=1 // loop_pre_header
      _
    $region3: #{discriminator2_forward.7} parent=1 // loop_header
      %s9 = sphi 0, %s13
      %p10 = scmp.ge.s32.totalorder %s9, 10
      %s16 = sphi 0, %s35
      %s17 = sphi 0, %s31
      %s18 = sphi 0, %s27
      %s19 = sphi 0, %s16
      %s20 = sphi 0, %s17
      %s21 = sphi 0, %s18
      %s22 = sphi 0, %s19
      %s23 = sphi 0, %s20
      %s24 = sphi 0, %s21
      %s42 = sphi 0, %s44
      %s45 = sphi 0, %s42
      %s46 = sphi 0, %s45
      %s62 = sphi 0, %s46
      %s68 = sphi 0, %s70
      %s71 = sphi 0, %s68
      %s72 = sphi 0, %s71
      %s88 = sphi 0, %s72
      %s92 = sphi 0, %s92
      %s94 = sphi 0, %s92
      %s95 = sphi 0, %s94
      %s109 = sphi 0, %s95
      %s117 = sphi 0, %s119
      %s120 = sphi 0, %s117
      %s121 = sphi 0, %s120
      %s137 = sphi 0, %s121
    $region4: #{discriminator2_forward.7} parent=1 // loop_header_branch
      %12 = sbr.rel (%p10) target = $region8
    $region5: #{discriminator2_forward.7} parent=1 // loop_body
      %s14 = ssub.s32 %s9, 1
      %s15 = ssub.s32 %s9, 2
      %s25 = sadd.s32 1, %s18
      %p26 = scmp.ge.s32.totalorder %s25, 4
      %s27 = scalar_select %p26, 0, %s25
      %s28 = sadd.s32 1, %s17
      %s29 = scalar_select %p26, %s28, %s17
      %p30 = scmp.ge.s32.totalorder %s29, 1
      %s31 = scalar_select %p30, 0, %s29
      %s32 = sadd.s32 1, %s16
      %s33 = scalar_select %p30, %s32, %s16
      %p34 = scmp.ge.s32.totalorder %s33, 2
      %s35 = scalar_select %p34, 0, %s33
      %s36 = ssub.s32 %s16, %s35
      %s37 = ssub.s32 %s17, %s31
      %s38 = sor.u32 %s36, %s37
      %s39 = ssub.s32 %s18, %s27
      %s40 = sor.u32 %s38, %s39
      %p41 = scmp.eq.s32.totalorder %s40, 0
      %s43 = sadd.s32 %s42, 1
      %s44 = scalar_select %p41, %s42, %s43
      %p47 = pneg %p41
      %p48 = scmp.eq.s32.totalorder %s9, 7
      %p49 = por %p47, %p48
      %p50 = scmp.ne.s32.totalorder %s42, %s45
      %p51 = scmp.eq.s32.totalorder %s9, 0
      %p52 = por %p50, %p51
      %p53 = scmp.ne.s32.totalorder %s42, %s45
      %p54 = scmp.eq.s32.totalorder %s14, 7
      %p55 = por %p53, %p54
      %p56 = scmp.ne.s32.totalorder %s45, %s46
      %p57 = scmp.eq.s32.totalorder %s14, 0
      %p58 = por %p56, %p57
      %p59 = scmp.ne.s32.totalorder %s45, %s46
      %p60 = scmp.eq.s32.totalorder %s15, 7
      %p61 = por %p59, %p60
      %p63 = scmp.ne.s32.totalorder %s46, %s62
      %p64 = scmp.eq.s32.totalorder %s15, 0
      %p65 = por %p63, %p64
      %s66 = ssub.s32 %s18, %s27
      %p67 = scmp.eq.s32.totalorder %s66, 0
      %s69 = sadd.s32 %s68, 1
      %s70 = scalar_select %p67, %s68, %s69
      %p73 = pneg %p67
      %p74 = scmp.eq.s32.totalorder %s9, 7
      %p75 = por %p73, %p74
      %p76 = scmp.ne.s32.totalorder %s68, %s71
      %p77 = scmp.eq.s32.totalorder %s9, 0
      %p78 = por %p76, %p77
      %p79 = scmp.ne.s32.totalorder %s68, %s71
      %p80 = scmp.eq.s32.totalorder %s14, 7
      %p81 = por %p79, %p80
      %p82 = scmp.ne.s32.totalorder %s71, %s72
      %p83 = scmp.eq.s32.totalorder %s14, 0
      %p84 = por %p82, %p83
      %p85 = scmp.ne.s32.totalorder %s71, %s72
      %p86 = scmp.eq.s32.totalorder %s15, 7
      %p87 = por %p85, %p86
      %p89 = scmp.ne.s32.totalorder %s72, %s88
      %p90 = scmp.eq.s32.totalorder %s15, 0
      %p91 = por %p89, %p90
      %s93 = sadd.s32 %s92, 1
      %p96 = scmp.eq.s32.totalorder %s9, 7
      %p97 = scmp.ne.s32.totalorder %s92, %s94
      %p98 = scmp.eq.s32.totalorder %s9, 0
      %p99 = por %p97, %p98
      %p100 = scmp.ne.s32.totalorder %s92, %s94
      %p101 = scmp.eq.s32.totalorder %s14, 7
      %p102 = por %p100, %p101
      %p103 = scmp.ne.s32.totalorder %s94, %s95
      %p104 = scmp.eq.s32.totalorder %s14, 0
      %p105 = por %p103, %p104
      %p106 = scmp.ne.s32.totalorder %s94, %s95
      %p107 = scmp.eq.s32.totalorder %s15, 7
      %p108 = por %p106, %p107
      %p110 = scmp.ne.s32.totalorder %s95, %s109
      %p111 = scmp.eq.s32.totalorder %s15, 0
      %p112 = por %p110, %p111
      %s113 = ssub.s32 %s16, %s35
      %s114 = ssub.s32 %s17, %s31
      %s115 = sor.u32 %s113, %s114
      %p116 = scmp.eq.s32.totalorder %s115, 0
      %s118 = sadd.s32 %s117, 1
      %s119 = scalar_select %p116, %s117, %s118
      %p122 = pneg %p116
      %p123 = scmp.eq.s32.totalorder %s9, 7
      %p124 = por %p122, %p123
      %p125 = scmp.ne.s32.totalorder %s117, %s120
      %p126 = scmp.eq.s32.totalorder %s9, 0
      %p127 = por %p125, %p126
      %p128 = scmp.ne.s32.totalorder %s117, %s120
      %p129 = scmp.eq.s32.totalorder %s14, 7
      %p130 = por %p128, %p129
      %p131 = scmp.ne.s32.totalorder %s120, %s121
      %p132 = scmp.eq.s32.totalorder %s14, 0
      %p133 = por %p131, %p132
      %p134 = scmp.ne.s32.totalorder %s120, %s121
      %p135 = scmp.eq.s32.totalorder %s15, 7
      %p136 = por %p134, %p135
      %p138 = scmp.ne.s32.totalorder %s121, %s137
      %p139 = scmp.eq.s32.totalorder %s15, 0
      %p140 = por %p138, %p139
      %p141 = scmp.le.s32.totalorder 1, %s9
      %p142 = scmp.lt.s32.totalorder %s9, 9
      %p143 = pnand %p141, %p142
      %p144 = pneg %p143
      // Predicated region
      $region9: #{discriminator2_forward.7} parent=5 // pred_check
        _
      $region10: #{discriminator2_forward.7} parent=5 // pred_check_branch
        %146 = sbr.rel (%p143) target = $region12
      $region11: #{discriminator2_forward.7} parent=5 // pred_region
        %s147 = ssub.s32 %s9, 1
        // Predicated region
        $region13: #{discriminator2_forward.7} parent=11 // pred_check
          %p148 = pneg %p105
        $region14: #{discriminator2_forward.7} parent=11 // pred_check_branch
          %150 = sbr.rel (%p148) target = $region16
        $region15: #{discriminator2_forward.7} parent=11 // pred_region
          _
        $region16: #{discriminator2_forward.7} parent=11 // pred_fallthru
          _
      $region12: #{discriminator2_forward.7} parent=5 // pred_fallthru
        _
      %p151 = scmp.lt.s32.totalorder %s9, 8
      // Predicated region
      $region17: #{discriminator2_forward.7} parent=5 // pred_check
        %p152 = pneg %p151
      $region18: #{discriminator2_forward.7} parent=5 // pred_check_branch
        %154 = sbr.rel (%p152) target = $region20
      $region19: #{discriminator2_forward.7} parent=5 // pred_region
        // Predicated region
        $region21: #{discriminator2_forward.7} parent=19 // pred_check
          %p155 = pneg %p52
        $region22: #{discriminator2_forward.7} parent=19 // pred_check_branch
          %157 = sbr.rel (%p155) target = $region24
        $region23: #{discriminator2_forward.7} parent=19 // pred_region
          %s158 = sand.u32 %s42, 1
          %s159 = sand.u32 %s42, 1
          %s160 = smul.addr %s159, 32
          %s161 = scalar_lea.vmem [#allocation3], %s160
          %s162 = smul.u32 2, %s17
          %s163 = smul.u32 4, %s18
          %s164 = smul.addr %s162, 16
          %s165 = sadd.s32 %s163, %s164
          %s166 = smul.addr %s16, 32
          %s167 = sadd.s32 %s165, %s166
          %s168 = smul.addr %s167, 4
          %s169 = scalar_lea.vmem %s0, %s168
          // Predicated region
          $region25: #{discriminator2_forward.7} parent=23 // pred_check
            _
          $region26: #{discriminator2_forward.7} parent=23 // pred_check_branch
            %171 = sbr.rel (0) target = $region28
          $region27: #{discriminator2_forward.7} parent=23 // pred_region
            // Predicated region
            $region29: #{discriminator2_forward.7} parent=27 // pred_check
              _
            $region30: #{discriminator2_forward.7} parent=27 // pred_check_branch
              %173 = sbr.rel (0) target = $region32
            $region31: #{discriminator2_forward.7} parent=27 // pred_region
              loop: start=0, step=1, limit=1
              $region33: #{discriminator2_forward.7} parent=31 // loop_pre_header
                _
              $region34: #{discriminator2_forward.7} parent=31 // loop_header
                %s175 = sphi 0, %s179
                %p176 = scmp.ge.s32.totalorder %s175, 1
                %s180 = sphi %s169, %s169
                %s181 = sphi %s161, %s161
              $region35: #{discriminator2_forward.7} parent=31 // loop_header_branch
                %178 = sbr.rel (%p176) target = $region39
              $region36: #{discriminator2_forward.7} parent=31 // loop_body
                %v182 = vld [vmem:[%s180] sm:$0xff]
                %183 = vst [vmem:[%s181] sm:$0xff] %v182
                %v184 = vld [vmem:[%s180 + $0x8] sm:$0xff]
                %185 = vst [vmem:[%s181 + $0x8] sm:$0xff] %v184
                %v186 = vld [vmem:[%s180 + $0x40] sm:$0xff]
                %187 = vst [vmem:[%s181 + $0x10] sm:$0xff] %v186
                %v188 = vld [vmem:[%s180 + $0x48] sm:$0xff]
                %189 = vst [vmem:[%s181 + $0x18] sm:$0xff] %v188
              $region37: #{discriminator2_forward.7} parent=31 // loop_footer
                %s179 = sadd.s32 1, %s175
              $region38: #{discriminator2_forward.7} parent=31 // loop_footer_branch
                %174 = sbr.rel target = $region34
              $region39: #{discriminator2_forward.7} parent=31 // loop_exit
                _
            $region32: #{discriminator2_forward.7} parent=27 // pred_fallthru
              _
            // Predicated region
            $region40: #{discriminator2_forward.7} parent=27 // pred_check
              _
            $region41: #{discriminator2_forward.7} parent=27 // pred_check_branch
              %191 = sbr.rel target = $region43
            $region42: #{discriminator2_forward.7} parent=27 // pred_region
              _
            $region43: #{discriminator2_forward.7} parent=27 // pred_fallthru
              _
          $region28: #{discriminator2_forward.7} parent=23 // pred_fallthru
            _
          %192 = vnop
        $region24: #{discriminator2_forward.7} parent=19 // pred_fallthru
          _
        // Predicated region
        $region44: #{discriminator2_forward.7} parent=19 // pred_check
          %p193 = pneg %p78
        $region45: #{discriminator2_forward.7} parent=19 // pred_check_branch
          %195 = sbr.rel (%p193) target = $region47
        $region46: #{discriminator2_forward.7} parent=19 // pred_region
          %s196 = smul.u32 64, %s18
          %p197 = scmp.lt.s32.totalorder %s196, 255
          %s198 = scalar_select %p197, %s196, 255
          %s199 = smul.addr %s198, 2
          %s200 = smul.addr %s199, 4
          %s201 = scalar_lea.vmem %s1, %s200
          %s202 = smul.u32 64, %s18
        $region47: #{discriminator2_forward.7} parent=19 // pred_fallthru
          _
      $region20: #{discriminator2_forward.7} parent=5 // pred_fallthru
        _
      %p203 = scmp.le.s32.totalorder 1, %s9
      %p204 = scmp.lt.s32.totalorder %s9, 9
      %p205 = pnand %p203, %p204
      %p206 = pneg %p205
      // Predicated region
      $region48: #{discriminator2_forward.7} parent=5 // pred_check
        _
      $region49: #{discriminator2_forward.7} parent=5 // pred_check_branch
        %208 = sbr.rel (%p205) target = $region51
      $region50: #{discriminator2_forward.7} parent=5 // pred_region
        %s209 = ssub.s32 %s9, 1
        %s210 = sand.u32 %s45, 1
        %s211 = sand.u32 %s45, 1
        %s212 = smul.addr %s211, 32
        %s213 = scalar_lea.vmem [#allocation3], %s212
        // Predicated region
        $region52: #{discriminator2_forward.7} parent=50 // pred_check
          %p214 = pneg %p58
        $region53: #{discriminator2_forward.7} parent=50 // pred_check_branch
          %216 = sbr.rel (%p214) target = $region55
        $region54: #{discriminator2_forward.7} parent=50 // pred_region
          _
        $region55: #{discriminator2_forward.7} parent=50 // pred_fallthru
          _
        %s217 = sand.u32 %s45, 1
        %s218 = sand.u32 %s45, 1
        %s219 = smul.addr %s218, 32
        %s220 = scalar_lea.vmem [#allocation3], %s219
        %p221 = pneg %p58
        %p222 = pneg %p55
        %s223 = smul.u32 64, %s21
        %p224 = scmp.lt.s32.totalorder %s223, 255
        %s225 = scalar_select %p224, %s223, 255
        %s226 = smul.addr %s225, 2
        %s227 = smul.addr %s226, 4
        %s228 = scalar_lea.vmem %s1, %s227
        %p229 = pneg %p84
        %p230 = pneg %p81
        %p231 = pneg %p105
        %p232 = pneg %p102
        %p233 = pneg %p133
        %p234 = pneg %p130
        %s235 = smul.u32 2, %s20
        %p236 = scmp.lt.s32.totalorder %s19, 1
        %s237 = scalar_select %p236, %s19, 1
        %p238 = scmp.lt.s32.totalorder %s235, 1
        %s239 = scalar_select %p238, %s235, 1
        %s240 = smul.addr %s239, 2
        %s241 = smul.addr %s237, 4
        %s242 = sadd.s32 %s240, %s241
        %s243 = smul.addr %s242, 4
        %s244 = scalar_lea.vmem %s3, %s243
        %s245 = smul.u32 2, %s20
        %s246 = smul.u32 4, %s21
        %s247 = smul.u32 64, %s21
        %p248 = scmp.lt.s32.totalorder %s247, 255
        %s249 = scalar_select %p248, %s247, 255
        %s250 = smul.addr %s249, 2
        %s251 = smul.addr %s250, 4
        %s252 = scalar_lea.vmem %s1, %s251
        %s253 = smul.u32 64, %s21
        %s254 = smul.u32 2, %s20
        %p255 = scmp.lt.s32.totalorder %s19, 1
        %s256 = scalar_select %p255, %s19, 1
        %p257 = scmp.lt.s32.totalorder %s254, 1
        %s258 = scalar_select %p257, %s254, 1
        %s259 = smul.addr %s258, 2
        %s260 = smul.addr %s256, 4
        %s261 = sadd.s32 %s259, %s260
        %s262 = smul.addr %s261, 4
        %s263 = scalar_lea.vmem %s3, %s262
        %s264 = smul.u32 2, %s20
        %p265 = scmp.eq.s32.totalorder %s21, 0
        // Predicated region
        $region56: #{discriminator2_forward.7} parent=50 // pred_check
          %p266 = pneg %p265
        $region57: #{discriminator2_forward.7} parent=50 // pred_check_branch
          %268 = sbr.rel (%p266) target = $region59
        $region58: #{discriminator2_forward.7} parent=50 // pred_region
          %269 = vst [vmem:[#allocation2] sm:$0xff] 0.0
          %270 = vst [vmem:[#allocation2 + $0x8] sm:$0xff] 0.0
          %271 = vst [vmem:[#allocation2 + $0x10] sm:$0xff] 0.0
          %272 = vst [vmem:[#allocation2 + $0x18] sm:$0xff] 0.0
        $region59: #{discriminator2_forward.7} parent=50 // pred_fallthru
          _
        %v273 = vld [vmem:[#allocation2] sm:$0xff]
        %v274 = vld [vmem:[#allocation2 + $0x8] sm:$0xff]
        %v275 = vld [vmem:[#allocation2 + $0x10] sm:$0xff]
        %v276 = vld [vmem:[#allocation2 + $0x18] sm:$0xff]
        %v277 = vld [vmem:[%s213] sm:$0xff]
        %v278 = vld [vmem:[%s213 + $0x8] sm:$0xff]
        %v279 = vld [vmem:[%s213 + $0x10] sm:$0xff]
        %v280 = vld [vmem:[%s213 + $0x18] sm:$0xff]
        %v281 = vld [vmem:[%s252] sm:$0xff]
        %v282 = vld [vmem:[%s252 + $0x8] sm:$0xff]
        %v283 = vld [vmem:[%s252 + $0x10] sm:$0xff]
        %v284 = vld [vmem:[%s252 + $0x18] sm:$0xff]
        %v285 = vld [vmem:[%s252 + $0x20] sm:$0xff]
        %v286 = vld [vmem:[%s252 + $0x28] sm:$0xff]
        %v287 = vld [vmem:[%s252 + $0x30] sm:$0xff]
        %v288 = vld [vmem:[%s252 + $0x38] sm:$0xff]
        %v289 = vld [vmem:[%s252 + $0x40] sm:$0xff]
        %v290 = vld [vmem:[%s252 + $0x48] sm:$0xff]
        %v291 = vld [vmem:[%s252 + $0x50] sm:$0xff]
        %v292 = vld [vmem:[%s252 + $0x58] sm:$0xff]
        %v293 = vld [vmem:[%s252 + $0x60] sm:$0xff]
        %v294 = vld [vmem:[%s252 + $0x68] sm:$0xff]
        %v295 = vld [vmem:[%s252 + $0x70] sm:$0xff]
        %v296 = vld [vmem:[%s252 + $0x78] sm:$0xff]
        %v297 = vld [vmem:[%s252 + $0x80] sm:$0xff]
        %v298 = vld [vmem:[%s252 + $0x88] sm:$0xff]
        %v299 = vld [vmem:[%s252 + $0x90] sm:$0xff]
        %v300 = vld [vmem:[%s252 + $0x98] sm:$0xff]
        %v301 = vld [vmem:[%s252 + $0xa0] sm:$0xff]
        %v302 = vld [vmem:[%s252 + $0xa8] sm:$0xff]
        %v303 = vld [vmem:[%s252 + $0xb0] sm:$0xff]
        %v304 = vld [vmem:[%s252 + $0xb8] sm:$0xff]
        %v305 = vld [vmem:[%s252 + $0xc0] sm:$0xff]
        %v306 = vld [vmem:[%s252 + $0xc8] sm:$0xff]
        %v307 = vld [vmem:[%s252 + $0xd0] sm:$0xff]
        %v308 = vld [vmem:[%s252 + $0xd8] sm:$0xff]
        %v309 = vld [vmem:[%s252 + $0xe0] sm:$0xff]
        %v310 = vld [vmem:[%s252 + $0xe8] sm:$0xff]
        %v311 = vld [vmem:[%s252 + $0xf0] sm:$0xff]
        %v312 = vld [vmem:[%s252 + $0xf8] sm:$0xff]
        %v313 = vld [vmem:[%s252 + $0x100] sm:$0xff]
        %v314 = vld [vmem:[%s252 + $0x108] sm:$0xff]
        %v315 = vld [vmem:[%s252 + $0x110] sm:$0xff]
        %v316 = vld [vmem:[%s252 + $0x118] sm:$0xff]
        %v317 = vld [vmem:[%s252 + $0x120] sm:$0xff]
        %v318 = vld [vmem:[%s252 + $0x128] sm:$0xff]
        %v319 = vld [vmem:[%s252 + $0x130] sm:$0xff]
        %v320 = vld [vmem:[%s252 + $0x138] sm:$0xff]
        %v321 = vld [vmem:[%s252 + $0x140] sm:$0xff]
        %v322 = vld [vmem:[%s252 + $0x148] sm:$0xff]
        %v323 = vld [vmem:[%s252 + $0x150] sm:$0xff]
        %v324 = vld [vmem:[%s252 + $0x158] sm:$0xff]
        %v325 = vld [vmem:[%s252 + $0x160] sm:$0xff]
        %v326 = vld [vmem:[%s252 + $0x168] sm:$0xff]
        %v327 = vld [vmem:[%s252 + $0x170] sm:$0xff]
        %v328 = vld [vmem:[%s252 + $0x178] sm:$0xff]
        %v329 = vld [vmem:[%s252 + $0x180] sm:$0xff]
        %v330 = vld [vmem:[%s252 + $0x188] sm:$0xff]
        %v331 = vld [vmem:[%s252 + $0x190] sm:$0xff]
        %v332 = vld [vmem:[%s252 + $0x198] sm:$0xff]
        %v333 = vld [vmem:[%s252 + $0x1a0] sm:$0xff]
        %v334 = vld [vmem:[%s252 + $0x1a8] sm:$0xff]
        %v335 = vld [vmem:[%s252 + $0x1b0] sm:$0xff]
        %v336 = vld [vmem:[%s252 + $0x1b8] sm:$0xff]
        %v337 = vld [vmem:[%s252 + $0x1c0] sm:$0xff]
        %v338 = vld [vmem:[%s252 + $0x1c8] sm:$0xff]
        %v339 = vld [vmem:[%s252 + $0x1d0] sm:$0xff]
        %v340 = vld [vmem:[%s252 + $0x1d8] sm:$0xff]
        %v341 = vld [vmem:[%s252 + $0x1e0] sm:$0xff]
        %v342 = vld [vmem:[%s252 + $0x1e8] sm:$0xff]
        %v343 = vld [vmem:[%s252 + $0x1f0] sm:$0xff]
        %v344 = vld [vmem:[%s252 + $0x1f8] sm:$0xff]
        %v349 = vunpack.c.l.b16 %v277
        %v350 = vunpack.c.h.b16 %v277
        %v351 = vunpack.c.l.b16 %v278
        %v352 = vunpack.c.h.b16 %v278
        %v353 = vunpack.c.l.b16 %v279
        %v354 = vunpack.c.h.b16 %v279
        %v355 = vunpack.c.l.b16 %v280
        %v356 = vunpack.c.h.b16 %v280
        %v357 = vpack.c.b16 %v353, %v349
        %v358 = vpack.c.b16 %v354, %v350
        %v359 = vpack.c.b16 %v355, %v351
        %v360 = vpack.c.b16 %v356, %v352
        %v429 = vunpack.c.l.b16 %v281
        %v430 = vunpack.c.h.b16 %v281
        %v431 = vunpack.c.l.b16 %v282
        %v432 = vunpack.c.h.b16 %v282
        %v433 = vunpack.c.l.b16 %v283
        %v434 = vunpack.c.h.b16 %v283
        %v435 = vunpack.c.l.b16 %v284
        %v436 = vunpack.c.h.b16 %v284
        %v437 = vunpack.c.l.b16 %v285
        %v438 = vunpack.c.h.b16 %v285
        %v439 = vunpack.c.l.b16 %v286
        %v440 = vunpack.c.h.b16 %v286
        %v441 = vunpack.c.l.b16 %v287
        %v442 = vunpack.c.h.b16 %v287
        %v443 = vunpack.c.l.b16 %v288
        %v444 = vunpack.c.h.b16 %v288
        %v445 = vunpack.c.l.b16 %v289
        %v446 = vunpack.c.h.b16 %v289
        %v447 = vunpack.c.l.b16 %v290
        %v448 = vunpack.c.h.b16 %v290
        %v449 = vunpack.c.l.b16 %v291
        %v450 = vunpack.c.h.b16 %v291
        %v451 = vunpack.c.l.b16 %v292
        %v452 = vunpack.c.h.b16 %v292
        %v453 = vunpack.c.l.b16 %v293
        %v454 = vunpack.c.h.b16 %v293
        %v455 = vunpack.c.l.b16 %v294
        %v456 = vunpack.c.h.b16 %v294
        %v457 = vunpack.c.l.b16 %v295
        %v458 = vunpack.c.h.b16 %v295
        %v459 = vunpack.c.l.b16 %v296
        %v460 = vunpack.c.h.b16 %v296
        %v461 = vunpack.c.l.b16 %v297
        %v462 = vunpack.c.h.b16 %v297
        %v463 = vunpack.c.l.b16 %v298
        %v464 = vunpack.c.h.b16 %v298
        %v465 = vunpack.c.l.b16 %v299
        %v466 = vunpack.c.h.b16 %v299
        %v467 = vunpack.c.l.b16 %v300
        %v468 = vunpack.c.h.b16 %v300
        %v469 = vunpack.c.l.b16 %v301
        %v470 = vunpack.c.h.b16 %v301
        %v471 = vunpack.c.l.b16 %v302
        %v472 = vunpack.c.h.b16 %v302
        %v473 = vunpack.c.l.b16 %v303
        %v474 = vunpack.c.h.b16 %v303
        %v475 = vunpack.c.l.b16 %v304
        %v476 = vunpack.c.h.b16 %v304
        %v477 = vunpack.c.l.b16 %v305
        %v478 = vunpack.c.h.b16 %v305
        %v479 = vunpack.c.l.b16 %v306
        %v480 = vunpack.c.h.b16 %v306
        %v481 = vunpack.c.l.b16 %v307
        %v482 = vunpack.c.h.b16 %v307
        %v483 = vunpack.c.l.b16 %v308
        %v484 = vunpack.c.h.b16 %v308
        %v485 = vunpack.c.l.b16 %v309
        %v486 = vunpack.c.h.b16 %v309
        %v487 = vunpack.c.l.b16 %v310
        %v488 = vunpack.c.h.b16 %v310
        %v489 = vunpack.c.l.b16 %v311
        %v490 = vunpack.c.h.b16 %v311
        %v491 = vunpack.c.l.b16 %v312
        %v492 = vunpack.c.h.b16 %v312
        %v493 = vunpack.c.l.b16 %v313
        %v494 = vunpack.c.h.b16 %v313
        %v495 = vunpack.c.l.b16 %v314
        %v496 = vunpack.c.h.b16 %v314
        %v497 = vunpack.c.l.b16 %v315
        %v498 = vunpack.c.h.b16 %v315
        %v499 = vunpack.c.l.b16 %v316
        %v500 = vunpack.c.h.b16 %v316
        %v501 = vunpack.c.l.b16 %v317
        %v502 = vunpack.c.h.b16 %v317
        %v503 = vunpack.c.l.b16 %v318
        %v504 = vunpack.c.h.b16 %v318
        %v505 = vunpack.c.l.b16 %v319
        %v506 = vunpack.c.h.b16 %v319
        %v507 = vunpack.c.l.b16 %v320
        %v508 = vunpack.c.h.b16 %v320
        %v509 = vunpack.c.l.b16 %v321
        %v510 = vunpack.c.h.b16 %v321
        %v511 = vunpack.c.l.b16 %v322
        %v512 = vunpack.c.h.b16 %v322
        %v513 = vunpack.c.l.b16 %v323
        %v514 = vunpack.c.h.b16 %v323
        %v515 = vunpack.c.l.b16 %v324
        %v516 = vunpack.c.h.b16 %v324
        %v517 = vunpack.c.l.b16 %v325
        %v518 = vunpack.c.h.b16 %v325
        %v519 = vunpack.c.l.b16 %v326
        %v520 = vunpack.c.h.b16 %v326
        %v521 = vunpack.c.l.b16 %v327
        %v522 = vunpack.c.h.b16 %v327
        %v523 = vunpack.c.l.b16 %v328
        %v524 = vunpack.c.h.b16 %v328
        %v525 = vunpack.c.l.b16 %v329
        %v526 = vunpack.c.h.b16 %v329
        %v527 = vunpack.c.l.b16 %v330
        %v528 = vunpack.c.h.b16 %v330
        %v529 = vunpack.c.l.b16 %v331
        %v530 = vunpack.c.h.b16 %v331
        %v531 = vunpack.c.l.b16 %v332
        %v532 = vunpack.c.h.b16 %v332
        %v533 = vunpack.c.l.b16 %v333
        %v534 = vunpack.c.h.b16 %v333
        %v535 = vunpack.c.l.b16 %v334
        %v536 = vunpack.c.h.b16 %v334
        %v537 = vunpack.c.l.b16 %v335
        %v538 = vunpack.c.h.b16 %v335
        %v539 = vunpack.c.l.b16 %v336
        %v540 = vunpack.c.h.b16 %v336
        %v541 = vunpack.c.l.b16 %v337
        %v542 = vunpack.c.h.b16 %v337
        %v543 = vunpack.c.l.b16 %v338
        %v544 = vunpack.c.h.b16 %v338
        %v545 = vunpack.c.l.b16 %v339
        %v546 = vunpack.c.h.b16 %v339
        %v547 = vunpack.c.l.b16 %v340
        %v548 = vunpack.c.h.b16 %v340
        %v549 = vunpack.c.l.b16 %v341
        %v550 = vunpack.c.h.b16 %v341
        %v551 = vunpack.c.l.b16 %v342
        %v552 = vunpack.c.h.b16 %v342
        %v553 = vunpack.c.l.b16 %v343
        %v554 = vunpack.c.h.b16 %v343
        %v555 = vunpack.c.l.b16 %v344
        %v556 = vunpack.c.h.b16 %v344
        %v557 = vpack.c.b16 %v431, %v429
        %v558 = vpack.c.b16 %v432, %v430
        %v559 = vpack.c.b16 %v435, %v433
        %v560 = vpack.c.b16 %v436, %v434
        %v561 = vpack.c.b16 %v439, %v437
        %v562 = vpack.c.b16 %v440, %v438
        %v563 = vpack.c.b16 %v443, %v441
        %v564 = vpack.c.b16 %v444, %v442
        %v565 = vpack.c.b16 %v447, %v445
        %v566 = vpack.c.b16 %v448, %v446
        %v567 = vpack.c.b16 %v451, %v449
        %v568 = vpack.c.b16 %v452, %v450
        %v569 = vpack.c.b16 %v455, %v453
        %v570 = vpack.c.b16 %v456, %v454
        %v571 = vpack.c.b16 %v459, %v457
        %v572 = vpack.c.b16 %v460, %v458
        %v573 = vpack.c.b16 %v463, %v461
        %v574 = vpack.c.b16 %v464, %v462
        %v575 = vpack.c.b16 %v467, %v465
        %v576 = vpack.c.b16 %v468, %v466
        %v577 = vpack.c.b16 %v471, %v469
        %v578 = vpack.c.b16 %v472, %v470
        %v579 = vpack.c.b16 %v475, %v473
        %v580 = vpack.c.b16 %v476, %v474
        %v581 = vpack.c.b16 %v479, %v477
        %v582 = vpack.c.b16 %v480, %v478
        %v583 = vpack.c.b16 %v483, %v481
        %v584 = vpack.c.b16 %v484, %v482
        %v585 = vpack.c.b16 %v487, %v485
        %v586 = vpack.c.b16 %v488, %v486
        %v587 = vpack.c.b16 %v491, %v489
        %v588 = vpack.c.b16 %v492, %v490
        %v589 = vpack.c.b16 %v495, %v493
        %v590 = vpack.c.b16 %v496, %v494
        %v591 = vpack.c.b16 %v499, %v497
        %v592 = vpack.c.b16 %v500, %v498
        %v593 = vpack.c.b16 %v503, %v501
        %v594 = vpack.c.b16 %v504, %v502
        %v595 = vpack.c.b16 %v507, %v505
        %v596 = vpack.c.b16 %v508, %v506
        %v597 = vpack.c.b16 %v511, %v509
        %v598 = vpack.c.b16 %v512, %v510
        %v599 = vpack.c.b16 %v515, %v513
        %v600 = vpack.c.b16 %v516, %v514
        %v601 = vpack.c.b16 %v519, %v517
        %v602 = vpack.c.b16 %v520, %v518
        %v603 = vpack.c.b16 %v523, %v521
        %v604 = vpack.c.b16 %v524, %v522
        %v605 = vpack.c.b16 %v527, %v525
        %v606 = vpack.c.b16 %v528, %v526
        %v607 = vpack.c.b16 %v531, %v529
        %v608 = vpack.c.b16 %v532, %v530
        %v609 = vpack.c.b16 %v535, %v533
        %v610 = vpack.c.b16 %v536, %v534
        %v611 = vpack.c.b16 %v539, %v537
        %v612 = vpack.c.b16 %v540, %v538
        %v613 = vpack.c.b16 %v543, %v541
        %v614 = vpack.c.b16 %v544, %v542
        %v615 = vpack.c.b16 %v547, %v545
        %v616 = vpack.c.b16 %v548, %v546
        %v617 = vpack.c.b16 %v551, %v549
        %v618 = vpack.c.b16 %v552, %v550
        %v619 = vpack.c.b16 %v555, %v553
        %v620 = vpack.c.b16 %v556, %v554
        %685 = vmatprep.subr.bf16.mxu0 %v558
        %686 = vmatpush1.bf16.msra.mxu0 %v557
        %687 = vmatprep.subr.bf16.mxu0 %v560
        %688 = vmatpush1.bf16.msra.mxu0 %v559
        %689 = vmatprep.subr.bf16.mxu0 %v562
        %690 = vmatpush1.bf16.msra.mxu0 %v561
        %691 = vmatprep.subr.bf16.mxu0 %v564
        %692 = vmatpush1.bf16.msra.mxu0 %v563
        %693 = vmatprep.subr.bf16.mxu0 %v566
        %694 = vmatpush1.bf16.msra.mxu0 %v565
        %695 = vmatprep.subr.bf16.mxu0 %v568
        %696 = vmatpush1.bf16.msra.mxu0 %v567
        %697 = vmatprep.subr.bf16.mxu0 %v570
        %698 = vmatpush1.bf16.msra.mxu0 %v569
        %699 = vmatprep.subr.bf16.mxu0 %v572
        %700 = vmatpush1.bf16.msra.mxu0 %v571
        %701 = vmatprep.subr.bf16.mxu0 %v574
        %702 = vmatpush1.bf16.msra.mxu0 %v573
        %703 = vmatprep.subr.bf16.mxu0 %v576
        %704 = vmatpush1.bf16.msra.mxu0 %v575
        %705 = vmatprep.subr.bf16.mxu0 %v578
        %706 = vmatpush1.bf16.msra.mxu0 %v577
        %707 = vmatprep.subr.bf16.mxu0 %v580
        %708 = vmatpush1.bf16.msra.mxu0 %v579
        %709 = vmatprep.subr.bf16.mxu0 %v582
        %710 = vmatpush1.bf16.msra.mxu0 %v581
        %711 = vmatprep.subr.bf16.mxu0 %v584
        %712 = vmatpush1.bf16.msra.mxu0 %v583
        %713 = vmatprep.subr.bf16.mxu0 %v586
        %714 = vmatpush1.bf16.msra.mxu0 %v585
        %715 = vmatprep.subr.bf16.mxu0 %v588
        %716 = vmatpush1.bf16.msra.mxu0 %v587
        %717 = vmatprep.mubr.bf16.mxu0 %v358
        %718 = vmatmul.mubr.bf16.gmra.mrb[0].mxu0 %v357
        %v719 = vpop.f32.mrb[0].mxu0
        %v720 = vadd.f32 0.0, %v719
        %v721 = vpop.f32.mrb[0].mxu0
        %v722 = vadd.f32 0.0, %v721
        %v723 = vpop.f32.mrb[0].mxu0
        %v724 = vadd.f32 0.0, %v723
        %v725 = vpop.f32.mrb[0].mxu0
        %v726 = vadd.f32 0.0, %v725
        %727 = vdwg.mxu0
        %728 = vmatprep.subr.bf16.mxu0 %v590
        %729 = vmatpush1.bf16.msra.mxu0 %v589
        %730 = vmatprep.subr.bf16.mxu0 %v592
        %731 = vmatpush1.bf16.msra.mxu0 %v591
        %732 = vmatprep.subr.bf16.mxu0 %v594
        %733 = vmatpush1.bf16.msra.mxu0 %v593
        %734 = vmatprep.subr.bf16.mxu0 %v596
        %735 = vmatpush1.bf16.msra.mxu0 %v595
        %736 = vmatprep.subr.bf16.mxu0 %v598
        %737 = vmatpush1.bf16.msra.mxu0 %v597
        %738 = vmatprep.subr.bf16.mxu0 %v600
        %739 = vmatpush1.bf16.msra.mxu0 %v599
        %740 = vmatprep.subr.bf16.mxu0 %v602
        %741 = vmatpush1.bf16.msra.mxu0 %v601
        %742 = vmatprep.subr.bf16.mxu0 %v604
        %743 = vmatpush1.bf16.msra.mxu0 %v603
        %744 = vmatprep.subr.bf16.mxu0 %v606
        %745 = vmatpush1.bf16.msra.mxu0 %v605
        %746 = vmatprep.subr.bf16.mxu0 %v608
        %747 = vmatpush1.bf16.msra.mxu0 %v607
        %748 = vmatprep.subr.bf16.mxu0 %v610
        %749 = vmatpush1.bf16.msra.mxu0 %v609
        %750 = vmatprep.subr.bf16.mxu0 %v612
        %751 = vmatpush1.bf16.msra.mxu0 %v611
        %752 = vmatprep.subr.bf16.mxu0 %v614
        %753 = vmatpush1.bf16.msra.mxu0 %v613
        %754 = vmatprep.subr.bf16.mxu0 %v616
        %755 = vmatpush1.bf16.msra.mxu0 %v615
        %756 = vmatprep.subr.bf16.mxu0 %v618
        %757 = vmatpush1.bf16.msra.mxu0 %v617
        %758 = vmatprep.subr.bf16.mxu0 %v620
        %759 = vmatpush1.bf16.msra.mxu0 %v619
        %760 = vmatprep.mubr.bf16.mxu0 %v360
        %761 = vmatmul.mubr.bf16.gmra.mrb[0].mxu0 %v359
        %v762 = vpop.f32.mrb[0].mxu0
        %v763 = vadd.f32 %v720, %v762
        %v764 = vpop.f32.mrb[0].mxu0
        %v765 = vadd.f32 %v722, %v764
        %v766 = vpop.f32.mrb[0].mxu0
        %v767 = vadd.f32 %v724, %v766
        %v768 = vpop.f32.mrb[0].mxu0
        %v769 = vadd.f32 %v726, %v768
        %770 = vdwg.mxu0
        %v771 = vadd.f32 %v273, %v763
        %v772 = vadd.f32 %v274, %v765
        %v773 = vadd.f32 %v275, %v767
        %v774 = vadd.f32 %v276, %v769
        %775 = vst [vmem:[#allocation2] sm:$0xff] %v771
        %776 = vst [vmem:[#allocation2 + $0x8] sm:$0xff] %v772
        %777 = vst [vmem:[#allocation2 + $0x10] sm:$0xff] %v773
        %778 = vst [vmem:[#allocation2 + $0x18] sm:$0xff] %v774
        %p779 = scmp.eq.s32.totalorder %s21, 3
        // Predicated region
        $region60: #{discriminator2_forward.7} parent=50 // pred_check
          %p780 = pneg %p779
        $region61: #{discriminator2_forward.7} parent=50 // pred_check_branch
          %782 = sbr.rel (%p780) target = $region63
        $region62: #{discriminator2_forward.7} parent=50 // pred_region
          %v783 = vld [vmem:[#allocation2] sm:$0xff]
          %v784 = vld [vmem:[#allocation2 + $0x8] sm:$0xff]
          %v785 = vld [vmem:[#allocation2 + $0x10] sm:$0xff]
          %v786 = vld [vmem:[#allocation2 + $0x18] sm:$0xff]
          %v787 = vld [vmem:[%s2] sm:$0x3]
          %v789 = vlaneseq
          %v790 = vshrl.u32 %v789, 7
          %v791 = vsub.s32 0, %v790
          %v792 = vrot.slane %v787, %v791
          %v793 = vlaneseq
          %v794 = vshrl.u32 %v793, 7
          %v795 = vsub.s32 1, %v794
          %v796 = vrot.slane %v787, %v795
          %v799 = vadd.f32 %v783, %v792
          %v800 = vadd.f32 %v784, %v796
          %v801 = vadd.f32 %v785, %v792
          %v802 = vadd.f32 %v786, %v796
          %v803 = vadd.f32 %v799, %v801
          %v804 = vrot.slane %v803, 4
          %v805 = vadd.f32 %v803, %v804
          %v806 = vrot.slane %v805, 2
          %v807 = vadd.f32 %v805, %v806
          %v808 = vrot.slane %v807, 1
          %v809 = vadd.f32 %v807, %v808
          %v810 = vadd.f32 %v800, %v802
          %v811 = vrot.slane %v810, 4
          %v812 = vadd.f32 %v810, %v811
          %v813 = vrot.slane %v812, 2
          %v814 = vadd.f32 %v812, %v813
          %v815 = vrot.slane %v814, 1
          %v816 = vadd.f32 %v814, %v815
          %v817 = vmul.f32 %v799, %v799
          %v818 = vmul.f32 %v800, %v800
          %v819 = vmul.f32 %v801, %v801
          %v820 = vmul.f32 %v802, %v802
          %v821 = vadd.f32 %v817, %v819
          %v822 = vrot.slane %v821, 4
          %v823 = vadd.f32 %v821, %v822
          %v824 = vrot.slane %v823, 2
          %v825 = vadd.f32 %v823, %v824
          %v826 = vrot.slane %v825, 1
          %v827 = vadd.f32 %v825, %v826
          %v828 = vadd.f32 %v818, %v820
          %v829 = vrot.slane %v828, 4
          %v830 = vadd.f32 %v828, %v829
          %v831 = vrot.slane %v830, 2
          %v832 = vadd.f32 %v830, %v831
          %v833 = vrot.slane %v832, 1
          %v834 = vadd.f32 %v832, %v833
          %v835 = vmul.f32 %v809, 0.0625
          %v836 = vmul.f32 %v816, 0.0625
          %v837 = vmul.f32 %v827, 0.0625
          %v838 = vmul.f32 %v834, 0.0625
          %v839 = vmul.f32 %v835, %v835
          %v840 = vmul.f32 %v836, %v836
          %v841 = vsub.f32 %v837, %v839
          %v842 = vsub.f32 %v838, %v840
          %v843 = vmax.f32 %v841, 0.0
          %v844 = vmax.f32 %v842, 0.0
          %v845 = vsub.f32 %v799, %v835
          %v846 = vsub.f32 %v800, %v836
          %v847 = vsub.f32 %v801, %v835
          %v848 = vsub.f32 %v802, %v836
          %v849 = vadd.f32 %v843, 1e-05
          %v850 = vadd.f32 %v844, 1e-05
          %v851 = vrsqrt.pop %v849
          %v852 = vrsqrt.pop %v850
          %v853 = vmul.f32 %v845, %v851
          %v854 = vmul.f32 %v846, %v852
          %v855 = vmul.f32 %v847, %v851
          %v856 = vmul.f32 %v848, %v852
          %vm857 = vcmp.ge.f32.partialorder %v853, 0.0
          %vm858 = vcmp.ge.f32.partialorder %v854, 0.0
          %vm859 = vcmp.ge.f32.partialorder %v855, 0.0
          %vm860 = vcmp.ge.f32.partialorder %v856, 0.0
          %v861 = vmul.f32 %v853, 0.2
          %v862 = vmul.f32 %v854, 0.2
          %v863 = vmul.f32 %v855, 0.2
          %v864 = vmul.f32 %v856, 0.2
          %v865 = vsel %vm857, %v853, %v861
          %v866 = vsel %vm858, %v854, %v862
          %v867 = vsel %vm859, %v855, %v863
          %v868 = vsel %vm860, %v856, %v864
          %v869 = vpack.c.bf16 %v867, %v865
          %v870 = vpack.c.bf16 %v868, %v866
          %v873 = vunpack.c.l.b16 %v869
          %v874 = vunpack.c.l.b16 %v870
          %v875 = vunpack.c.h.b16 %v869
          %v876 = vunpack.c.h.b16 %v870
          %v877 = vpack.c.b16 %v874, %v873
          %v878 = vpack.c.b16 %v876, %v875
          %881 = vst [vmem:[%s263] sm:$0xff] %v877
          %882 = vst [vmem:[%s263 + $0x8] sm:$0xff] %v878
        $region63: #{discriminator2_forward.7} parent=50 // pred_fallthru
          _
        %s883 = smul.u32 2, %s20
        %p884 = scmp.lt.s32.totalorder %s19, 1
        %s885 = scalar_select %p884, %s19, 1
        %p886 = scmp.lt.s32.totalorder %s883, 1
        %s887 = scalar_select %p886, %s883, 1
        %s888 = smul.addr %s887, 2
        %s889 = smul.addr %s885, 4
        %s890 = sadd.s32 %s888, %s889
        %s891 = smul.addr %s890, 4
        %s892 = scalar_lea.vmem %s3, %s891
        // Predicated region
        $region64: #{discriminator2_forward.7} parent=50 // pred_check
          %p893 = pneg %p130
        $region65: #{discriminator2_forward.7} parent=50 // pred_check_branch
          %895 = sbr.rel (%p893) target = $region67
        $region66: #{discriminator2_forward.7} parent=50 // pred_region
          %s896 = smul.u32 2, %s20
        $region67: #{discriminator2_forward.7} parent=50 // pred_fallthru
          _
      $region51: #{discriminator2_forward.7} parent=5 // pred_fallthru
        _
      %p897 = scmp.le.s32.totalorder 2, %s9
      // Predicated region
      $region68: #{discriminator2_forward.7} parent=5 // pred_check
        %p898 = pneg %p897
      $region69: #{discriminator2_forward.7} parent=5 // pred_check_branch
        %900 = sbr.rel (%p898) target = $region71
      $region70: #{discriminator2_forward.7} parent=5 // pred_region
        %s901 = ssub.s32 %s9, 2
        // Predicated region
        $region72: #{discriminator2_forward.7} parent=70 // pred_check
          %p902 = pneg %p136
        $region73: #{discriminator2_forward.7} parent=70 // pred_check_branch
          %904 = sbr.rel (%p902) target = $region75
        $region74: #{discriminator2_forward.7} parent=70 // pred_region
          %s905 = smul.u32 2, %s23
          %p906 = scmp.lt.s32.totalorder %s22, 1
          %s907 = scalar_select %p906, %s22, 1
          %p908 = scmp.lt.s32.totalorder %s905, 1
          %s909 = scalar_select %p908, %s905, 1
          %s910 = smul.addr %s909, 2
          %s911 = smul.addr %s907, 4
          %s912 = sadd.s32 %s910, %s911
          %s913 = smul.addr %s912, 4
          %s914 = scalar_lea.vmem %s3, %s913
        $region75: #{discriminator2_forward.7} parent=70 // pred_fallthru
          _
      $region71: #{discriminator2_forward.7} parent=5 // pred_fallthru
        _
    $region6: #{discriminator2_forward.7} parent=1 // loop_footer
      %s13 = sadd.s32 1, %s9
    $region7: #{discriminator2_forward.7} parent=1 // loop_footer_branch
      %8 = sbr.rel target = $region3
    $region8: #{discriminator2_forward.7} parent=1 // loop_exit
      _

// kernel: custom-call.6
$region0: #{custom-call.6}
  %s0 = inlined_call_operand.hbm [shape: f32[4096], index: 0, kind: output, shape index: {}]

// kernel: discriminator2_forward.8
$region0: #{discriminator2_forward.8}
  #allocation0 [shape = 'u32[]', space=smem, size = 0x4, offset = 0x4, fixed_abs, tag = 'smem constant byte address 0x4 - core index']
  #allocation1 [shape = 'u32[144,128]{1,0:T(1,128)}', space=vmem, size = 0x12000, scoped, tag = 'internal scratch']
  #allocation2 [shape = 'f32[4,512]{1,0:T(4,128)}', space=vmem, size = 0x2000, scoped, tag = 'scratch operand']
  %s0 = inlined_call_operand.vmem [shape: bf16[2,4,4096], index: 0, kind: input, shape index: {}]
  %s1 = inlined_call_operand.vmem [shape: bf16[4096,512], index: 1, kind: input, shape index: {}]
  %s2 = inlined_call_operand.vmem [shape: f32[1,512], index: 2, kind: input, shape index: {}]
  %s3 = inlined_call_operand.vmem [shape: bf16[2,4,512], index: 3, kind: output, shape index: {}]
  %s4 = sld [smem:[#allocation0]]
  $region53: #{discriminator2_forward.8} parent=0
    _
  %s6 = ssub.s32 1, %s4
  %s7 = scalar_select 0, %s6, %s4
  loop: start=0, step=1, limit=18
  $region2: #{discriminator2_forward.8} parent=0 // loop_pre_header
    _
  $region3: #{discriminator2_forward.8} parent=0 // loop_header
    %s9 = sphi 0, %s13
    %p10 = scmp.ge.s32.totalorder %s9, 18
    %s16 = sphi 0, %s35
    %s17 = sphi 0, %s31
    %s18 = sphi 0, %s27
    %s19 = sphi 0, %s16
    %s20 = sphi 0, %s17
    %s21 = sphi 0, %s18
    %s22 = sphi 0, %s19
    %s23 = sphi 0, %s20
    %s24 = sphi 0, %s21
    %s42 = sphi 0, %s44
    %s45 = sphi 0, %s42
    %s46 = sphi 0, %s45
    %s62 = sphi 0, %s46
    %s68 = sphi 0, %s70
    %s71 = sphi 0, %s68
    %s72 = sphi 0, %s71
    %s88 = sphi 0, %s72
    %s92 = sphi 0, %s92
    %s94 = sphi 0, %s92
    %s95 = sphi 0, %s94
    %s109 = sphi 0, %s95
    %s117 = sphi 0, %s119
    %s120 = sphi 0, %s117
    %s121 = sphi 0, %s120
    %s137 = sphi 0, %s121
  $region4: #{discriminator2_forward.8} parent=0 // loop_header_branch
    %12 = sbr.rel (%p10) target = $region8
  $region5: #{discriminator2_forward.8} parent=0 // loop_body
    %s14 = ssub.s32 %s9, 1
    %s15 = ssub.s32 %s9, 2
    %s25 = sadd.s32 1, %s18
    %p26 = scmp.ge.s32.totalorder %s25, 8
    %s27 = scalar_select %p26, 0, %s25
    %s28 = sadd.s32 1, %s17
    %s29 = scalar_select %p26, %s28, %s17
    %p30 = scmp.ge.s32.totalorder %s29, 1
    %s31 = scalar_select %p30, 0, %s29
    %s32 = sadd.s32 1, %s16
    %s33 = scalar_select %p30, %s32, %s16
    %p34 = scmp.ge.s32.totalorder %s33, 2
    %s35 = scalar_select %p34, 0, %s33
    %s36 = ssub.s32 %s16, %s35
    %s37 = ssub.s32 %s17, %s31
    %s38 = sor.u32 %s36, %s37
    %s39 = ssub.s32 %s18, %s27
    %s40 = sor.u32 %s38, %s39
    %p41 = scmp.eq.s32.totalorder %s40, 0
    %s43 = sadd.s32 %s42, 1
    %s44 = scalar_select %p41, %s42, %s43
    %p47 = pneg %p41
    %p48 = scmp.eq.s32.totalorder %s9, 15
    %p49 = por %p47, %p48
    %p50 = scmp.ne.s32.totalorder %s42, %s45
    %p51 = scmp.eq.s32.totalorder %s9, 0
    %p52 = por %p50, %p51
    %p53 = scmp.ne.s32.totalorder %s42, %s45
    %p54 = scmp.eq.s32.totalorder %s14, 15
    %p55 = por %p53, %p54
    %p56 = scmp.ne.s32.totalorder %s45, %s46
    %p57 = scmp.eq.s32.totalorder %s14, 0
    %p58 = por %p56, %p57
    %p59 = scmp.ne.s32.totalorder %s45, %s46
    %p60 = scmp.eq.s32.totalorder %s15, 15
    %p61 = por %p59, %p60
    %p63 = scmp.ne.s32.totalorder %s46, %s62
    %p64 = scmp.eq.s32.totalorder %s15, 0
    %p65 = por %p63, %p64
    %s66 = ssub.s32 %s18, %s27
    %p67 = scmp.eq.s32.totalorder %s66, 0
    %s69 = sadd.s32 %s68, 1
    %s70 = scalar_select %p67, %s68, %s69
    %p73 = pneg %p67
    %p74 = scmp.eq.s32.totalorder %s9, 15
    %p75 = por %p73, %p74
    %p76 = scmp.ne.s32.totalorder %s68, %s71
    %p77 = scmp.eq.s32.totalorder %s9, 0
    %p78 = por %p76, %p77
    %p79 = scmp.ne.s32.totalorder %s68, %s71
    %p80 = scmp.eq.s32.totalorder %s14, 15
    %p81 = por %p79, %p80
    %p82 = scmp.ne.s32.totalorder %s71, %s72
    %p83 = scmp.eq.s32.totalorder %s14, 0
    %p84 = por %p82, %p83
    %p85 = scmp.ne.s32.totalorder %s71, %s72
    %p86 = scmp.eq.s32.totalorder %s15, 15
    %p87 = por %p85, %p86
    %p89 = scmp.ne.s32.totalorder %s72, %s88
    %p90 = scmp.eq.s32.totalorder %s15, 0
    %p91 = por %p89, %p90
    %s93 = sadd.s32 %s92, 1
    %p96 = scmp.eq.s32.totalorder %s9, 15
    %p97 = scmp.ne.s32.totalorder %s92, %s94
    %p98 = scmp.eq.s32.totalorder %s9, 0
    %p99 = por %p97, %p98
    %p100 = scmp.ne.s32.totalorder %s92, %s94
    %p101 = scmp.eq.s32.totalorder %s14, 15
    %p102 = por %p100, %p101
    %p103 = scmp.ne.s32.totalorder %s94, %s95
    %p104 = scmp.eq.s32.totalorder %s14, 0
    %p105 = por %p103, %p104
    %p106 = scmp.ne.s32.totalorder %s94, %s95
    %p107 = scmp.eq.s32.totalorder %s15, 15
    %p108 = por %p106, %p107
    %p110 = scmp.ne.s32.totalorder %s95, %s109
    %p111 = scmp.eq.s32.totalorder %s15, 0
    %p112 = por %p110, %p111
    %s113 = ssub.s32 %s16, %s35
    %s114 = ssub.s32 %s17, %s31
    %s115 = sor.u32 %s113, %s114
    %p116 = scmp.eq.s32.totalorder %s115, 0
    %s118 = sadd.s32 %s117, 1
    %s119 = scalar_select %p116, %s117, %s118
    %p122 = pneg %p116
    %p123 = scmp.eq.s32.totalorder %s9, 15
    %p124 = por %p122, %p123
    %p125 = scmp.ne.s32.totalorder %s117, %s120
    %p126 = scmp.eq.s32.totalorder %s9, 0
    %p127 = por %p125, %p126
    %p128 = scmp.ne.s32.totalorder %s117, %s120
    %p129 = scmp.eq.s32.totalorder %s14, 15
    %p130 = por %p128, %p129
    %p131 = scmp.ne.s32.totalorder %s120, %s121
    %p132 = scmp.eq.s32.totalorder %s14, 0
    %p133 = por %p131, %p132
    %p134 = scmp.ne.s32.totalorder %s120, %s121
    %p135 = scmp.eq.s32.totalorder %s15, 15
    %p136 = por %p134, %p135
    %p138 = scmp.ne.s32.totalorder %s121, %s137
    %p139 = scmp.eq.s32.totalorder %s15, 0
    %p140 = por %p138, %p139
    %p141 = scmp.le.s32.totalorder 1, %s9
    %p142 = scmp.lt.s32.totalorder %s9, 17
    %p143 = pnand %p141, %p142
    %p144 = pneg %p143
    // Predicated region
    $region9: #{discriminator2_forward.8} parent=5 // pred_check
      _
    $region10: #{discriminator2_forward.8} parent=5 // pred_check_branch
      %146 = sbr.rel (%p143) target = $region12
    $region11: #{discriminator2_forward.8} parent=5 // pred_region
      %s147 = ssub.s32 %s9, 1
      // Predicated region
      $region13: #{discriminator2_forward.8} parent=11 // pred_check
        %p148 = pneg %p105
      $region14: #{discriminator2_forward.8} parent=11 // pred_check_branch
        %150 = sbr.rel (%p148) target = $region16
      $region15: #{discriminator2_forward.8} parent=11 // pred_region
        _
      $region16: #{discriminator2_forward.8} parent=11 // pred_fallthru
        _
    $region12: #{discriminator2_forward.8} parent=5 // pred_fallthru
      _
    %p151 = scmp.lt.s32.totalorder %s9, 16
    // Predicated region
    $region17: #{discriminator2_forward.8} parent=5 // pred_check
      %p152 = pneg %p151
    $region18: #{discriminator2_forward.8} parent=5 // pred_check_branch
      %154 = sbr.rel (%p152) target = $region20
    $region19: #{discriminator2_forward.8} parent=5 // pred_region
      // Predicated region
      $region21: #{discriminator2_forward.8} parent=19 // pred_check
        %p155 = pneg %p52
      $region22: #{discriminator2_forward.8} parent=19 // pred_check_branch
        %157 = sbr.rel (%p155) target = $region24
      $region23: #{discriminator2_forward.8} parent=19 // pred_region
        %s158 = smul.u32 4, %s18
        %p159 = scmp.lt.s32.totalorder %s16, 1
        %s160 = scalar_select %p159, %s16, 1
        %p161 = scmp.lt.s32.totalorder %s17, 0
        %s162 = scalar_select %p161, %s17, 0
        %p163 = scmp.lt.s32.totalorder %s158, 31
        %s164 = scalar_select %p163, %s158, 31
        %s165 = smul.addr %s162, 32
        %s166 = sadd.s32 %s164, %s165
        %s167 = smul.addr %s160, 32
        %s168 = sadd.s32 %s166, %s167
        %s169 = smul.addr %s168, 2
        %s170 = scalar_lea.vmem %s0, %s169
        %s171 = smul.u32 4, %s18
      $region24: #{discriminator2_forward.8} parent=19 // pred_fallthru
        _
      // Predicated region
      $region25: #{discriminator2_forward.8} parent=19 // pred_check
        %p172 = pneg %p78
      $region26: #{discriminator2_forward.8} parent=19 // pred_check_branch
        %174 = sbr.rel (%p172) target = $region28
      $region27: #{discriminator2_forward.8} parent=19 // pred_region
        %s175 = smul.u32 64, %s18
        %p176 = scmp.lt.s32.totalorder %s175, 511
        %s177 = scalar_select %p176, %s175, 511
        %s178 = smul.addr %s177, 4
        %s179 = smul.addr %s178, 4
        %s180 = scalar_lea.vmem %s1, %s179
        %s181 = smul.u32 64, %s18
      $region28: #{discriminator2_forward.8} parent=19 // pred_fallthru
        _
    $region20: #{discriminator2_forward.8} parent=5 // pred_fallthru
      _
    %p182 = scmp.le.s32.totalorder 1, %s9
    %p183 = scmp.lt.s32.totalorder %s9, 17
    %p184 = pnand %p182, %p183
    %p185 = pneg %p184
    // Predicated region
    $region29: #{discriminator2_forward.8} parent=5 // pred_check
      _
    $region30: #{discriminator2_forward.8} parent=5 // pred_check_branch
      %187 = sbr.rel (%p184) target = $region32
    $region31: #{discriminator2_forward.8} parent=5 // pred_region
      %s188 = ssub.s32 %s9, 1
      %s189 = smul.u32 4, %s21
      %p190 = scmp.lt.s32.totalorder %s19, 1
      %s191 = scalar_select %p190, %s19, 1
      %p192 = scmp.lt.s32.totalorder %s20, 0
      %s193 = scalar_select %p192, %s20, 0
      %p194 = scmp.lt.s32.totalorder %s189, 31
      %s195 = scalar_select %p194, %s189, 31
      %s196 = smul.addr %s193, 32
      %s197 = sadd.s32 %s195, %s196
      %s198 = smul.addr %s191, 32
      %s199 = sadd.s32 %s197, %s198
      %s200 = smul.addr %s199, 2
      %s201 = scalar_lea.vmem %s0, %s200
      %p202 = pneg %p58
      %p203 = pneg %p55
      %s204 = smul.u32 64, %s21
      %p205 = scmp.lt.s32.totalorder %s204, 511
      %s206 = scalar_select %p205, %s204, 511
      %s207 = smul.addr %s206, 4
      %s208 = smul.addr %s207, 4
      %s209 = scalar_lea.vmem %s1, %s208
      %p210 = pneg %p84
      %p211 = pneg %p81
      %p212 = pneg %p105
      %p213 = pneg %p102
      %p214 = pneg %p133
      %p215 = pneg %p130
      %p216 = scmp.lt.s32.totalorder %s19, 1
      %s217 = scalar_select %p216, %s19, 1
      %p218 = scmp.lt.s32.totalorder %s20, 0
      %s219 = scalar_select %p218, %s20, 0
      %s220 = smul.addr %s219, 4
      %s221 = smul.addr %s217, 4
      %s222 = sadd.s32 %s220, %s221
      %s223 = smul.addr %s222, 2
      %s224 = scalar_lea.vmem %s3, %s223
      %s225 = smul.u32 4, %s21
      %p226 = scmp.lt.s32.totalorder %s19, 1
      %s227 = scalar_select %p226, %s19, 1
      %p228 = scmp.lt.s32.totalorder %s20, 0
      %s229 = scalar_select %p228, %s20, 0
      %p230 = scmp.lt.s32.totalorder %s225, 31
      %s231 = scalar_select %p230, %s225, 31
      %s232 = smul.addr %s229, 32
      %s233 = sadd.s32 %s231, %s232
      %s234 = smul.addr %s227, 32
      %s235 = sadd.s32 %s233, %s234
      %s236 = smul.addr %s235, 2
      %s237 = scalar_lea.vmem %s0, %s236
      %s238 = smul.u32 4, %s21
      %s239 = smul.u32 64, %s21
      %p240 = scmp.lt.s32.totalorder %s239, 511
      %s241 = scalar_select %p240, %s239, 511
      %s242 = smul.addr %s241, 4
      %s243 = smul.addr %s242, 4
      %s244 = scalar_lea.vmem %s1, %s243
      %s245 = smul.u32 64, %s21
      %p246 = scmp.lt.s32.totalorder %s19, 1
      %s247 = scalar_select %p246, %s19, 1
      %p248 = scmp.lt.s32.totalorder %s20, 0
      %s249 = scalar_select %p248, %s20, 0
      %s250 = smul.addr %s249, 4
      %s251 = smul.addr %s247, 4
      %s252 = sadd.s32 %s250, %s251
      %s253 = smul.addr %s252, 2
      %s254 = scalar_lea.vmem %s3, %s253
      %p255 = scmp.eq.s32.totalorder %s21, 0
      // Predicated region
      $region33: #{discriminator2_forward.8} parent=31 // pred_check
        %p256 = pneg %p255
      $region34: #{discriminator2_forward.8} parent=31 // pred_check_branch
        %258 = sbr.rel (%p256) target = $region36
      $region35: #{discriminator2_forward.8} parent=31 // pred_region
        %259 = vst [vmem:[#allocation2] sm:$0xff] 0.0
        %260 = vst [vmem:[#allocation2 + $0x8] sm:$0xff] 0.0
      $region36: #{discriminator2_forward.8} parent=31 // pred_fallthru
        _
      %v261 = vld [vmem:[#allocation2] sm:$0xff]
      %v262 = vld [vmem:[#allocation2 + $0x8] sm:$0xff]
      %v263 = vld [vmem:[%s237] sm:$0xff]
      %v264 = vld [vmem:[%s244] sm:$0xff]
      %v265 = vld [vmem:[%s244 + $0x8] sm:$0xff]
      %v266 = vld [vmem:[%s244 + $0x10] sm:$0xff]
      %v267 = vld [vmem:[%s244 + $0x18] sm:$0xff]
      %v268 = vld [vmem:[%s244 + $0x20] sm:$0xff]
      %v269 = vld [vmem:[%s244 + $0x28] sm:$0xff]
      %v270 = vld [vmem:[%s244 + $0x30] sm:$0xff]
      %v271 = vld [vmem:[%s244 + $0x38] sm:$0xff]
      %v272 = vld [vmem:[%s244 + $0x40] sm:$0xff]
      %v273 = vld [vmem:[%s244 + $0x48] sm:$0xff]
      %v274 = vld [vmem:[%s244 + $0x50] sm:$0xff]
      %v275 = vld [vmem:[%s244 + $0x58] sm:$0xff]
      %v276 = vld [vmem:[%s244 + $0x60] sm:$0xff]
      %v277 = vld [vmem:[%s244 + $0x68] sm:$0xff]
      %v278 = vld [vmem:[%s244 + $0x70] sm:$0xff]
      %v279 = vld [vmem:[%s244 + $0x78] sm:$0xff]
      %v280 = vld [vmem:[%s244 + $0x80] sm:$0xff]
      %v281 = vld [vmem:[%s244 + $0x88] sm:$0xff]
      %v282 = vld [vmem:[%s244 + $0x90] sm:$0xff]
      %v283 = vld [vmem:[%s244 + $0x98] sm:$0xff]
      %v284 = vld [vmem:[%s244 + $0xa0] sm:$0xff]
      %v285 = vld [vmem:[%s244 + $0xa8] sm:$0xff]
      %v286 = vld [vmem:[%s244 + $0xb0] sm:$0xff]
      %v287 = vld [vmem:[%s244 + $0xb8] sm:$0xff]
      %v288 = vld [vmem:[%s244 + $0xc0] sm:$0xff]
      %v289 = vld [vmem:[%s244 + $0xc8] sm:$0xff]
      %v290 = vld [vmem:[%s244 + $0xd0] sm:$0xff]
      %v291 = vld [vmem:[%s244 + $0xd8] sm:$0xff]
      %v292 = vld [vmem:[%s244 + $0xe0] sm:$0xff]
      %v293 = vld [vmem:[%s244 + $0xe8] sm:$0xff]
      %v294 = vld [vmem:[%s244 + $0xf0] sm:$0xff]
      %v295 = vld [vmem:[%s244 + $0xf8] sm:$0xff]
      %v296 = vld [vmem:[%s244 + $0x100] sm:$0xff]
      %v297 = vld [vmem:[%s244 + $0x108] sm:$0xff]
      %v298 = vld [vmem:[%s244 + $0x110] sm:$0xff]
      %v299 = vld [vmem:[%s244 + $0x118] sm:$0xff]
      %v300 = vld [vmem:[%s244 + $0x120] sm:$0xff]
      %v301 = vld [vmem:[%s244 + $0x128] sm:$0xff]
      %v302 = vld [vmem:[%s244 + $0x130] sm:$0xff]
      %v303 = vld [vmem:[%s244 + $0x138] sm:$0xff]
      %v304 = vld [vmem:[%s244 + $0x140] sm:$0xff]
      %v305 = vld [vmem:[%s244 + $0x148] sm:$0xff]
      %v306 = vld [vmem:[%s244 + $0x150] sm:$0xff]
      %v307 = vld [vmem:[%s244 + $0x158] sm:$0xff]
      %v308 = vld [vmem:[%s244 + $0x160] sm:$0xff]
      %v309 = vld [vmem:[%s244 + $0x168] sm:$0xff]
      %v310 = vld [vmem:[%s244 + $0x170] sm:$0xff]
      %v311 = vld [vmem:[%s244 + $0x178] sm:$0xff]
      %v312 = vld [vmem:[%s244 + $0x180] sm:$0xff]
      %v313 = vld [vmem:[%s244 + $0x188] sm:$0xff]
      %v314 = vld [vmem:[%s244 + $0x190] sm:$0xff]
      %v315 = vld [vmem:[%s244 + $0x198] sm:$0xff]
      %v316 = vld [vmem:[%s244 + $0x1a0] sm:$0xff]
      %v317 = vld [vmem:[%s244 + $0x1a8] sm:$0xff]
      %v318 = vld [vmem:[%s244 + $0x1b0] sm:$0xff]
      %v319 = vld [vmem:[%s244 + $0x1b8] sm:$0xff]
      %v320 = vld [vmem:[%s244 + $0x1c0] sm:$0xff]
      %v321 = vld [vmem:[%s244 + $0x1c8] sm:$0xff]
      %v322 = vld [vmem:[%s244 + $0x1d0] sm:$0xff]
      %v323 = vld [vmem:[%s244 + $0x1d8] sm:$0xff]
      %v324 = vld [vmem:[%s244 + $0x1e0] sm:$0xff]
      %v325 = vld [vmem:[%s244 + $0x1e8] sm:$0xff]
      %v326 = vld [vmem:[%s244 + $0x1f0] sm:$0xff]
      %v327 = vld [vmem:[%s244 + $0x1f8] sm:$0xff]
      %v328 = vld [vmem:[%s244 + $0x200] sm:$0xff]
      %v329 = vld [vmem:[%s244 + $0x208] sm:$0xff]
      %v330 = vld [vmem:[%s244 + $0x210] sm:$0xff]
      %v331 = vld [vmem:[%s244 + $0x218] sm:$0xff]
      %v332 = vld [vmem:[%s244 + $0x220] sm:$0xff]
      %v333 = vld [vmem:[%s244 + $0x228] sm:$0xff]
      %v334 = vld [vmem:[%s244 + $0x230] sm:$0xff]
      %v335 = vld [vmem:[%s244 + $0x238] sm:$0xff]
      %v336 = vld [vmem:[%s244 + $0x240] sm:$0xff]
      %v337 = vld [vmem:[%s244 + $0x248] sm:$0xff]
      %v338 = vld [vmem:[%s244 + $0x250] sm:$0xff]
      %v339 = vld [vmem:[%s244 + $0x258] sm:$0xff]
      %v340 = vld [vmem:[%s244 + $0x260] sm:$0xff]
      %v341 = vld [vmem:[%s244 + $0x268] sm:$0xff]
      %v342 = vld [vmem:[%s244 + $0x270] sm:$0xff]
      %v343 = vld [vmem:[%s244 + $0x278] sm:$0xff]
      %v344 = vld [vmem:[%s244 + $0x280] sm:$0xff]
      %v345 = vld [vmem:[%s244 + $0x288] sm:$0xff]
      %v346 = vld [vmem:[%s244 + $0x290] sm:$0xff]
      %v347 = vld [vmem:[%s244 + $0x298] sm:$0xff]
      %v348 = vld [vmem:[%s244 + $0x2a0] sm:$0xff]
      %v349 = vld [vmem:[%s244 + $0x2a8] sm:$0xff]
      %v350 = vld [vmem:[%s244 + $0x2b0] sm:$0xff]
      %v351 = vld [vmem:[%s244 + $0x2b8] sm:$0xff]
      %v352 = vld [vmem:[%s244 + $0x2c0] sm:$0xff]
      %v353 = vld [vmem:[%s244 + $0x2c8] sm:$0xff]
      %v354 = vld [vmem:[%s244 + $0x2d0] sm:$0xff]
      %v355 = vld [vmem:[%s244 + $0x2d8] sm:$0xff]
      %v356 = vld [vmem:[%s244 + $0x2e0] sm:$0xff]
      %v357 = vld [vmem:[%s244 + $0x2e8] sm:$0xff]
      %v358 = vld [vmem:[%s244 + $0x2f0] sm:$0xff]
      %v359 = vld [vmem:[%s244 + $0x2f8] sm:$0xff]
      %v360 = vld [vmem:[%s244 + $0x300] sm:$0xff]
      %v361 = vld [vmem:[%s244 + $0x308] sm:$0xff]
      %v362 = vld [vmem:[%s244 + $0x310] sm:$0xff]
      %v363 = vld [vmem:[%s244 + $0x318] sm:$0xff]
      %v364 = vld [vmem:[%s244 + $0x320] sm:$0xff]
      %v365 = vld [vmem:[%s244 + $0x328] sm:$0xff]
      %v366 = vld [vmem:[%s244 + $0x330] sm:$0xff]
      %v367 = vld [vmem:[%s244 + $0x338] sm:$0xff]
      %v368 = vld [vmem:[%s244 + $0x340] sm:$0xff]
      %v369 = vld [vmem:[%s244 + $0x348] sm:$0xff]
      %v370 = vld [vmem:[%s244 + $0x350] sm:$0xff]
      %v371 = vld [vmem:[%s244 + $0x358] sm:$0xff]
      %v372 = vld [vmem:[%s244 + $0x360] sm:$0xff]
      %v373 = vld [vmem:[%s244 + $0x368] sm:$0xff]
      %v374 = vld [vmem:[%s244 + $0x370] sm:$0xff]
      %v375 = vld [vmem:[%s244 + $0x378] sm:$0xff]
      %v376 = vld [vmem:[%s244 + $0x380] sm:$0xff]
      %v377 = vld [vmem:[%s244 + $0x388] sm:$0xff]
      %v378 = vld [vmem:[%s244 + $0x390] sm:$0xff]
      %v379 = vld [vmem:[%s244 + $0x398] sm:$0xff]
      %v380 = vld [vmem:[%s244 + $0x3a0] sm:$0xff]
      %v381 = vld [vmem:[%s244 + $0x3a8] sm:$0xff]
      %v382 = vld [vmem:[%s244 + $0x3b0] sm:$0xff]
      %v383 = vld [vmem:[%s244 + $0x3b8] sm:$0xff]
      %v384 = vld [vmem:[%s244 + $0x3c0] sm:$0xff]
      %v385 = vld [vmem:[%s244 + $0x3c8] sm:$0xff]
      %v386 = vld [vmem:[%s244 + $0x3d0] sm:$0xff]
      %v387 = vld [vmem:[%s244 + $0x3d8] sm:$0xff]
      %v388 = vld [vmem:[%s244 + $0x3e0] sm:$0xff]
      %v389 = vld [vmem:[%s244 + $0x3e8] sm:$0xff]
      %v390 = vld [vmem:[%s244 + $0x3f0] sm:$0xff]
      %v391 = vld [vmem:[%s244 + $0x3f8] sm:$0xff]
      %v393 = vcombine.high %v263, %v263
      %v395 = vunpack.c.l.s4 1983009808
      %v396 = vunpack.c.0.s8 %v395
      %v397 = vlaneseq
      %v398 = vshrl.u32 %v397, 7
      %v399 = vsub.s32 %v396, %v398
      %v400 = vrot.slane %v263, %v399
      %v402 = vunpack.c.l.s4 1983009808
      %v403 = vunpack.c.0.s8 %v402
      %v404 = vlaneseq
      %v405 = vshrl.u32 %v404, 7
      %v406 = vsub.s32 %v403, %v405
      %v407 = vrot.slane %v393, %v406
      %v408 = vcombine.high %v400, %v400
      %v409 = vcombine.high %v407, %v407
      %v542 = vunpack.c.l.b16 %v264
      %v543 = vunpack.c.h.b16 %v264
      %v544 = vunpack.c.l.b16 %v265
      %v545 = vunpack.c.h.b16 %v265
      %v546 = vunpack.c.l.b16 %v266
      %v547 = vunpack.c.h.b16 %v266
      %v548 = vunpack.c.l.b16 %v267
      %v549 = vunpack.c.h.b16 %v267
      %v550 = vunpack.c.l.b16 %v268
      %v551 = vunpack.c.h.b16 %v268
      %v552 = vunpack.c.l.b16 %v269
      %v553 = vunpack.c.h.b16 %v269
      %v554 = vunpack.c.l.b16 %v270
      %v555 = vunpack.c.h.b16 %v270
      %v556 = vunpack.c.l.b16 %v271
      %v557 = vunpack.c.h.b16 %v271
      %v558 = vunpack.c.l.b16 %v272
      %v559 = vunpack.c.h.b16 %v272
      %v560 = vunpack.c.l.b16 %v273
      %v561 = vunpack.c.h.b16 %v273
      %v562 = vunpack.c.l.b16 %v274
      %v563 = vunpack.c.h.b16 %v274
      %v564 = vunpack.c.l.b16 %v275
      %v565 = vunpack.c.h.b16 %v275
      %v566 = vunpack.c.l.b16 %v276
      %v567 = vunpack.c.h.b16 %v276
      %v568 = vunpack.c.l.b16 %v277
      %v569 = vunpack.c.h.b16 %v277
      %v570 = vunpack.c.l.b16 %v278
      %v571 = vunpack.c.h.b16 %v278
      %v572 = vunpack.c.l.b16 %v279
      %v573 = vunpack.c.h.b16 %v279
      %v574 = vunpack.c.l.b16 %v280
      %v575 = vunpack.c.h.b16 %v280
      %v576 = vunpack.c.l.b16 %v281
      %v577 = vunpack.c.h.b16 %v281
      %v578 = vunpack.c.l.b16 %v282
      %v579 = vunpack.c.h.b16 %v282
      %v580 = vunpack.c.l.b16 %v283
      %v581 = vunpack.c.h.b16 %v283
      %v582 = vunpack.c.l.b16 %v284
      %v583 = vunpack.c.h.b16 %v284
      %v584 = vunpack.c.l.b16 %v285
      %v585 = vunpack.c.h.b16 %v285
      %v586 = vunpack.c.l.b16 %v286
      %v587 = vunpack.c.h.b16 %v286
      %v588 = vunpack.c.l.b16 %v287
      %v589 = vunpack.c.h.b16 %v287
      %v590 = vunpack.c.l.b16 %v288
      %v591 = vunpack.c.h.b16 %v288
      %v592 = vunpack.c.l.b16 %v289
      %v593 = vunpack.c.h.b16 %v289
      %v594 = vunpack.c.l.b16 %v290
      %v595 = vunpack.c.h.b16 %v290
      %v596 = vunpack.c.l.b16 %v291
      %v597 = vunpack.c.h.b16 %v291
      %v598 = vunpack.c.l.b16 %v292
      %v599 = vunpack.c.h.b16 %v292
      %v600 = vunpack.c.l.b16 %v293
      %v601 = vunpack.c.h.b16 %v293
      %v602 = vunpack.c.l.b16 %v294
      %v603 = vunpack.c.h.b16 %v294
      %v604 = vunpack.c.l.b16 %v295
      %v605 = vunpack.c.h.b16 %v295
      %v606 = vunpack.c.l.b16 %v296
      %v607 = vunpack.c.h.b16 %v296
      %v608 = vunpack.c.l.b16 %v297
      %v609 = vunpack.c.h.b16 %v297
      %v610 = vunpack.c.l.b16 %v298
      %v611 = vunpack.c.h.b16 %v298
      %v612 = vunpack.c.l.b16 %v299
      %v613 = vunpack.c.h.b16 %v299
      %v614 = vunpack.c.l.b16 %v300
      %v615 = vunpack.c.h.b16 %v300
      %v616 = vunpack.c.l.b16 %v301
      %v617 = vunpack.c.h.b16 %v301
      %v618 = vunpack.c.l.b16 %v302
      %v619 = vunpack.c.h.b16 %v302
      %v620 = vunpack.c.l.b16 %v303
      %v621 = vunpack.c.h.b16 %v303
      %v622 = vunpack.c.l.b16 %v304
      %v623 = vunpack.c.h.b16 %v304
      %v624 = vunpack.c.l.b16 %v305
      %v625 = vunpack.c.h.b16 %v305
      %v626 = vunpack.c.l.b16 %v306
      %v627 = vunpack.c.h.b16 %v306
      %v628 = vunpack.c.l.b16 %v307
      %v629 = vunpack.c.h.b16 %v307
      %v630 = vunpack.c.l.b16 %v308
      %v631 = vunpack.c.h.b16 %v308
      %v632 = vunpack.c.l.b16 %v309
      %v633 = vunpack.c.h.b16 %v309
      %v634 = vunpack.c.l.b16 %v310
      %v635 = vunpack.c.h.b16 %v310
      %v636 = vunpack.c.l.b16 %v311
      %v637 = vunpack.c.h.b16 %v311
      %v638 = vunpack.c.l.b16 %v312
      %v639 = vunpack.c.h.b16 %v312
      %v640 = vunpack.c.l.b16 %v313
      %v641 = vunpack.c.h.b16 %v313
      %v642 = vunpack.c.l.b16 %v314
      %v643 = vunpack.c.h.b16 %v314
      %v644 = vunpack.c.l.b16 %v315
      %v645 = vunpack.c.h.b16 %v315
      %v646 = vunpack.c.l.b16 %v316
      %v647 = vunpack.c.h.b16 %v316
      %v648 = vunpack.c.l.b16 %v317
      %v649 = vunpack.c.h.b16 %v317
      %v650 = vunpack.c.l.b16 %v318
      %v651 = vunpack.c.h.b16 %v318
      %v652 = vunpack.c.l.b16 %v319
      %v653 = vunpack.c.h.b16 %v319
      %v654 = vunpack.c.l.b16 %v320
      %v655 = vunpack.c.h.b16 %v320
      %v656 = vunpack.c.l.b16 %v321
      %v657 = vunpack.c.h.b16 %v321
      %v658 = vunpack.c.l.b16 %v322
      %v659 = vunpack.c.h.b16 %v322
      %v660 = vunpack.c.l.b16 %v323
      %v661 = vunpack.c.h.b16 %v323
      %v662 = vunpack.c.l.b16 %v324
      %v663 = vunpack.c.h.b16 %v324
      %v664 = vunpack.c.l.b16 %v325
      %v665 = vunpack.c.h.b16 %v325
      %v666 = vunpack.c.l.b16 %v326
      %v667 = vunpack.c.h.b16 %v326
      %v668 = vunpack.c.l.b16 %v327
      %v669 = vunpack.c.h.b16 %v327
      %v670 = vunpack.c.l.b16 %v328
      %v671 = vunpack.c.h.b16 %v328
      %v672 = vunpack.c.l.b16 %v329
      %v673 = vunpack.c.h.b16 %v329
      %v674 = vunpack.c.l.b16 %v330
      %v675 = vunpack.c.h.b16 %v330
      %v676 = vunpack.c.l.b16 %v331
      %v677 = vunpack.c.h.b16 %v331
      %v678 = vunpack.c.l.b16 %v332
      %v679 = vunpack.c.h.b16 %v332
      %v680 = vunpack.c.l.b16 %v333
      %v681 = vunpack.c.h.b16 %v333
      %v682 = vunpack.c.l.b16 %v334
      %v683 = vunpack.c.h.b16 %v334
      %v684 = vunpack.c.l.b16 %v335
      %v685 = vunpack.c.h.b16 %v335
      %v686 = vunpack.c.l.b16 %v336
      %v687 = vunpack.c.h.b16 %v336
      %v688 = vunpack.c.l.b16 %v337
      %v689 = vunpack.c.h.b16 %v337
      %v690 = vunpack.c.l.b16 %v338
      %v691 = vunpack.c.h.b16 %v338
      %v692 = vunpack.c.l.b16 %v339
      %v693 = vunpack.c.h.b16 %v339
      %v694 = vunpack.c.l.b16 %v340
      %v695 = vunpack.c.h.b16 %v340
      %v696 = vunpack.c.l.b16 %v341
      %v697 = vunpack.c.h.b16 %v341
      %v698 = vunpack.c.l.b16 %v342
      %v699 = vunpack.c.h.b16 %v342
      %v700 = vunpack.c.l.b16 %v343
      %v701 = vunpack.c.h.b16 %v343
      %v702 = vunpack.c.l.b16 %v344
      %v703 = vunpack.c.h.b16 %v344
      %v704 = vunpack.c.l.b16 %v345
      %v705 = vunpack.c.h.b16 %v345
      %v706 = vunpack.c.l.b16 %v346
      %v707 = vunpack.c.h.b16 %v346
      %v708 = vunpack.c.l.b16 %v347
      %v709 = vunpack.c.h.b16 %v347
      %v710 = vunpack.c.l.b16 %v348
      %v711 = vunpack.c.h.b16 %v348
      %v712 = vunpack.c.l.b16 %v349
      %v713 = vunpack.c.h.b16 %v349
      %v714 = vunpack.c.l.b16 %v350
      %v715 = vunpack.c.h.b16 %v350
      %v716 = vunpack.c.l.b16 %v351
      %v717 = vunpack.c.h.b16 %v351
      %v718 = vunpack.c.l.b16 %v352
      %v719 = vunpack.c.h.b16 %v352
      %v720 = vunpack.c.l.b16 %v353
      %v721 = vunpack.c.h.b16 %v353
      %v722 = vunpack.c.l.b16 %v354
      %v723 = vunpack.c.h.b16 %v354
      %v724 = vunpack.c.l.b16 %v355
      %v725 = vunpack.c.h.b16 %v355
      %v726 = vunpack.c.l.b16 %v356
      %v727 = vunpack.c.h.b16 %v356
      %v728 = vunpack.c.l.b16 %v357
      %v729 = vunpack.c.h.b16 %v357
      %v730 = vunpack.c.l.b16 %v358
      %v731 = vunpack.c.h.b16 %v358
      %v732 = vunpack.c.l.b16 %v359
      %v733 = vunpack.c.h.b16 %v359
      %v734 = vunpack.c.l.b16 %v360
      %v735 = vunpack.c.h.b16 %v360
      %v736 = vunpack.c.l.b16 %v361
      %v737 = vunpack.c.h.b16 %v361
      %v738 = vunpack.c.l.b16 %v362
      %v739 = vunpack.c.h.b16 %v362
      %v740 = vunpack.c.l.b16 %v363
      %v741 = vunpack.c.h.b16 %v363
      %v742 = vunpack.c.l.b16 %v364
      %v743 = vunpack.c.h.b16 %v364
      %v744 = vunpack.c.l.b16 %v365
      %v745 = vunpack.c.h.b16 %v365
      %v746 = vunpack.c.l.b16 %v366
      %v747 = vunpack.c.h.b16 %v366
      %v748 = vunpack.c.l.b16 %v367
      %v749 = vunpack.c.h.b16 %v367
      %v750 = vunpack.c.l.b16 %v368
      %v751 = vunpack.c.h.b16 %v368
      %v752 = vunpack.c.l.b16 %v369
      %v753 = vunpack.c.h.b16 %v369
      %v754 = vunpack.c.l.b16 %v370
      %v755 = vunpack.c.h.b16 %v370
      %v756 = vunpack.c.l.b16 %v371
      %v757 = vunpack.c.h.b16 %v371
      %v758 = vunpack.c.l.b16 %v372
      %v759 = vunpack.c.h.b16 %v372
      %v760 = vunpack.c.l.b16 %v373
      %v761 = vunpack.c.h.b16 %v373
      %v762 = vunpack.c.l.b16 %v374
      %v763 = vunpack.c.h.b16 %v374
      %v764 = vunpack.c.l.b16 %v375
      %v765 = vunpack.c.h.b16 %v375
      %v766 = vunpack.c.l.b16 %v376
      %v767 = vunpack.c.h.b16 %v376
      %v768 = vunpack.c.l.b16 %v377
      %v769 = vunpack.c.h.b16 %v377
      %v770 = vunpack.c.l.b16 %v378
      %v771 = vunpack.c.h.b16 %v378
      %v772 = vunpack.c.l.b16 %v379
      %v773 = vunpack.c.h.b16 %v379
      %v774 = vunpack.c.l.b16 %v380
      %v775 = vunpack.c.h.b16 %v380
      %v776 = vunpack.c.l.b16 %v381
      %v777 = vunpack.c.h.b16 %v381
      %v778 = vunpack.c.l.b16 %v382
      %v779 = vunpack.c.h.b16 %v382
      %v780 = vunpack.c.l.b16 %v383
      %v781 = vunpack.c.h.b16 %v383
      %v782 = vunpack.c.l.b16 %v384
      %v783 = vunpack.c.h.b16 %v384
      %v784 = vunpack.c.l.b16 %v385
      %v785 = vunpack.c.h.b16 %v385
      %v786 = vunpack.c.l.b16 %v386
      %v787 = vunpack.c.h.b16 %v386
      %v788 = vunpack.c.l.b16 %v387
      %v789 = vunpack.c.h.b16 %v387
      %v790 = vunpack.c.l.b16 %v388
      %v791 = vunpack.c.h.b16 %v388
      %v792 = vunpack.c.l.b16 %v389
      %v793 = vunpack.c.h.b16 %v389
      %v794 = vunpack.c.l.b16 %v390
      %v795 = vunpack.c.h.b16 %v390
      %v796 = vunpack.c.l.b16 %v391
      %v797 = vunpack.c.h.b16 %v391
      %v798 = vpack.c.b16 %v546, %v542
      %v799 = vpack.c.b16 %v547, %v543
      %v800 = vpack.c.b16 %v548, %v544
      %v801 = vpack.c.b16 %v549, %v545
      %v802 = vpack.c.b16 %v554, %v550
      %v803 = vpack.c.b16 %v555, %v551
      %v804 = vpack.c.b16 %v556, %v552
      %v805 = vpack.c.b16 %v557, %v553
      %v806 = vpack.c.b16 %v562, %v558
      %v807 = vpack.c.b16 %v563, %v559
      %v808 = vpack.c.b16 %v564, %v560
      %v809 = vpack.c.b16 %v565, %v561
      %v810 = vpack.c.b16 %v570, %v566
      %v811 = vpack.c.b16 %v571, %v567
      %v812 = vpack.c.b16 %v572, %v568
      %v813 = vpack.c.b16 %v573, %v569
      %v814 = vpack.c.b16 %v578, %v574
      %v815 = vpack.c.b16 %v579, %v575
      %v816 = vpack.c.b16 %v580, %v576
      %v817 = vpack.c.b16 %v581, %v577
      %v818 = vpack.c.b16 %v586, %v582
      %v819 = vpack.c.b16 %v587, %v583
      %v820 = vpack.c.b16 %v588, %v584
      %v821 = vpack.c.b16 %v589, %v585
      %v822 = vpack.c.b16 %v594, %v590
      %v823 = vpack.c.b16 %v595, %v591
      %v824 = vpack.c.b16 %v596, %v592
      %v825 = vpack.c.b16 %v597, %v593
      %v826 = vpack.c.b16 %v602, %v598
      %v827 = vpack.c.b16 %v603, %v599
      %v828 = vpack.c.b16 %v604, %v600
      %v829 = vpack.c.b16 %v605, %v601
      %v830 = vpack.c.b16 %v610, %v606
      %v831 = vpack.c.b16 %v611, %v607
      %v832 = vpack.c.b16 %v612, %v608
      %v833 = vpack.c.b16 %v613, %v609
      %v834 = vpack.c.b16 %v618, %v614
      %v835 = vpack.c.b16 %v619, %v615
      %v836 = vpack.c.b16 %v620, %v616
      %v837 = vpack.c.b16 %v621, %v617
      %v838 = vpack.c.b16 %v626, %v622
      %v839 = vpack.c.b16 %v627, %v623
      %v840 = vpack.c.b16 %v628, %v624
      %v841 = vpack.c.b16 %v629, %v625
      %v842 = vpack.c.b16 %v634, %v630
      %v843 = vpack.c.b16 %v635, %v631
      %v844 = vpack.c.b16 %v636, %v632
      %v845 = vpack.c.b16 %v637, %v633
      %v846 = vpack.c.b16 %v642, %v638
      %v847 = vpack.c.b16 %v643, %v639
      %v848 = vpack.c.b16 %v644, %v640
      %v849 = vpack.c.b16 %v645, %v641
      %v850 = vpack.c.b16 %v650, %v646
      %v851 = vpack.c.b16 %v651, %v647
      %v852 = vpack.c.b16 %v652, %v648
      %v853 = vpack.c.b16 %v653, %v649
      %v854 = vpack.c.b16 %v658, %v654
      %v855 = vpack.c.b16 %v659, %v655
      %v856 = vpack.c.b16 %v660, %v656
      %v857 = vpack.c.b16 %v661, %v657
      %v858 = vpack.c.b16 %v666, %v662
      %v859 = vpack.c.b16 %v667, %v663
      %v860 = vpack.c.b16 %v668, %v664
      %v861 = vpack.c.b16 %v669, %v665
      %v862 = vpack.c.b16 %v674, %v670
      %v863 = vpack.c.b16 %v675, %v671
      %v864 = vpack.c.b16 %v676, %v672
      %v865 = vpack.c.b16 %v677, %v673
      %v866 = vpack.c.b16 %v682, %v678
      %v867 = vpack.c.b16 %v683, %v679
      %v868 = vpack.c.b16 %v684, %v680
      %v869 = vpack.c.b16 %v685, %v681
      %v870 = vpack.c.b16 %v690, %v686
      %v871 = vpack.c.b16 %v691, %v687
      %v872 = vpack.c.b16 %v692, %v688
      %v873 = vpack.c.b16 %v693, %v689
      %v874 = vpack.c.b16 %v698, %v694
      %v875 = vpack.c.b16 %v699, %v695
      %v876 = vpack.c.b16 %v700, %v696
      %v877 = vpack.c.b16 %v701, %v697
      %v878 = vpack.c.b16 %v706, %v702
      %v879 = vpack.c.b16 %v707, %v703
      %v880 = vpack.c.b16 %v708, %v704
      %v881 = vpack.c.b16 %v709, %v705
      %v882 = vpack.c.b16 %v714, %v710
      %v883 = vpack.c.b16 %v715, %v711
      %v884 = vpack.c.b16 %v716, %v712
      %v885 = vpack.c.b16 %v717, %v713
      %v886 = vpack.c.b16 %v722, %v718
      %v887 = vpack.c.b16 %v723, %v719
      %v888 = vpack.c.b16 %v724, %v720
      %v889 = vpack.c.b16 %v725, %v721
      %v890 = vpack.c.b16 %v730, %v726
      %v891 = vpack.c.b16 %v731, %v727
      %v892 = vpack.c.b16 %v732, %v728
      %v893 = vpack.c.b16 %v733, %v729
      %v894 = vpack.c.b16 %v738, %v734
      %v895 = vpack.c.b16 %v739, %v735
      %v896 = vpack.c.b16 %v740, %v736
      %v897 = vpack.c.b16 %v741, %v737
      %v898 = vpack.c.b16 %v746, %v742
      %v899 = vpack.c.b16 %v747, %v743
      %v900 = vpack.c.b16 %v748, %v744
      %v901 = vpack.c.b16 %v749, %v745
      %v902 = vpack.c.b16 %v754, %v750
      %v903 = vpack.c.b16 %v755, %v751
      %v904 = vpack.c.b16 %v756, %v752
      %v905 = vpack.c.b16 %v757, %v753
      %v906 = vpack.c.b16 %v762, %v758
      %v907 = vpack.c.b16 %v763, %v759
      %v908 = vpack.c.b16 %v764, %v760
      %v909 = vpack.c.b16 %v765, %v761
      %v910 = vpack.c.b16 %v770, %v766
      %v911 = vpack.c.b16 %v771, %v767
      %v912 = vpack.c.b16 %v772, %v768
      %v913 = vpack.c.b16 %v773, %v769
      %v914 = vpack.c.b16 %v778, %v774
      %v915 = vpack.c.b16 %v779, %v775
      %v916 = vpack.c.b16 %v780, %v776
      %v917 = vpack.c.b16 %v781, %v777
      %v918 = vpack.c.b16 %v786, %v782
      %v919 = vpack.c.b16 %v787, %v783
      %v920 = vpack.c.b16 %v788, %v784
      %v921 = vpack.c.b16 %v789, %v785
      %v922 = vpack.c.b16 %v794, %v790
      %v923 = vpack.c.b16 %v795, %v791
      %v924 = vpack.c.b16 %v796, %v792
      %v925 = vpack.c.b16 %v797, %v793
      %1054 = vmatprep.subr.bf16.mxu0 %v799
      %1055 = vmatpush1.bf16.msra.mxu0 %v798
      %1056 = vmatprep.subr.bf16.mxu0 %v803
      %1057 = vmatpush1.bf16.msra.mxu0 %v802
      %1058 = vmatprep.subr.bf16.mxu0 %v807
      %1059 = vmatpush1.bf16.msra.mxu0 %v806
      %1060 = vmatprep.subr.bf16.mxu0 %v811
      %1061 = vmatpush1.bf16.msra.mxu0 %v810
      %1062 = vmatprep.subr.bf16.mxu0 %v815
      %1063 = vmatpush1.bf16.msra.mxu0 %v814
      %1064 = vmatprep.subr.bf16.mxu0 %v819
      %1065 = vmatpush1.bf16.msra.mxu0 %v818
      %1066 = vmatprep.subr.bf16.mxu0 %v823
      %1067 = vmatpush1.bf16.msra.mxu0 %v822
      %1068 = vmatprep.subr.bf16.mxu0 %v827
      %1069 = vmatpush1.bf16.msra.mxu0 %v826
      %1070 = vmatprep.subr.bf16.mxu0 %v831
      %1071 = vmatpush1.bf16.msra.mxu0 %v830
      %1072 = vmatprep.subr.bf16.mxu0 %v835
      %1073 = vmatpush1.bf16.msra.mxu0 %v834
      %1074 = vmatprep.subr.bf16.mxu0 %v839
      %1075 = vmatpush1.bf16.msra.mxu0 %v838
      %1076 = vmatprep.subr.bf16.mxu0 %v843
      %1077 = vmatpush1.bf16.msra.mxu0 %v842
      %1078 = vmatprep.subr.bf16.mxu0 %v847
      %1079 = vmatpush1.bf16.msra.mxu0 %v846
      %1080 = vmatprep.subr.bf16.mxu0 %v851
      %1081 = vmatpush1.bf16.msra.mxu0 %v850
      %1082 = vmatprep.subr.bf16.mxu0 %v855
      %1083 = vmatpush1.bf16.msra.mxu0 %v854
      %1084 = vmatprep.subr.bf16.mxu0 %v859
      %1085 = vmatpush1.bf16.msra.mxu0 %v858
      %1086 = vmatprep.mubr.bf16.mxu0 %v408
      %1087 = vmatmul.mubr.bf16.gmra.mrb[0].mxu0 %v400
      %v1088 = vpop.f32.mrb[0].mxu0
      %v1089 = vadd.f32 0.0, %v1088
      %v1090 = vpop.f32.mrb[0].mxu0
      %v1091 = vadd.f32 0.0, %v1090
      %v1092 = vpop.f32.mrb[0].mxu0
      %v1093 = vpop.f32.mrb[0].mxu0
      %1094 = vdwg.mxu0
      %1095 = vmatprep.subr.bf16.mxu0 %v863
      %1096 = vmatpush1.bf16.msra.mxu0 %v862
      %1097 = vmatprep.subr.bf16.mxu0 %v867
      %1098 = vmatpush1.bf16.msra.mxu0 %v866
      %1099 = vmatprep.subr.bf16.mxu0 %v871
      %1100 = vmatpush1.bf16.msra.mxu0 %v870
      %1101 = vmatprep.subr.bf16.mxu0 %v875
      %1102 = vmatpush1.bf16.msra.mxu0 %v874
      %1103 = vmatprep.subr.bf16.mxu0 %v879
      %1104 = vmatpush1.bf16.msra.mxu0 %v878
      %1105 = vmatprep.subr.bf16.mxu0 %v883
      %1106 = vmatpush1.bf16.msra.mxu0 %v882
      %1107 = vmatprep.subr.bf16.mxu0 %v887
      %1108 = vmatpush1.bf16.msra.mxu0 %v886
      %1109 = vmatprep.subr.bf16.mxu0 %v891
      %1110 = vmatpush1.bf16.msra.mxu0 %v890
      %1111 = vmatprep.subr.bf16.mxu0 %v895
      %1112 = vmatpush1.bf16.msra.mxu0 %v894
      %1113 = vmatprep.subr.bf16.mxu0 %v899
      %1114 = vmatpush1.bf16.msra.mxu0 %v898
      %1115 = vmatprep.subr.bf16.mxu0 %v903
      %1116 = vmatpush1.bf16.msra.mxu0 %v902
      %1117 = vmatprep.subr.bf16.mxu0 %v907
      %1118 = vmatpush1.bf16.msra.mxu0 %v906
      %1119 = vmatprep.subr.bf16.mxu0 %v911
      %1120 = vmatpush1.bf16.msra.mxu0 %v910
      %1121 = vmatprep.subr.bf16.mxu0 %v915
      %1122 = vmatpush1.bf16.msra.mxu0 %v914
      %1123 = vmatprep.subr.bf16.mxu0 %v919
      %1124 = vmatpush1.bf16.msra.mxu0 %v918
      %1125 = vmatprep.subr.bf16.mxu0 %v923
      %1126 = vmatpush1.bf16.msra.mxu0 %v922
      %1127 = vmatprep.mubr.bf16.mxu0 %v409
      %1128 = vmatmul.mubr.bf16.gmra.mrb[0].mxu0 %v407
      %v1129 = vpop.f32.mrb[0].mxu0
      %v1130 = vadd.f32 %v1089, %v1129
      %v1131 = vpop.f32.mrb[0].mxu0
      %v1132 = vadd.f32 %v1091, %v1131
      %v1133 = vpop.f32.mrb[0].mxu0
      %v1134 = vpop.f32.mrb[0].mxu0
      %1135 = vdwg.mxu0
      %1136 = vmatprep.subr.bf16.mxu0 %v801
      %1137 = vmatpush1.bf16.msra.mxu0 %v800
      %1138 = vmatprep.subr.bf16.mxu0 %v805
      %1139 = vmatpush1.bf16.msra.mxu0 %v804
      %1140 = vmatprep.subr.bf16.mxu0 %v809
      %1141 = vmatpush1.bf16.msra.mxu0 %v808
      %1142 = vmatprep.subr.bf16.mxu0 %v813
      %1143 = vmatpush1.bf16.msra.mxu0 %v812
      %1144 = vmatprep.subr.bf16.mxu0 %v817
      %1145 = vmatpush1.bf16.msra.mxu0 %v816
      %1146 = vmatprep.subr.bf16.mxu0 %v821
      %1147 = vmatpush1.bf16.msra.mxu0 %v820
      %1148 = vmatprep.subr.bf16.mxu0 %v825
      %1149 = vmatpush1.bf16.msra.mxu0 %v824
      %1150 = vmatprep.subr.bf16.mxu0 %v829
      %1151 = vmatpush1.bf16.msra.mxu0 %v828
      %1152 = vmatprep.subr.bf16.mxu0 %v833
      %1153 = vmatpush1.bf16.msra.mxu0 %v832
      %1154 = vmatprep.subr.bf16.mxu0 %v837
      %1155 = vmatpush1.bf16.msra.mxu0 %v836
      %1156 = vmatprep.subr.bf16.mxu0 %v841
      %1157 = vmatpush1.bf16.msra.mxu0 %v840
      %1158 = vmatprep.subr.bf16.mxu0 %v845
      %1159 = vmatpush1.bf16.msra.mxu0 %v844
      %1160 = vmatprep.subr.bf16.mxu0 %v849
      %1161 = vmatpush1.bf16.msra.mxu0 %v848
      %1162 = vmatprep.subr.bf16.mxu0 %v853
      %1163 = vmatpush1.bf16.msra.mxu0 %v852
      %1164 = vmatprep.subr.bf16.mxu0 %v857
      %1165 = vmatpush1.bf16.msra.mxu0 %v856
      %1166 = vmatprep.subr.bf16.mxu0 %v861
      %1167 = vmatpush1.bf16.msra.mxu0 %v860
      %1168 = vmatprep.mubr.bf16.mxu0 %v408
      %1169 = vmatmul.mubr.bf16.gmra.mrb[0].mxu0 %v400
      %v1170 = vpop.f32.mrb[0].mxu0
      %v1171 = vadd.f32 0.0, %v1170
      %v1172 = vpop.f32.mrb[0].mxu0
      %v1173 = vadd.f32 0.0, %v1172
      %v1174 = vpop.f32.mrb[0].mxu0
      %v1175 = vpop.f32.mrb[0].mxu0
      %1176 = vdwg.mxu0
      %1177 = vmatprep.subr.bf16.mxu0 %v865
      %1178 = vmatpush1.bf16.msra.mxu0 %v864
      %1179 = vmatprep.subr.bf16.mxu0 %v869
      %1180 = vmatpush1.bf16.msra.mxu0 %v868
      %1181 = vmatprep.subr.bf16.mxu0 %v873
      %1182 = vmatpush1.bf16.msra.mxu0 %v872
      %1183 = vmatprep.subr.bf16.mxu0 %v877
      %1184 = vmatpush1.bf16.msra.mxu0 %v876
      %1185 = vmatprep.subr.bf16.mxu0 %v881
      %1186 = vmatpush1.bf16.msra.mxu0 %v880
      %1187 = vmatprep.subr.bf16.mxu0 %v885
      %1188 = vmatpush1.bf16.msra.mxu0 %v884
      %1189 = vmatprep.subr.bf16.mxu0 %v889
      %1190 = vmatpush1.bf16.msra.mxu0 %v888
      %1191 = vmatprep.subr.bf16.mxu0 %v893
      %1192 = vmatpush1.bf16.msra.mxu0 %v892
      %1193 = vmatprep.subr.bf16.mxu0 %v897
      %1194 = vmatpush1.bf16.msra.mxu0 %v896
      %1195 = vmatprep.subr.bf16.mxu0 %v901
      %1196 = vmatpush1.bf16.msra.mxu0 %v900
      %1197 = vmatprep.subr.bf16.mxu0 %v905
      %1198 = vmatpush1.bf16.msra.mxu0 %v904
      %1199 = vmatprep.subr.bf16.mxu0 %v909
      %1200 = vmatpush1.bf16.msra.mxu0 %v908
      %1201 = vmatprep.subr.bf16.mxu0 %v913
      %1202 = vmatpush1.bf16.msra.mxu0 %v912
      %1203 = vmatprep.subr.bf16.mxu0 %v917
      %1204 = vmatpush1.bf16.msra.mxu0 %v916
      %1205 = vmatprep.subr.bf16.mxu0 %v921
      %1206 = vmatpush1.bf16.msra.mxu0 %v920
      %1207 = vmatprep.subr.bf16.mxu0 %v925
      %1208 = vmatpush1.bf16.msra.mxu0 %v924
      %1209 = vmatprep.mubr.bf16.mxu0 %v409
      %1210 = vmatmul.mubr.bf16.gmra.mrb[0].mxu0 %v407
      %v1211 = vpop.f32.mrb[0].mxu0
      %v1212 = vadd.f32 %v1171, %v1211
      %v1213 = vpop.f32.mrb[0].mxu0
      %v1214 = vadd.f32 %v1173, %v1213
      %v1215 = vpop.f32.mrb[0].mxu0
      %v1216 = vpop.f32.mrb[0].mxu0
      %1217 = vdwg.mxu0
      %v1222 = vcombine.low %v1130, %v1132
      %v1223 = vcombine.low %v1212, %v1214
      %v1226 = vadd.f32 %v261, %v1222
      %v1227 = vadd.f32 %v262, %v1223
      %1228 = vst [vmem:[#allocation2] sm:$0xff] %v1226
      %1229 = vst [vmem:[#allocation2 + $0x8] sm:$0xff] %v1227
      %p1230 = scmp.eq.s32.totalorder %s21, 7
      // Predicated region
      $region37: #{discriminator2_forward.8} parent=31 // pred_check
        %p1231 = pneg %p1230
      $region38: #{discriminator2_forward.8} parent=31 // pred_check_branch
        %1233 = sbr.rel (%p1231) target = $region40
      $region39: #{discriminator2_forward.8} parent=31 // pred_region
        %v1234 = vld [vmem:[#allocation2] sm:$0xff]
        %v1235 = vld [vmem:[#allocation2 + $0x8] sm:$0xff]
        %v1236 = vld [vmem:[%s2] sm:$0xf]
        %v1238 = vlaneseq
        %v1239 = vshrl.u32 %v1238, 7
        %v1240 = vsub.s32 0, %v1239
        %v1241 = vrot.slane %v1236, %v1240
        %v1242 = vlaneseq
        %v1243 = vshrl.u32 %v1242, 7
        %v1244 = vsub.s32 1, %v1243
        %v1245 = vrot.slane %v1236, %v1244
        %v1246 = vlaneseq
        %v1247 = vshrl.u32 %v1246, 7
        %v1248 = vsub.s32 2, %v1247
        %v1249 = vrot.slane %v1236, %v1248
        %v1250 = vlaneseq
        %v1251 = vshrl.u32 %v1250, 7
        %v1252 = vsub.s32 3, %v1251
        %v1253 = vrot.slane %v1236, %v1252
        %v1254 = vcombine.low %v1241, %v1245
        %v1255 = vcombine.low %v1249, %v1253
        %v1258 = vadd.f32 %v1234, %v1254
        %v1259 = vadd.f32 %v1235, %v1255
        %v1262 = vcombine.high %v1258, %v1258
        %v1263 = vcombine.high %v1259, %v1259
        %vm1266 = vcmask 1043456
        %v1267 = vsel %vm1266, %v1258, 0.0
        %v1268 = vrot.slane %v1267, 4
        %v1269 = vadd.f32 %v1267, %v1268
        %v1270 = vrot.slane %v1269, 2
        %v1271 = vadd.f32 %v1269, %v1270
        %v1272 = vrot.slane %v1271, 1
        %v1273 = vadd.f32 %v1271, %v1272
        %v1274 = vsel %vm1266, %v1262, 0.0
        %v1275 = vrot.slane %v1274, 4
        %v1276 = vadd.f32 %v1274, %v1275
        %v1277 = vrot.slane %v1276, 2
        %v1278 = vadd.f32 %v1276, %v1277
        %v1279 = vrot.slane %v1278, 1
        %v1280 = vadd.f32 %v1278, %v1279
        %v1281 = vsel %vm1266, %v1259, 0.0
        %v1282 = vrot.slane %v1281, 4
        %v1283 = vadd.f32 %v1281, %v1282
        %v1284 = vrot.slane %v1283, 2
        %v1285 = vadd.f32 %v1283, %v1284
        %v1286 = vrot.slane %v1285, 1
        %v1287 = vadd.f32 %v1285, %v1286
        %v1288 = vsel %vm1266, %v1263, 0.0
        %v1289 = vrot.slane %v1288, 4
        %v1290 = vadd.f32 %v1288, %v1289
        %v1291 = vrot.slane %v1290, 2
        %v1292 = vadd.f32 %v1290, %v1291
        %v1293 = vrot.slane %v1292, 1
        %v1294 = vadd.f32 %v1292, %v1293
        %v1295 = vmul.f32 %v1258, %v1258
        %v1296 = vmul.f32 %v1259, %v1259
        %v1299 = vcombine.high %v1295, %v1295
        %v1300 = vcombine.high %v1296, %v1296
        %v1303 = vsel %vm1266, %v1295, 0.0
        %v1304 = vrot.slane %v1303, 4
        %v1305 = vadd.f32 %v1303, %v1304
        %v1306 = vrot.slane %v1305, 2
        %v1307 = vadd.f32 %v1305, %v1306
        %v1308 = vrot.slane %v1307, 1
        %v1309 = vadd.f32 %v1307, %v1308
        %v1310 = vsel %vm1266, %v1299, 0.0
        %v1311 = vrot.slane %v1310, 4
        %v1312 = vadd.f32 %v1310, %v1311
        %v1313 = vrot.slane %v1312, 2
        %v1314 = vadd.f32 %v1312, %v1313
        %v1315 = vrot.slane %v1314, 1
        %v1316 = vadd.f32 %v1314, %v1315
        %v1317 = vsel %vm1266, %v1296, 0.0
        %v1318 = vrot.slane %v1317, 4
        %v1319 = vadd.f32 %v1317, %v1318
        %v1320 = vrot.slane %v1319, 2
        %v1321 = vadd.f32 %v1319, %v1320
        %v1322 = vrot.slane %v1321, 1
        %v1323 = vadd.f32 %v1321, %v1322
        %v1324 = vsel %vm1266, %v1300, 0.0
        %v1325 = vrot.slane %v1324, 4
        %v1326 = vadd.f32 %v1324, %v1325
        %v1327 = vrot.slane %v1326, 2
        %v1328 = vadd.f32 %v1326, %v1327
        %v1329 = vrot.slane %v1328, 1
        %v1330 = vadd.f32 %v1328, %v1329
        %v1331 = vmul.f32 %v1273, 0.25
        %v1332 = vmul.f32 %v1280, 0.25
        %v1333 = vmul.f32 %v1287, 0.25
        %v1334 = vmul.f32 %v1294, 0.25
        %v1335 = vmul.f32 %v1309, 0.25
        %v1336 = vmul.f32 %v1316, 0.25
        %v1337 = vmul.f32 %v1323, 0.25
        %v1338 = vmul.f32 %v1330, 0.25
        %v1339 = vmul.f32 %v1331, %v1331
        %v1340 = vmul.f32 %v1332, %v1332
        %v1341 = vmul.f32 %v1333, %v1333
        %v1342 = vmul.f32 %v1334, %v1334
        %v1343 = vsub.f32 %v1335, %v1339
        %v1344 = vsub.f32 %v1336, %v1340
        %v1345 = vsub.f32 %v1337, %v1341
        %v1346 = vsub.f32 %v1338, %v1342
        %v1347 = vmax.f32 %v1343, 0.0
        %v1348 = vmax.f32 %v1344, 0.0
        %v1349 = vmax.f32 %v1345, 0.0
        %v1350 = vmax.f32 %v1346, 0.0
        %v1355 = vcombine.low %v1331, %v1332
        %v1356 = vcombine.low %v1333, %v1334
        %v1359 = vsub.f32 %v1258, %v1355
        %v1360 = vsub.f32 %v1259, %v1356
        %v1361 = vadd.f32 %v1347, 1e-05
        %v1362 = vadd.f32 %v1348, 1e-05
        %v1363 = vadd.f32 %v1349, 1e-05
        %v1364 = vadd.f32 %v1350, 1e-05
        %v1365 = vrsqrt.pop %v1361
        %v1366 = vrsqrt.pop %v1362
        %v1367 = vrsqrt.pop %v1363
        %v1368 = vrsqrt.pop %v1364
        %v1373 = vcombine.low %v1365, %v1366
        %v1374 = vcombine.low %v1367, %v1368
        %v1377 = vmul.f32 %v1359, %v1373
        %v1378 = vmul.f32 %v1360, %v1374
        %vm1379 = vcmp.ge.f32.partialorder %v1377, 0.0
        %vm1380 = vcmp.ge.f32.partialorder %v1378, 0.0
        %v1381 = vmul.f32 %v1377, 0.2
        %v1382 = vmul.f32 %v1378, 0.2
        %v1383 = vsel %vm1379, %v1377, %v1381
        %v1384 = vsel %vm1380, %v1378, %v1382
        %v1387 = vcombine.high %v1383, %v1383
        %v1388 = vcombine.high %v1384, %v1384
        %v1391 = vpack.c.bf16 %v1383, %v1383
        %v1392 = vpack.c.bf16 %v1387, %v1387
        %v1393 = vpack.c.bf16 %v1384, %v1384
        %v1394 = vpack.c.bf16 %v1388, %v1388
        %v1399 = vcombine.low %v1391, %v1392
        %v1400 = vcombine.low %v1393, %v1394
        %v1402 = vunpack.c.l.s4 1983009808
        %v1403 = vunpack.c.0.s8 %v1402
        %v1404 = vlaneseq
        %v1405 = vshrl.u32 %v1404, 7
        %v1406 = vsub.s32 %v1403, %v1405
        %v1407 = vrot.slane %v1399, %v1406
        %v1409 = vunpack.c.l.s4 1983009808
        %v1410 = vunpack.c.0.s8 %v1409
        %v1411 = vlaneseq
        %v1412 = vshrl.u32 %v1411, 7
        %v1413 = vsub.s32 %v1410, %v1412
        %v1414 = vrot.slane %v1400, %v1413
        %v1415 = vcombine.low %v1407, %v1414
        %1417 = vst [vmem:[%s254] sm:$0xff] %v1415
      $region40: #{discriminator2_forward.8} parent=31 // pred_fallthru
        _
      %p1418 = scmp.lt.s32.totalorder %s19, 1
      %s1419 = scalar_select %p1418, %s19, 1
      %p1420 = scmp.lt.s32.totalorder %s20, 0
      %s1421 = scalar_select %p1420, %s20, 0
      %s1422 = smul.addr %s1421, 4
      %s1423 = smul.addr %s1419, 4
      %s1424 = sadd.s32 %s1422, %s1423
      %s1425 = smul.addr %s1424, 2
      %s1426 = scalar_lea.vmem %s3, %s1425
      // Predicated region
      $region41: #{discriminator2_forward.8} parent=31 // pred_check
        %p1427 = pneg %p130
      $region42: #{discriminator2_forward.8} parent=31 // pred_check_branch
        %1429 = sbr.rel (%p1427) target = $region44
      $region43: #{discriminator2_forward.8} parent=31 // pred_region
        _
      $region44: #{discriminator2_forward.8} parent=31 // pred_fallthru
        _
    $region32: #{discriminator2_forward.8} parent=5 // pred_fallthru
      _
    %p1430 = scmp.le.s32.totalorder 2, %s9
    // Predicated region
    $region45: #{discriminator2_forward.8} parent=5 // pred_check
      %p1431 = pneg %p1430
    $region46: #{discriminator2_forward.8} parent=5 // pred_check_branch
      %1433 = sbr.rel (%p1431) target = $region48
    $region47: #{discriminator2_forward.8} parent=5 // pred_region
      %s1434 = ssub.s32 %s9, 2
      // Predicated region
      $region49: #{discriminator2_forward.8} parent=47 // pred_check
        %p1435 = pneg %p136
      $region50: #{discriminator2_forward.8} parent=47 // pred_check_branch
        %1437 = sbr.rel (%p1435) target = $region52
      $region51: #{discriminator2_forward.8} parent=47 // pred_region
        %p1438 = scmp.lt.s32.totalorder %s22, 1
        %s1439 = scalar_select %p1438, %s22, 1
        %p1440 = scmp.lt.s32.totalorder %s23, 0
        %s1441 = scalar_select %p1440, %s23, 0
        %s1442 = smul.addr %s1441, 4
        %s1443 = smul.addr %s1439, 4
        %s1444 = sadd.s32 %s1442, %s1443
        %s1445 = smul.addr %s1444, 2
        %s1446 = scalar_lea.vmem %s3, %s1445
      $region52: #{discriminator2_forward.8} parent=47 // pred_fallthru
        _
    $region48: #{discriminator2_forward.8} parent=5 // pred_fallthru
      _
  $region6: #{discriminator2_forward.8} parent=0 // loop_footer
    %s13 = sadd.s32 1, %s9
  $region7: #{discriminator2_forward.8} parent=0 // loop_footer_branch
    %8 = sbr.rel target = $region3
  $region8: #{discriminator2_forward.8} parent=0 // loop_exit
    _

// kernel: discriminator2_forward.9
$region0: #{discriminator2_forward.9}
  #allocation0 [shape = 'u32[]', space=smem, size = 0x4, offset = 0x4, fixed_abs, tag = 'smem constant byte address 0x4 - core index']
  #allocation1 [shape = 'u32[144,128]{1,0:T(1,128)}', space=vmem, size = 0x12000, scoped, tag = 'internal scratch']
  #allocation2 [shape = 'f32[4,128]{1,0:T(4,128)}', space=vmem, size = 0x800, scoped, tag = 'scratch operand']
  %s0 = inlined_call_operand.vmem [shape: bf16[2,4,8192], index: 0, kind: input, shape index: {}]
  %s1 = inlined_call_operand.vmem [shape: bf16[8192,128], index: 1, kind: input, shape index: {}]
  %s2 = inlined_call_operand.vmem [shape: f32[1,128], index: 2, kind: input, shape index: {}]
  %s3 = inlined_call_operand.vmem [shape: f32[2,4,128], index: 3, kind: output, shape index: {}]
  %s4 = sld [smem:[#allocation0]]
  $region53: #{discriminator2_forward.9} parent=0
    _
  %s6 = ssub.s32 1, %s4
  %s7 = scalar_select 0, %s6, %s4
  loop: start=0, step=1, limit=34
  $region2: #{discriminator2_forward.9} parent=0 // loop_pre_header
    _
  $region3: #{discriminator2_forward.9} parent=0 // loop_header
    %s9 = sphi 0, %s13
    %p10 = scmp.ge.s32.totalorder %s9, 34
    %s16 = sphi 0, %s35
    %s17 = sphi 0, %s31
    %s18 = sphi 0, %s27
    %s19 = sphi 0, %s16
    %s20 = sphi 0, %s17
    %s21 = sphi 0, %s18
    %s22 = sphi 0, %s19
    %s23 = sphi 0, %s20
    %s24 = sphi 0, %s21
    %s42 = sphi 0, %s44
    %s45 = sphi 0, %s42
    %s46 = sphi 0, %s45
    %s62 = sphi 0, %s46
    %s68 = sphi 0, %s70
    %s71 = sphi 0, %s68
    %s72 = sphi 0, %s71
    %s88 = sphi 0, %s72
    %s92 = sphi 0, %s92
    %s94 = sphi 0, %s92
    %s95 = sphi 0, %s94
    %s109 = sphi 0, %s95
    %s117 = sphi 0, %s119
    %s120 = sphi 0, %s117
    %s121 = sphi 0, %s120
    %s137 = sphi 0, %s121
  $region4: #{discriminator2_forward.9} parent=0 // loop_header_branch
    %12 = sbr.rel (%p10) target = $region8
  $region5: #{discriminator2_forward.9} parent=0 // loop_body
    %s14 = ssub.s32 %s9, 1
    %s15 = ssub.s32 %s9, 2
    %s25 = sadd.s32 1, %s18
    %p26 = scmp.ge.s32.totalorder %s25, 16
    %s27 = scalar_select %p26, 0, %s25
    %s28 = sadd.s32 1, %s17
    %s29 = scalar_select %p26, %s28, %s17
    %p30 = scmp.ge.s32.totalorder %s29, 1
    %s31 = scalar_select %p30, 0, %s29
    %s32 = sadd.s32 1, %s16
    %s33 = scalar_select %p30, %s32, %s16
    %p34 = scmp.ge.s32.totalorder %s33, 2
    %s35 = scalar_select %p34, 0, %s33
    %s36 = ssub.s32 %s16, %s35
    %s37 = ssub.s32 %s17, %s31
    %s38 = sor.u32 %s36, %s37
    %s39 = ssub.s32 %s18, %s27
    %s40 = sor.u32 %s38, %s39
    %p41 = scmp.eq.s32.totalorder %s40, 0
    %s43 = sadd.s32 %s42, 1
    %s44 = scalar_select %p41, %s42, %s43
    %p47 = pneg %p41
    %p48 = scmp.eq.s32.totalorder %s9, 31
    %p49 = por %p47, %p48
    %p50 = scmp.ne.s32.totalorder %s42, %s45
    %p51 = scmp.eq.s32.totalorder %s9, 0
    %p52 = por %p50, %p51
    %p53 = scmp.ne.s32.totalorder %s42, %s45
    %p54 = scmp.eq.s32.totalorder %s14, 31
    %p55 = por %p53, %p54
    %p56 = scmp.ne.s32.totalorder %s45, %s46
    %p57 = scmp.eq.s32.totalorder %s14, 0
    %p58 = por %p56, %p57
    %p59 = scmp.ne.s32.totalorder %s45, %s46
    %p60 = scmp.eq.s32.totalorder %s15, 31
    %p61 = por %p59, %p60
    %p63 = scmp.ne.s32.totalorder %s46, %s62
    %p64 = scmp.eq.s32.totalorder %s15, 0
    %p65 = por %p63, %p64
    %s66 = ssub.s32 %s18, %s27
    %p67 = scmp.eq.s32.totalorder %s66, 0
    %s69 = sadd.s32 %s68, 1
    %s70 = scalar_select %p67, %s68, %s69
    %p73 = pneg %p67
    %p74 = scmp.eq.s32.totalorder %s9, 31
    %p75 = por %p73, %p74
    %p76 = scmp.ne.s32.totalorder %s68, %s71
    %p77 = scmp.eq.s32.totalorder %s9, 0
    %p78 = por %p76, %p77
    %p79 = scmp.ne.s32.totalorder %s68, %s71
    %p80 = scmp.eq.s32.totalorder %s14, 31
    %p81 = por %p79, %p80
    %p82 = scmp.ne.s32.totalorder %s71, %s72
    %p83 = scmp.eq.s32.totalorder %s14, 0
    %p84 = por %p82, %p83
    %p85 = scmp.ne.s32.totalorder %s71, %s72
    %p86 = scmp.eq.s32.totalorder %s15, 31
    %p87 = por %p85, %p86
    %p89 = scmp.ne.s32.totalorder %s72, %s88
    %p90 = scmp.eq.s32.totalorder %s15, 0
    %p91 = por %p89, %p90
    %s93 = sadd.s32 %s92, 1
    %p96 = scmp.eq.s32.totalorder %s9, 31
    %p97 = scmp.ne.s32.totalorder %s92, %s94
    %p98 = scmp.eq.s32.totalorder %s9, 0
    %p99 = por %p97, %p98
    %p100 = scmp.ne.s32.totalorder %s92, %s94
    %p101 = scmp.eq.s32.totalorder %s14, 31
    %p102 = por %p100, %p101
    %p103 = scmp.ne.s32.totalorder %s94, %s95
    %p104 = scmp.eq.s32.totalorder %s14, 0
    %p105 = por %p103, %p104
    %p106 = scmp.ne.s32.totalorder %s94, %s95
    %p107 = scmp.eq.s32.totalorder %s15, 31
    %p108 = por %p106, %p107
    %p110 = scmp.ne.s32.totalorder %s95, %s109
    %p111 = scmp.eq.s32.totalorder %s15, 0
    %p112 = por %p110, %p111
    %s113 = ssub.s32 %s16, %s35
    %s114 = ssub.s32 %s17, %s31
    %s115 = sor.u32 %s113, %s114
    %p116 = scmp.eq.s32.totalorder %s115, 0
    %s118 = sadd.s32 %s117, 1
    %s119 = scalar_select %p116, %s117, %s118
    %p122 = pneg %p116
    %p123 = scmp.eq.s32.totalorder %s9, 31
    %p124 = por %p122, %p123
    %p125 = scmp.ne.s32.totalorder %s117, %s120
    %p126 = scmp.eq.s32.totalorder %s9, 0
    %p127 = por %p125, %p126
    %p128 = scmp.ne.s32.totalorder %s117, %s120
    %p129 = scmp.eq.s32.totalorder %s14, 31
    %p130 = por %p128, %p129
    %p131 = scmp.ne.s32.totalorder %s120, %s121
    %p132 = scmp.eq.s32.totalorder %s14, 0
    %p133 = por %p131, %p132
    %p134 = scmp.ne.s32.totalorder %s120, %s121
    %p135 = scmp.eq.s32.totalorder %s15, 31
    %p136 = por %p134, %p135
    %p138 = scmp.ne.s32.totalorder %s121, %s137
    %p139 = scmp.eq.s32.totalorder %s15, 0
    %p140 = por %p138, %p139
    %p141 = scmp.le.s32.totalorder 1, %s9
    %p142 = scmp.lt.s32.totalorder %s9, 33
    %p143 = pnand %p141, %p142
    %p144 = pneg %p143
    // Predicated region
    $region9: #{discriminator2_forward.9} parent=5 // pred_check
      _
    $region10: #{discriminator2_forward.9} parent=5 // pred_check_branch
      %146 = sbr.rel (%p143) target = $region12
    $region11: #{discriminator2_forward.9} parent=5 // pred_region
      %s147 = ssub.s32 %s9, 1
      // Predicated region
      $region13: #{discriminator2_forward.9} parent=11 // pred_check
        %p148 = pneg %p105
      $region14: #{discriminator2_forward.9} parent=11 // pred_check_branch
        %150 = sbr.rel (%p148) target = $region16
      $region15: #{discriminator2_forward.9} parent=11 // pred_region
        _
      $region16: #{discriminator2_forward.9} parent=11 // pred_fallthru
        _
    $region12: #{discriminator2_forward.9} parent=5 // pred_fallthru
      _
    %p151 = scmp.lt.s32.totalorder %s9, 32
    // Predicated region
    $region17: #{discriminator2_forward.9} parent=5 // pred_check
      %p152 = pneg %p151
    $region18: #{discriminator2_forward.9} parent=5 // pred_check_branch
      %154 = sbr.rel (%p152) target = $region20
    $region19: #{discriminator2_forward.9} parent=5 // pred_region
      // Predicated region
      $region21: #{discriminator2_forward.9} parent=19 // pred_check
        %p155 = pneg %p52
      $region22: #{discriminator2_forward.9} parent=19 // pred_check_branch
        %157 = sbr.rel (%p155) target = $region24
      $region23: #{discriminator2_forward.9} parent=19 // pred_region
        %s158 = smul.u32 4, %s18
        %p159 = scmp.lt.s32.totalorder %s16, 1
        %s160 = scalar_select %p159, %s16, 1
        %p161 = scmp.lt.s32.totalorder %s17, 0
        %s162 = scalar_select %p161, %s17, 0
        %p163 = scmp.lt.s32.totalorder %s158, 63
        %s164 = scalar_select %p163, %s158, 63
        %s165 = smul.addr %s162, 64
        %s166 = sadd.s32 %s164, %s165
        %s167 = smul.addr %s160, 64
        %s168 = sadd.s32 %s166, %s167
        %s169 = smul.addr %s168, 2
        %s170 = scalar_lea.vmem %s0, %s169
        %s171 = smul.u32 4, %s18
      $region24: #{discriminator2_forward.9} parent=19 // pred_fallthru
        _
      // Predicated region
      $region25: #{discriminator2_forward.9} parent=19 // pred_check
        %p172 = pneg %p78
      $region26: #{discriminator2_forward.9} parent=19 // pred_check_branch
        %174 = sbr.rel (%p172) target = $region28
      $region27: #{discriminator2_forward.9} parent=19 // pred_region
        %s175 = smul.u32 64, %s18
        %p176 = scmp.lt.s32.totalorder %s175, 1023
        %s177 = scalar_select %p176, %s175, 1023
        %s178 = smul.addr %s177, 4
        %s179 = scalar_lea.vmem %s1, %s178
        %s180 = smul.u32 64, %s18
      $region28: #{discriminator2_forward.9} parent=19 // pred_fallthru
        _
    $region20: #{discriminator2_forward.9} parent=5 // pred_fallthru
      _
    %p181 = scmp.le.s32.totalorder 1, %s9
    %p182 = scmp.lt.s32.totalorder %s9, 33
    %p183 = pnand %p181, %p182
    %p184 = pneg %p183
    // Predicated region
    $region29: #{discriminator2_forward.9} parent=5 // pred_check
      _
    $region30: #{discriminator2_forward.9} parent=5 // pred_check_branch
      %186 = sbr.rel (%p183) target = $region32
    $region31: #{discriminator2_forward.9} parent=5 // pred_region
      %s187 = ssub.s32 %s9, 1
      %s188 = smul.u32 4, %s21
      %p189 = scmp.lt.s32.totalorder %s19, 1
      %s190 = scalar_select %p189, %s19, 1
      %p191 = scmp.lt.s32.totalorder %s20, 0
      %s192 = scalar_select %p191, %s20, 0
      %p193 = scmp.lt.s32.totalorder %s188, 63
      %s194 = scalar_select %p193, %s188, 63
      %s195 = smul.addr %s192, 64
      %s196 = sadd.s32 %s194, %s195
      %s197 = smul.addr %s190, 64
      %s198 = sadd.s32 %s196, %s197
      %s199 = smul.addr %s198, 2
      %s200 = scalar_lea.vmem %s0, %s199
      %p201 = pneg %p58
      %p202 = pneg %p55
      %s203 = smul.u32 64, %s21
      %p204 = scmp.lt.s32.totalorder %s203, 1023
      %s205 = scalar_select %p204, %s203, 1023
      %s206 = smul.addr %s205, 4
      %s207 = scalar_lea.vmem %s1, %s206
      %p208 = pneg %p84
      %p209 = pneg %p81
      %p210 = pneg %p105
      %p211 = pneg %p102
      %p212 = pneg %p133
      %p213 = pneg %p130
      %p214 = scmp.lt.s32.totalorder %s19, 1
      %s215 = scalar_select %p214, %s19, 1
      %p216 = scmp.lt.s32.totalorder %s20, 0
      %s217 = scalar_select %p216, %s20, 0
      %s218 = sadd.s32 %s217, %s215
      %s219 = smul.addr %s218, 4
      %s220 = scalar_lea.vmem %s3, %s219
      %s221 = smul.u32 4, %s21
      %p222 = scmp.lt.s32.totalorder %s19, 1
      %s223 = scalar_select %p222, %s19, 1
      %p224 = scmp.lt.s32.totalorder %s20, 0
      %s225 = scalar_select %p224, %s20, 0
      %p226 = scmp.lt.s32.totalorder %s221, 63
      %s227 = scalar_select %p226, %s221, 63
      %s228 = smul.addr %s225, 64
      %s229 = sadd.s32 %s227, %s228
      %s230 = smul.addr %s223, 64
      %s231 = sadd.s32 %s229, %s230
      %s232 = smul.addr %s231, 2
      %s233 = scalar_lea.vmem %s0, %s232
      %s234 = smul.u32 4, %s21
      %s235 = smul.u32 64, %s21
      %p236 = scmp.lt.s32.totalorder %s235, 1023
      %s237 = scalar_select %p236, %s235, 1023
      %s238 = smul.addr %s237, 4
      %s239 = scalar_lea.vmem %s1, %s238
      %s240 = smul.u32 64, %s21
      %p241 = scmp.lt.s32.totalorder %s19, 1
      %s242 = scalar_select %p241, %s19, 1
      %p243 = scmp.lt.s32.totalorder %s20, 0
      %s244 = scalar_select %p243, %s20, 0
      %s245 = sadd.s32 %s244, %s242
      %s246 = smul.addr %s245, 4
      %s247 = scalar_lea.vmem %s3, %s246
      %p249 = scmp.eq.s32.totalorder %s21, 0
      // Predicated region
      $region33: #{discriminator2_forward.9} parent=31 // pred_check
        %p250 = pneg %p249
      $region34: #{discriminator2_forward.9} parent=31 // pred_check_branch
        %252 = sbr.rel (%p250) target = $region36
      $region35: #{discriminator2_forward.9} parent=31 // pred_region
        %253 = vst [vmem:[#allocation2] sm:$0xf] 0.0
      $region36: #{discriminator2_forward.9} parent=31 // pred_fallthru
        _
      %v254 = vld [vmem:[#allocation2] sm:$0xf]
      %v255 = vld [vmem:[%s233] sm:$0xff]
      %v256 = vld [vmem:[%s239] sm:$0xf]
      %v257 = vld [vmem:[%s239 + $0x4] sm:$0xf]
      %v258 = vld [vmem:[%s239 + $0x8] sm:$0xf]
      %v259 = vld [vmem:[%s239 + $0xc] sm:$0xf]
      %v260 = vld [vmem:[%s239 + $0x10] sm:$0xf]
      %v261 = vld [vmem:[%s239 + $0x14] sm:$0xf]
      %v262 = vld [vmem:[%s239 + $0x18] sm:$0xf]
      %v263 = vld [vmem:[%s239 + $0x1c] sm:$0xf]
      %v264 = vld [vmem:[%s239 + $0x20] sm:$0xf]
      %v265 = vld [vmem:[%s239 + $0x24] sm:$0xf]
      %v266 = vld [vmem:[%s239 + $0x28] sm:$0xf]
      %v267 = vld [vmem:[%s239 + $0x2c] sm:$0xf]
      %v268 = vld [vmem:[%s239 + $0x30] sm:$0xf]
      %v269 = vld [vmem:[%s239 + $0x34] sm:$0xf]
      %v270 = vld [vmem:[%s239 + $0x38] sm:$0xf]
      %v271 = vld [vmem:[%s239 + $0x3c] sm:$0xf]
      %v272 = vld [vmem:[%s239 + $0x40] sm:$0xf]
      %v273 = vld [vmem:[%s239 + $0x44] sm:$0xf]
      %v274 = vld [vmem:[%s239 + $0x48] sm:$0xf]
      %v275 = vld [vmem:[%s239 + $0x4c] sm:$0xf]
      %v276 = vld [vmem:[%s239 + $0x50] sm:$0xf]
      %v277 = vld [vmem:[%s239 + $0x54] sm:$0xf]
      %v278 = vld [vmem:[%s239 + $0x58] sm:$0xf]
      %v279 = vld [vmem:[%s239 + $0x5c] sm:$0xf]
      %v280 = vld [vmem:[%s239 + $0x60] sm:$0xf]
      %v281 = vld [vmem:[%s239 + $0x64] sm:$0xf]
      %v282 = vld [vmem:[%s239 + $0x68] sm:$0xf]
      %v283 = vld [vmem:[%s239 + $0x6c] sm:$0xf]
      %v284 = vld [vmem:[%s239 + $0x70] sm:$0xf]
      %v285 = vld [vmem:[%s239 + $0x74] sm:$0xf]
      %v286 = vld [vmem:[%s239 + $0x78] sm:$0xf]
      %v287 = vld [vmem:[%s239 + $0x7c] sm:$0xf]
      %v288 = vld [vmem:[%s239 + $0x80] sm:$0xf]
      %v289 = vld [vmem:[%s239 + $0x84] sm:$0xf]
      %v290 = vld [vmem:[%s239 + $0x88] sm:$0xf]
      %v291 = vld [vmem:[%s239 + $0x8c] sm:$0xf]
      %v292 = vld [vmem:[%s239 + $0x90] sm:$0xf]
      %v293 = vld [vmem:[%s239 + $0x94] sm:$0xf]
      %v294 = vld [vmem:[%s239 + $0x98] sm:$0xf]
      %v295 = vld [vmem:[%s239 + $0x9c] sm:$0xf]
      %v296 = vld [vmem:[%s239 + $0xa0] sm:$0xf]
      %v297 = vld [vmem:[%s239 + $0xa4] sm:$0xf]
      %v298 = vld [vmem:[%s239 + $0xa8] sm:$0xf]
      %v299 = vld [vmem:[%s239 + $0xac] sm:$0xf]
      %v300 = vld [vmem:[%s239 + $0xb0] sm:$0xf]
      %v301 = vld [vmem:[%s239 + $0xb4] sm:$0xf]
      %v302 = vld [vmem:[%s239 + $0xb8] sm:$0xf]
      %v303 = vld [vmem:[%s239 + $0xbc] sm:$0xf]
      %v304 = vld [vmem:[%s239 + $0xc0] sm:$0xf]
      %v305 = vld [vmem:[%s239 + $0xc4] sm:$0xf]
      %v306 = vld [vmem:[%s239 + $0xc8] sm:$0xf]
      %v307 = vld [vmem:[%s239 + $0xcc] sm:$0xf]
      %v308 = vld [vmem:[%s239 + $0xd0] sm:$0xf]
      %v309 = vld [vmem:[%s239 + $0xd4] sm:$0xf]
      %v310 = vld [vmem:[%s239 + $0xd8] sm:$0xf]
      %v311 = vld [vmem:[%s239 + $0xdc] sm:$0xf]
      %v312 = vld [vmem:[%s239 + $0xe0] sm:$0xf]
      %v313 = vld [vmem:[%s239 + $0xe4] sm:$0xf]
      %v314 = vld [vmem:[%s239 + $0xe8] sm:$0xf]
      %v315 = vld [vmem:[%s239 + $0xec] sm:$0xf]
      %v316 = vld [vmem:[%s239 + $0xf0] sm:$0xf]
      %v317 = vld [vmem:[%s239 + $0xf4] sm:$0xf]
      %v318 = vld [vmem:[%s239 + $0xf8] sm:$0xf]
      %v319 = vld [vmem:[%s239 + $0xfc] sm:$0xf]
      %v321 = vcombine.high %v255, %v255
      %v323 = vunpack.c.l.s4 1983009808
      %v324 = vunpack.c.0.s8 %v323
      %v325 = vlaneseq
      %v326 = vshrl.u32 %v325, 7
      %v327 = vsub.s32 %v324, %v326
      %v328 = vrot.slane %v255, %v327
      %v330 = vunpack.c.l.s4 1983009808
      %v331 = vunpack.c.0.s8 %v330
      %v332 = vlaneseq
      %v333 = vshrl.u32 %v332, 7
      %v334 = vsub.s32 %v331, %v333
      %v335 = vrot.slane %v321, %v334
      %v336 = vcombine.high %v328, %v328
      %v337 = vcombine.high %v335, %v335
      %v406 = vunpack.c.l.b16 %v256
      %v407 = vunpack.c.l.b16 %v257
      %v408 = vunpack.c.l.b16 %v258
      %v409 = vunpack.c.l.b16 %v259
      %v410 = vunpack.c.l.b16 %v260
      %v411 = vunpack.c.l.b16 %v261
      %v412 = vunpack.c.l.b16 %v262
      %v413 = vunpack.c.l.b16 %v263
      %v414 = vunpack.c.l.b16 %v264
      %v415 = vunpack.c.l.b16 %v265
      %v416 = vunpack.c.l.b16 %v266
      %v417 = vunpack.c.l.b16 %v267
      %v418 = vunpack.c.l.b16 %v268
      %v419 = vunpack.c.l.b16 %v269
      %v420 = vunpack.c.l.b16 %v270
      %v421 = vunpack.c.l.b16 %v271
      %v422 = vunpack.c.l.b16 %v272
      %v423 = vunpack.c.l.b16 %v273
      %v424 = vunpack.c.l.b16 %v274
      %v425 = vunpack.c.l.b16 %v275
      %v426 = vunpack.c.l.b16 %v276
      %v427 = vunpack.c.l.b16 %v277
      %v428 = vunpack.c.l.b16 %v278
      %v429 = vunpack.c.l.b16 %v279
      %v430 = vunpack.c.l.b16 %v280
      %v431 = vunpack.c.l.b16 %v281
      %v432 = vunpack.c.l.b16 %v282
      %v433 = vunpack.c.l.b16 %v283
      %v434 = vunpack.c.l.b16 %v284
      %v435 = vunpack.c.l.b16 %v285
      %v436 = vunpack.c.l.b16 %v286
      %v437 = vunpack.c.l.b16 %v287
      %v438 = vunpack.c.l.b16 %v288
      %v439 = vunpack.c.l.b16 %v289
      %v440 = vunpack.c.l.b16 %v290
      %v441 = vunpack.c.l.b16 %v291
      %v442 = vunpack.c.l.b16 %v292
      %v443 = vunpack.c.l.b16 %v293
      %v444 = vunpack.c.l.b16 %v294
      %v445 = vunpack.c.l.b16 %v295
      %v446 = vunpack.c.l.b16 %v296
      %v447 = vunpack.c.l.b16 %v297
      %v448 = vunpack.c.l.b16 %v298
      %v449 = vunpack.c.l.b16 %v299
      %v450 = vunpack.c.l.b16 %v300
      %v451 = vunpack.c.l.b16 %v301
      %v452 = vunpack.c.l.b16 %v302
      %v453 = vunpack.c.l.b16 %v303
      %v454 = vunpack.c.l.b16 %v304
      %v455 = vunpack.c.l.b16 %v305
      %v456 = vunpack.c.l.b16 %v306
      %v457 = vunpack.c.l.b16 %v307
      %v458 = vunpack.c.l.b16 %v308
      %v459 = vunpack.c.l.b16 %v309
      %v460 = vunpack.c.l.b16 %v310
      %v461 = vunpack.c.l.b16 %v311
      %v462 = vunpack.c.l.b16 %v312
      %v463 = vunpack.c.l.b16 %v313
      %v464 = vunpack.c.l.b16 %v314
      %v465 = vunpack.c.l.b16 %v315
      %v466 = vunpack.c.l.b16 %v316
      %v467 = vunpack.c.l.b16 %v317
      %v468 = vunpack.c.l.b16 %v318
      %v469 = vunpack.c.l.b16 %v319
      %v470 = vpack.c.b16 %v407, %v406
      %v471 = vpack.c.b16 %v409, %v408
      %v472 = vpack.c.b16 %v411, %v410
      %v473 = vpack.c.b16 %v413, %v412
      %v474 = vpack.c.b16 %v415, %v414
      %v475 = vpack.c.b16 %v417, %v416
      %v476 = vpack.c.b16 %v419, %v418
      %v477 = vpack.c.b16 %v421, %v420
      %v478 = vpack.c.b16 %v423, %v422
      %v479 = vpack.c.b16 %v425, %v424
      %v480 = vpack.c.b16 %v427, %v426
      %v481 = vpack.c.b16 %v429, %v428
      %v482 = vpack.c.b16 %v431, %v430
      %v483 = vpack.c.b16 %v433, %v432
      %v484 = vpack.c.b16 %v435, %v434
      %v485 = vpack.c.b16 %v437, %v436
      %v486 = vpack.c.b16 %v439, %v438
      %v487 = vpack.c.b16 %v441, %v440
      %v488 = vpack.c.b16 %v443, %v442
      %v489 = vpack.c.b16 %v445, %v444
      %v490 = vpack.c.b16 %v447, %v446
      %v491 = vpack.c.b16 %v449, %v448
      %v492 = vpack.c.b16 %v451, %v450
      %v493 = vpack.c.b16 %v453, %v452
      %v494 = vpack.c.b16 %v455, %v454
      %v495 = vpack.c.b16 %v457, %v456
      %v496 = vpack.c.b16 %v459, %v458
      %v497 = vpack.c.b16 %v461, %v460
      %v498 = vpack.c.b16 %v463, %v462
      %v499 = vpack.c.b16 %v465, %v464
      %v500 = vpack.c.b16 %v467, %v466
      %v501 = vpack.c.b16 %v469, %v468
      %534 = vmatprep.subr.bf16.mxu0 0
      %535 = vmatpush1.bf16.msra.mxu0 %v470
      %536 = vmatprep.subr.bf16.mxu0 0
      %537 = vmatpush1.bf16.msra.mxu0 %v471
      %538 = vmatprep.subr.bf16.mxu0 0
      %539 = vmatpush1.bf16.msra.mxu0 %v472
      %540 = vmatprep.subr.bf16.mxu0 0
      %541 = vmatpush1.bf16.msra.mxu0 %v473
      %542 = vmatprep.subr.bf16.mxu0 0
      %543 = vmatpush1.bf16.msra.mxu0 %v474
      %544 = vmatprep.subr.bf16.mxu0 0
      %545 = vmatpush1.bf16.msra.mxu0 %v475
      %546 = vmatprep.subr.bf16.mxu0 0
      %547 = vmatpush1.bf16.msra.mxu0 %v476
      %548 = vmatprep.subr.bf16.mxu0 0
      %549 = vmatpush1.bf16.msra.mxu0 %v477
      %550 = vmatprep.subr.bf16.mxu0 0
      %551 = vmatpush1.bf16.msra.mxu0 %v478
      %552 = vmatprep.subr.bf16.mxu0 0
      %553 = vmatpush1.bf16.msra.mxu0 %v479
      %554 = vmatprep.subr.bf16.mxu0 0
      %555 = vmatpush1.bf16.msra.mxu0 %v480
      %556 = vmatprep.subr.bf16.mxu0 0
      %557 = vmatpush1.bf16.msra.mxu0 %v481
      %558 = vmatprep.subr.bf16.mxu0 0
      %559 = vmatpush1.bf16.msra.mxu0 %v482
      %560 = vmatprep.subr.bf16.mxu0 0
      %561 = vmatpush1.bf16.msra.mxu0 %v483
      %562 = vmatprep.subr.bf16.mxu0 0
      %563 = vmatpush1.bf16.msra.mxu0 %v484
      %564 = vmatprep.subr.bf16.mxu0 0
      %565 = vmatpush1.bf16.msra.mxu0 %v485
      %566 = vmatprep.mubr.bf16.mxu0 %v336
      %567 = vmatmul.mubr.bf16.gmra.mrb[0].mxu0 %v328
      %v568 = vpop.f32.mrb[0].mxu0
      %v569 = vadd.f32 0.0, %v568
      %v570 = vpop.f32.mrb[0].mxu0
      %v571 = vpop.f32.mrb[0].mxu0
      %v572 = vpop.f32.mrb[0].mxu0
      %573 = vdwg.mxu0
      %574 = vmatprep.subr.bf16.mxu0 0
      %575 = vmatpush1.bf16.msra.mxu0 %v486
      %576 = vmatprep.subr.bf16.mxu0 0
      %577 = vmatpush1.bf16.msra.mxu0 %v487
      %578 = vmatprep.subr.bf16.mxu0 0
      %579 = vmatpush1.bf16.msra.mxu0 %v488
      %580 = vmatprep.subr.bf16.mxu0 0
      %581 = vmatpush1.bf16.msra.mxu0 %v489
      %582 = vmatprep.subr.bf16.mxu0 0
      %583 = vmatpush1.bf16.msra.mxu0 %v490
      %584 = vmatprep.subr.bf16.mxu0 0
      %585 = vmatpush1.bf16.msra.mxu0 %v491
      %586 = vmatprep.subr.bf16.mxu0 0
      %587 = vmatpush1.bf16.msra.mxu0 %v492
      %588 = vmatprep.subr.bf16.mxu0 0
      %589 = vmatpush1.bf16.msra.mxu0 %v493
      %590 = vmatprep.subr.bf16.mxu0 0
      %591 = vmatpush1.bf16.msra.mxu0 %v494
      %592 = vmatprep.subr.bf16.mxu0 0
      %593 = vmatpush1.bf16.msra.mxu0 %v495
      %594 = vmatprep.subr.bf16.mxu0 0
      %595 = vmatpush1.bf16.msra.mxu0 %v496
      %596 = vmatprep.subr.bf16.mxu0 0
      %597 = vmatpush1.bf16.msra.mxu0 %v497
      %598 = vmatprep.subr.bf16.mxu0 0
      %599 = vmatpush1.bf16.msra.mxu0 %v498
      %600 = vmatprep.subr.bf16.mxu0 0
      %601 = vmatpush1.bf16.msra.mxu0 %v499
      %602 = vmatprep.subr.bf16.mxu0 0
      %603 = vmatpush1.bf16.msra.mxu0 %v500
      %604 = vmatprep.subr.bf16.mxu0 0
      %605 = vmatpush1.bf16.msra.mxu0 %v501
      %606 = vmatprep.mubr.bf16.mxu0 %v337
      %607 = vmatmul.mubr.bf16.gmra.mrb[0].mxu0 %v335
      %v608 = vpop.f32.mrb[0].mxu0
      %v609 = vadd.f32 %v569, %v608
      %v610 = vpop.f32.mrb[0].mxu0
      %v611 = vpop.f32.mrb[0].mxu0
      %v612 = vpop.f32.mrb[0].mxu0
      %613 = vdwg.mxu0
      %v614 = vadd.f32 %v254, %v609
      %615 = vst [vmem:[#allocation2] sm:$0xf] %v614
      %p616 = scmp.eq.s32.totalorder %s21, 15
      // Predicated region
      $region37: #{discriminator2_forward.9} parent=31 // pred_check
        %p617 = pneg %p616
      $region38: #{discriminator2_forward.9} parent=31 // pred_check_branch
        %619 = sbr.rel (%p617) target = $region40
      $region39: #{discriminator2_forward.9} parent=31 // pred_region
        %v620 = vld [vmem:[#allocation2] sm:$0xf]
        %v621 = vld [vmem:[%s2] sm:$0x1]
        %v623 = vlaneseq
        %v624 = vshrl.u32 %v623, 7
        %v625 = vsub.s32 0, %v624
        %v626 = vrot.slane %v621, %v625
        %v628 = vadd.f32 %v620, %v626
        %629 = vst [vmem:[%s247] sm:$0xf] %v628
      $region40: #{discriminator2_forward.9} parent=31 // pred_fallthru
        _
      %p630 = scmp.lt.s32.totalorder %s19, 1
      %s631 = scalar_select %p630, %s19, 1
      %p632 = scmp.lt.s32.totalorder %s20, 0
      %s633 = scalar_select %p632, %s20, 0
      %s634 = sadd.s32 %s633, %s631
      %s635 = smul.addr %s634, 4
      %s636 = scalar_lea.vmem %s3, %s635
      // Predicated region
      $region41: #{discriminator2_forward.9} parent=31 // pred_check
        %p637 = pneg %p130
      $region42: #{discriminator2_forward.9} parent=31 // pred_check_branch
        %639 = sbr.rel (%p637) target = $region44
      $region43: #{discriminator2_forward.9} parent=31 // pred_region
        _
      $region44: #{discriminator2_forward.9} parent=31 // pred_fallthru
        _
    $region32: #{discriminator2_forward.9} parent=5 // pred_fallthru
      _
    %p640 = scmp.le.s32.totalorder 2, %s9
    // Predicated region
    $region45: #{discriminator2_forward.9} parent=5 // pred_check
      %p641 = pneg %p640
    $region46: #{discriminator2_forward.9} parent=5 // pred_check_branch
      %643 = sbr.rel (%p641) target = $region48
    $region47: #{discriminator2_forward.9} parent=5 // pred_region
      %s644 = ssub.s32 %s9, 2
      // Predicated region
      $region49: #{discriminator2_forward.9} parent=47 // pred_check
        %p645 = pneg %p136
      $region50: #{discriminator2_forward.9} parent=47 // pred_check_branch
        %647 = sbr.rel (%p645) target = $region52
      $region51: #{discriminator2_forward.9} parent=47 // pred_region
        %p648 = scmp.lt.s32.totalorder %s22, 1
        %s649 = scalar_select %p648, %s22, 1
        %p650 = scmp.lt.s32.totalorder %s23, 0
        %s651 = scalar_select %p650, %s23, 0
        %s652 = sadd.s32 %s651, %s649
        %s653 = smul.addr %s652, 4
        %s654 = scalar_lea.vmem %s3, %s653
      $region52: #{discriminator2_forward.9} parent=47 // pred_fallthru
        _
    $region48: #{discriminator2_forward.9} parent=5 // pred_fallthru
      _
  $region6: #{discriminator2_forward.9} parent=0 // loop_footer
    %s13 = sadd.s32 1, %s9
  $region7: #{discriminator2_forward.9} parent=0 // loop_footer_branch
    %8 = sbr.rel target = $region3
  $region8: #{discriminator2_forward.9} parent=0 // loop_exit
    _

</llo_original>
